<compile_context>
chip_gen: v7x
topology: tpu7x:2x2x1
jax: 0.10.0
libtpu: 0.0.40
codegen_flags: <defaults>
</compile_context>

<pallas_src>
import math
from functools import partial

import jax
import jax.numpy as jnp
from jax.experimental import pallas as pl
from jax.experimental.pallas import tpu as pltpu

# ----------------------------- model config (small, synthetic) --------------
DIM = 128
N_LAYERS = 2
N_HEADS = 4
N_KV_HEADS = 2
VOCAB = 256
MULTIPLE_OF = 128
NORM_EPS = 1e-5
MAX_BATCH = 4
MAX_SEQ = 16

HEAD_DIM = DIM // N_HEADS              # 32
N_REP = N_HEADS // N_KV_HEADS          # 2
Q_DIM = N_HEADS * HEAD_DIM             # 128
KV_DIM = N_KV_HEADS * HEAD_DIM         # 64
QKV_DIM = Q_DIM + 2 * KV_DIM           # 256


def _ffn_hidden_dim(dim: int, multiple_of: int) -> int:
    hidden = 4 * dim
    hidden = int(2 * hidden / 3)
    hidden = multiple_of * ((hidden + multiple_of - 1) // multiple_of)
    return hidden


HIDDEN = _ffn_hidden_dim(DIM, MULTIPLE_OF)  # 384


# ----------------------------- fused all-layers kernel -----------------------
def _layers_kernel(start_ref, x_ref, cache_in_ref, an_ref, fn_ref, wqkv2_ref,
                   wo_ref, w13_ref, w2_ref, cos_ref, sin_ref,
                   h_ref, cache_out_ref, attn_scr,
                   *, batch, seqlen, eps, scale):
    """One grid step == one transformer layer; residual stream lives in h_ref."""
    layer = pl.program_id(0)
    sp = start_ref[0]                                    # dynamic start_pos (SMEM)

    # Residual stream resident in VMEM across the (arbitrary) layer axis.
    @pl.when(layer == 0)
    def _():
        h_ref[...] = x_ref[...]

    h = h_ref[...]                                       # (BS, D) f32

    # ---- attention RMSNorm (f32 VPU/EUP) ----
    xn = h * jax.lax.rsqrt(jnp.mean(h * h, axis=-1, keepdims=True) + eps)
    xn = (xn * an_ref[...]).astype(jnp.bfloat16)

    # ---- fused QKV projection with the RoPE pair-swap folded into the
    #      weights: one bf16 (BS,128)@(128,512) matmul, f32 accumulation. ----
    qkv2 = jnp.dot(xn, wqkv2_ref[...], preferred_element_type=jnp.float32)
    # Interleaved RoPE: x*cos + pair_swap(x)*sin ; V columns get cos=1/sin=0.
    qkv = qkv2[:, :QKV_DIM] * cos_ref[...] + qkv2[:, QKV_DIM:] * sin_ref[...]

    q = qkv[:, :Q_DIM]                                   # (BS, 128)
    kv_new = qkv[:, Q_DIM:]                              # (BS, 128) lane-dense K|V

    # ---- KV cache update in-kernel at dynamic start_pos ----
    cache_out_ref[...] = cache_in_ref[...]
    for b in range(batch):
        cache_out_ref[b, pl.ds(sp, seqlen), :] = kv_new[b * seqlen:(b + 1) * seqlen]
    cache = cache_out_ref[...]                           # (MAX_BATCH, MAX_SEQ, 128)
    keys = cache[:batch, :, :KV_DIM].astype(jnp.bfloat16)   # (B, MAX_SEQ, 64)
    vals = cache[:batch, :, KV_DIM:].astype(jnp.bfloat16)   # (B, MAX_SEQ, 64)

    # ---- causal mask over the fixed-length cache window (also masks cols
    #      beyond start_pos + seqlen, so stale cache rows never contribute) ----
    row = jax.lax.broadcasted_iota(jnp.int32, (seqlen, MAX_SEQ), 0)
    col = jax.lax.broadcasted_iota(jnp.int32, (seqlen, MAX_SEQ), 1)
    bias = jnp.where(col <= row + sp, 0.0, -1e30).astype(jnp.float32)

    # ---- GQA attention: batched over B, one einsum pair per query head;
    #      kv head = h // N_REP (no repeat_kv materialization). ----
    q3 = q.reshape(batch, seqlen, Q_DIM).astype(jnp.bfloat16)
    for hh in range(N_HEADS):
        g = hh // N_REP
        qh = q3[:, :, hh * HEAD_DIM:(hh + 1) * HEAD_DIM]     # (B, S, 32) bf16
        kh = keys[:, :, g * HEAD_DIM:(g + 1) * HEAD_DIM]     # (B, L, 32) bf16
        vh = vals[:, :, g * HEAD_DIM:(g + 1) * HEAD_DIM]     # (B, L, 32) bf16
        s = jnp.einsum('bqd,bkd->bqk', qh, kh,
                       preferred_element_type=jnp.float32)   # (B, S, L) f32
        s = s * scale + bias[None]
        s = s - jnp.max(s, axis=-1, keepdims=True)
        p = jnp.exp(s)
        p = p * pl.reciprocal(jnp.sum(p, axis=-1, keepdims=True), approx=True)
        oh = jnp.einsum('bqk,bkd->bqd', p.astype(jnp.bfloat16), vh,
                        preferred_element_type=jnp.float32)  # (B, S, 32) f32
        # static lane-offset write into the per-layer attention scratch
        attn_scr[:, hh * HEAD_DIM:(hh + 1) * HEAD_DIM] = oh.reshape(
            batch * seqlen, HEAD_DIM)

    attn = attn_scr[...].astype(jnp.bfloat16)                # (BS, 128)
    h = h + jnp.dot(attn, wo_ref[...], preferred_element_type=jnp.float32)

    # ---- FFN RMSNorm + SwiGLU (fused w1|w3 matmul, bf16 operands) ----
    hn = h * jax.lax.rsqrt(jnp.mean(h * h, axis=-1, keepdims=True) + eps)
    hn = (hn * fn_ref[...]).astype(jnp.bfloat16)
    h13 = jnp.dot(hn, w13_ref[...], preferred_element_type=jnp.float32)  # (BS, 2H)
    h1 = h13[:, :HIDDEN]
    h3 = h13[:, HIDDEN:]
    gated = (h1 * jax.nn.sigmoid(h1) * h3).astype(jnp.bfloat16)
    h_ref[...] = h + jnp.dot(gated, w2_ref[...], preferred_element_type=jnp.float32)


def fused_layers(params, cache, x_flat, cos, sin, start_pos, batch, seqlen):
    """x_flat: (B*S, D) f32.  Returns (h (B*S,D) f32, new stacked KV cache)."""
    bs = batch * seqlen
    kernel = partial(_layers_kernel, batch=batch, seqlen=seqlen,
                     eps=NORM_EPS, scale=1.0 / math.sqrt(HEAD_DIM))
    grid_spec = pltpu.PrefetchScalarGridSpec(
        num_scalar_prefetch=1,                 # start_pos -> SMEM scalar
        grid=(N_LAYERS,),
        in_specs=[
            pl.BlockSpec((bs, DIM), lambda l, sp: (0, 0)),                     # x
            pl.BlockSpec((None, MAX_BATCH, MAX_SEQ, 2 * KV_DIM),
                         lambda l, sp: (l, 0, 0, 0)),                          # kv cache in
            pl.BlockSpec((None, 1, DIM), lambda l, sp: (l, 0, 0)),             # attn norm
            pl.BlockSpec((None, 1, DIM), lambda l, sp: (l, 0, 0)),             # ffn norm
            pl.BlockSpec((None, DIM, 2 * QKV_DIM), lambda l, sp: (l, 0, 0)),   # wqkv|wqkv_rot
            pl.BlockSpec((None, Q_DIM, DIM), lambda l, sp: (l, 0, 0)),         # wo
            pl.BlockSpec((None, DIM, 2 * HIDDEN), lambda l, sp: (l, 0, 0)),    # w1|w3
            pl.BlockSpec((None, HIDDEN, DIM), lambda l, sp: (l, 0, 0)),        # w2
            pl.BlockSpec((bs, QKV_DIM), lambda l, sp: (0, 0)),                 # rope cos
            pl.BlockSpec((bs, QKV_DIM), lambda l, sp: (0, 0)),                 # rope sin
        ],
        out_specs=(
            pl.BlockSpec((bs, DIM), lambda l, sp: (0, 0)),                     # resident h
            pl.BlockSpec((None, MAX_BATCH, MAX_SEQ, 2 * KV_DIM),
                         lambda l, sp: (l, 0, 0, 0)),                          # kv cache out
        ),
        scratch_shapes=[pltpu.VMEM((bs, Q_DIM), jnp.float32)],                 # attn heads
    )
    h_out, new_cache = pl.pallas_call(
        kernel,
        out_shape=(jax.ShapeDtypeStruct((bs, DIM), jnp.float32),
                   jax.ShapeDtypeStruct(cache.shape, cache.dtype)),
        grid_spec=grid_spec,
        compiler_params=pltpu.CompilerParams(dimension_semantics=("arbitrary",)),
    )(start_pos, x_flat, cache, params["attn_norm"], params["ffn_norm"],
      params["wqkv2"], params["wo"], params["w13"], params["w2"], cos, sin)
    return h_out, new_cache


# ----------------------------- final norm + output projection ---------------
def _head_kernel(x_ref, nw_ref, wout_ref, o_ref, *, eps):
    x = x_ref[...]                                     # (BS, D) f32
    xn = x * jax.lax.rsqrt(jnp.mean(x * x, axis=-1, keepdims=True) + eps)
    xn = (xn * nw_ref[...]).astype(jnp.bfloat16)
    o_ref[...] = jnp.dot(xn, wout_ref[...], preferred_element_type=jnp.float32)


def final_norm_head(x_flat, norm_w, w_out):
    bs, d = x_flat.shape
    v = w_out.shape[1]
    return pl.pallas_call(
        partial(_head_kernel, eps=NORM_EPS),
        out_shape=jax.ShapeDtypeStruct((bs, v), jnp.float32),
        grid=(1,),
        in_specs=[pl.BlockSpec((bs, d), lambda i: (0, 0)),
                  pl.BlockSpec((1, d), lambda i: (0, 0)),
                  pl.BlockSpec((d, v), lambda i: (0, 0))],
        out_specs=pl.BlockSpec((bs, v), lambda i: (0, 0)),
    )(x_flat, norm_w.reshape(1, d), w_out)


# ----------------------------- RoPE tables ----------------------------------
def _build_rope_tables(head_dim, end, theta=10000.0):
    freqs = 1.0 / theta ** (jnp.arange(0, head_dim, 2)[: head_dim // 2].astype(jnp.float32) / head_dim)
    t = jnp.arange(end, dtype=jnp.float32)
    ang = jnp.outer(t, freqs)                       # (end, hd//2)
    cos = jnp.repeat(jnp.cos(ang), 2, axis=-1)      # [c0,c0,c1,c1,...]
    sin = jnp.repeat(jnp.sin(ang), 2, axis=-1)
    sign = jnp.tile(jnp.array([-1.0, 1.0], jnp.float32), head_dim // 2)
    sin = sin * sign                                # [-s0,+s0,-s1,+s1,...]
    ones = jnp.ones((end, KV_DIM), jnp.float32)     # V columns: pass-through
    zeros = jnp.zeros((end, KV_DIM), jnp.float32)
    cos_all = jnp.concatenate([jnp.tile(cos, (1, N_HEADS)),
                               jnp.tile(cos, (1, N_KV_HEADS)), ones], axis=-1)
    sin_all = jnp.concatenate([jnp.tile(sin, (1, N_HEADS)),
                               jnp.tile(sin, (1, N_KV_HEADS)), zeros], axis=-1)
    return cos_all, sin_all                         # each (end, QKV_DIM)


# ----------------------------- forward pass ----------------------------------
@jax.jit
def transformer_forward(params, cache, tokens, start_pos):
    """tokens: (B, S) int32; start_pos: (1,) int32 (dynamic -> no decode recompiles)."""
    B, S = tokens.shape
    h = params["tok_embeddings"][tokens].reshape(B * S, DIM)     # gather in plain JAX
    sp = start_pos[0]
    cos = jax.lax.dynamic_slice(params["rope_cos"], (sp, 0), (S, QKV_DIM))
    sin = jax.lax.dynamic_slice(params["rope_sin"], (sp, 0), (S, QKV_DIM))
    cos = jnp.tile(cos, (B, 1))                                  # (B*S, QKV_DIM)
    sin = jnp.tile(sin, (B, 1))
    h, new_cache = fused_layers(params, cache, h, cos, sin, start_pos, B, S)
    logits = final_norm_head(h, params["norm"], params["output"])
    return logits.reshape(B, S, VOCAB), new_cache


# ----------------------------- deterministic init ----------------------------
def init_params(key):
    scale = 0.02
    keys = jax.random.split(key, 2 + N_LAYERS)
    cos_tab, sin_tab = _build_rope_tables(HEAD_DIM, MAX_SEQ * 2)
    swap = jnp.arange(QKV_DIM) ^ 1                  # RoPE pair-swap column permutation
    wqkv2_l, wo_l, w13_l, w2_l = [], [], [], []
    for l in range(N_LAYERS):
        lk = jax.random.split(keys[2 + l], 7)
        wq = jax.random.normal(lk[0], (DIM, Q_DIM), jnp.float32) * scale
        wk = jax.random.normal(lk[1], (DIM, KV_DIM), jnp.float32) * scale
        wv = jax.random.normal(lk[2], (DIM, KV_DIM), jnp.float32) * scale
        wo = jax.random.normal(lk[3], (Q_DIM, DIM), jnp.float32) * scale
        w1 = jax.random.normal(lk[4], (DIM, HIDDEN), jnp.float32) * scale
        w3 = jax.random.normal(lk[5], (DIM, HIDDEN), jnp.float32) * scale
        w2 = jax.random.normal(lk[6], (HIDDEN, DIM), jnp.float32) * scale
        wqkv = jnp.concatenate([wq, wk, wv], axis=1)
        # Fold the RoPE pair-swap into the weights: [wqkv | wqkv with swapped cols].
        wqkv2_l.append(jnp.concatenate([wqkv, wqkv[:, swap]], axis=1).astype(jnp.bfloat16))
        wo_l.append(wo.astype(jnp.bfloat16))
        w13_l.append(jnp.concatenate([w1, w3], axis=1).astype(jnp.bfloat16))
        w2_l.append(w2.astype(jnp.bfloat16))
    return {
        "tok_embeddings": jax.random.normal(keys[0], (VOCAB, DIM), jnp.float32) * scale,
        "output": (jax.random.normal(keys[1], (DIM, VOCAB), jnp.float32) * scale).astype(jnp.bfloat16),
        "norm": jnp.ones((DIM,), jnp.float32),
        "rope_cos": cos_tab, "rope_sin": sin_tab,
        "attn_norm": jnp.ones((N_LAYERS, 1, DIM), jnp.float32),
        "ffn_norm": jnp.ones((N_LAYERS, 1, DIM), jnp.float32),
        "wqkv2": jnp.stack(wqkv2_l),               # (L, D, 512) bf16
        "wo": jnp.stack(wo_l),                      # (L, 128, 128) bf16
        "w13": jnp.stack(w13_l),                    # (L, 128, 768) bf16
        "w2": jnp.stack(w2_l),                      # (L, 384, 128) bf16
    }


def init_cache():
    # Stacked per-layer KV cache: (L, MAX_BATCH, MAX_SEQ, K|V packed lane-dense).
    return jnp.zeros((N_LAYERS, MAX_BATCH, MAX_SEQ, 2 * KV_DIM), jnp.float32)


# ----------------------------- main ------------------------------------------
if __name__ == "__main__":
    key = jax.random.PRNGKey(0)
    pkey, tkey = jax.random.split(key)
    params = init_params(pkey)
    cache = init_cache()

    batch, seqlen = 2, 8
    tokens = jax.random.randint(tkey, (batch, seqlen), 0, VOCAB, dtype=jnp.int32)
    start_pos = jnp.zeros((1,), jnp.int32)          # dynamic; decode steps reuse compile

    logits, cache = transformer_forward(params, cache, tokens, start_pos)
    logits = jax.block_until_ready(logits)

    assert logits.shape == (batch, seqlen, VOCAB)
    assert logits.dtype == jnp.float32
    assert bool(jnp.all(jnp.isfinite(logits)))
    print("KERNEL_OK")
</pallas_src>

<mosaic_0001>
module attributes {stable_mosaic.version = 11 : i64} {
  func.func @_head_kernel(%arg0: i32, %arg1: memref<16x128xf32, #tpu.memory_space<vmem>>, %arg2: memref<1x128xf32, #tpu.memory_space<vmem>>, %arg3: memref<128x256xbf16, #tpu.memory_space<vmem>>, %arg4: memref<16x256xf32, #tpu.memory_space<vmem>>) attributes {dimension_semantics = [#tpu.dimension_semantics<arbitrary>], iteration_bounds = array<i64: 1>, scalar_prefetch = 0 : i64, scratch_operands = 0 : i64, tpu.core_type = #tpu.core_type<tc>, window_params = [{pipeline_mode = #tpu.pipeline_mode<synchronous>, transform_indices = @transform_0, window_bounds = array<i64: 16, 128>}, {pipeline_mode = #tpu.pipeline_mode<synchronous>, transform_indices = @transform_1, window_bounds = array<i64: 1, 128>}, {pipeline_mode = #tpu.pipeline_mode<synchronous>, transform_indices = @transform_2, window_bounds = array<i64: 128, 256>}, {pipeline_mode = #tpu.pipeline_mode<synchronous>, transform_indices = @transform_3, window_bounds = array<i64: 16, 256>}]} {
    %c0 = arith.constant 0 : index
    %c0_0 = arith.constant 0 : index
    %0 = vector.load %arg1[%c0, %c0_0] : memref<16x128xf32, #tpu.memory_space<vmem>>, vector<16x128xf32>
    %1 = arith.mulf %0, %0 : vector<16x128xf32>
    %cst = arith.constant dense<0.000000e+00> : vector<16xf32>
    %2 = vector.multi_reduction <add>, %1, %cst [1] : vector<16x128xf32> to vector<16xf32>
    %3 = vector.shape_cast %2 : vector<16xf32> to vector<16x1xf32>
    %cst_1 = arith.constant 1.280000e+02 : f32
    %4 = vector.broadcast %cst_1 : f32 to vector<16x1xf32>
    %5 = arith.divf %3, %4 : vector<16x1xf32>
    %cst_2 = arith.constant 9.99999974E-6 : f32
    %6 = vector.broadcast %cst_2 : f32 to vector<16x1xf32>
    %7 = arith.addf %5, %6 : vector<16x1xf32>
    %8 = math.rsqrt %7 : vector<16x1xf32>
    %9 = vector.broadcast %8 : vector<16x1xf32> to vector<16x128xf32>
    %10 = arith.mulf %0, %9 : vector<16x128xf32>
    %c0_3 = arith.constant 0 : index
    %c0_4 = arith.constant 0 : index
    %11 = vector.load %arg2[%c0_3, %c0_4] : memref<1x128xf32, #tpu.memory_space<vmem>>, vector<1x128xf32>
    %12 = vector.broadcast %11 : vector<1x128xf32> to vector<16x128xf32>
    %13 = arith.mulf %10, %12 : vector<16x128xf32>
    %14 = arith.truncf %13 : vector<16x128xf32> to vector<16x128xbf16>
    %c0_5 = arith.constant 0 : index
    %c0_6 = arith.constant 0 : index
    %15 = vector.load %arg3[%c0_5, %c0_6] : memref<128x256xbf16, #tpu.memory_space<vmem>>, vector<128x256xbf16>
    %cst_7 = arith.constant dense<0.000000e+00> : vector<16x256xf32>
    %16 = tpu.matmul %14, %15, %cst_7 {dimension_numbers = #tpu.dot_dimension_numbers<[1], [0], [0], [1], [0, 0, 1, 1], [], []>} : vector<16x128xbf16>, vector<128x256xbf16>, vector<16x256xf32> -> vector<16x256xf32>
    %c0_8 = arith.constant 0 : index
    %c0_9 = arith.constant 0 : index
    %17 = vector.load %arg4[%c0_8, %c0_9] : memref<16x256xf32, #tpu.memory_space<vmem>>, vector<16x256xf32>
    tpu.vector_store %arg4[%c0_8, %c0_9], %16 {strides = array<i32>} : memref<16x256xf32, #tpu.memory_space<vmem>>, vector<16x256xf32>,
    return
  }
  func.func @transform_0(%arg0: i32) -> (i32, i32) {
    %c0_i32 = arith.constant 0 : i32
    %c0_i32_0 = arith.constant 0 : i32
    %c0_i32_1 = arith.constant 0 : i32
    return %c0_i32, %c0_i32_0 : i32, i32
  }
  func.func @transform_1(%arg0: i32) -> (i32, i32) {
    %c0_i32 = arith.constant 0 : i32
    %c0_i32_0 = arith.constant 0 : i32
    %c0_i32_1 = arith.constant 0 : i32
    return %c0_i32, %c0_i32_0 : i32, i32
  }
  func.func @transform_2(%arg0: i32) -> (i32, i32) {
    %c0_i32 = arith.constant 0 : i32
    %c0_i32_0 = arith.constant 0 : i32
    %c0_i32_1 = arith.constant 0 : i32
    return %c0_i32, %c0_i32_0 : i32, i32
  }
  func.func @transform_3(%arg0: i32) -> (i32, i32) {
    %c0_i32 = arith.constant 0 : i32
    %c0_i32_0 = arith.constant 0 : i32
    %c0_i32_1 = arith.constant 0 : i32
    return %c0_i32, %c0_i32_0 : i32, i32
  }
}

module attributes {stable_mosaic.version = 11 : i64} {
  func.func @_layers_kernel(%arg0: i32, %arg1: memref<1xi32, #tpu.memory_space<smem>>, %arg2: memref<16x128xf32, #tpu.memory_space<vmem>>, %arg3: memref<1x4x16x128xf32, #tpu.memory_space<vmem>>, %arg4: memref<1x1x128xf32, #tpu.memory_space<vmem>>, %arg5: memref<1x1x128xf32, #tpu.memory_space<vmem>>, %arg6: memref<1x128x512xbf16, #tpu.memory_space<vmem>>, %arg7: memref<1x128x128xbf16, #tpu.memory_space<vmem>>, %arg8: memref<1x128x768xbf16, #tpu.memory_space<vmem>>, %arg9: memref<1x384x128xbf16, #tpu.memory_space<vmem>>, %arg10: memref<16x256xf32, #tpu.memory_space<vmem>>, %arg11: memref<16x256xf32, #tpu.memory_space<vmem>>, %arg12: memref<16x128xf32, #tpu.memory_space<vmem>>, %arg13: memref<1x4x16x128xf32, #tpu.memory_space<vmem>>, %arg14: memref<16x128xf32, #tpu.memory_space<vmem>>) attributes {dimension_semantics = [#tpu.dimension_semantics<arbitrary>], iteration_bounds = array<i64: 2>, scalar_prefetch = 1 : i64, scratch_operands = 1 : i64, tpu.core_type = #tpu.core_type<tc>, window_params = [{pipeline_mode = #tpu.pipeline_mode<synchronous>, transform_indices = @transform_0, window_bounds = array<i64: 16, 128>}, {transform_indices = @transform_1, window_bounds = array<i64: 1, 4, 16, 128>}, {transform_indices = @transform_2, window_bounds = array<i64: 1, 1, 128>}, {transform_indices = @transform_3, window_bounds = array<i64: 1, 1, 128>}, {transform_indices = @transform_4, window_bounds = array<i64: 1, 128, 512>}, {transform_indices = @transform_5, window_bounds = array<i64: 1, 128, 128>}, {transform_indices = @transform_6, window_bounds = array<i64: 1, 128, 768>}, {transform_indices = @transform_7, window_bounds = array<i64: 1, 384, 128>}, {pipeline_mode = #tpu.pipeline_mode<synchronous>, transform_indices = @transform_8, window_bounds = array<i64: 16, 256>}, {pipeline_mode = #tpu.pipeline_mode<synchronous>, transform_indices = @transform_9, window_bounds = array<i64: 16, 256>}, {pipeline_mode = #tpu.pipeline_mode<synchronous>, transform_indices = @transform_10, window_bounds = array<i64: 16, 128>}, {transform_indices = @transform_11, window_bounds = array<i64: 1, 4, 16, 128>}]} {
    %c0 = arith.constant 0 : index
    %0 = memref.load %arg1[%c0] : memref<1xi32, #tpu.memory_space<smem>>
    %c0_i32 = arith.constant 0 : i32
    %1 = arith.cmpi eq, %arg0, %c0_i32 : i32
    %2 = arith.extui %1 : i1 to i32
    %c0_i32_0 = arith.constant 0 : i32
    %3 = arith.cmpi ne, %2, %c0_i32_0 : i32
    scf.if %3 {
      %c0_83 = arith.constant 0 : index
      %c0_84 = arith.constant 0 : index
      %194 = vector.load %arg2[%c0_83, %c0_84] : memref<16x128xf32, #tpu.memory_space<vmem>>, vector<16x128xf32>
      %c0_85 = arith.constant 0 : index
      %c0_86 = arith.constant 0 : index
      %195 = vector.load %arg12[%c0_85, %c0_86] : memref<16x128xf32, #tpu.memory_space<vmem>>, vector<16x128xf32>
      tpu.vector_store %arg12[%c0_85, %c0_86], %194 {strides = array<i32>} : memref<16x128xf32, #tpu.memory_space<vmem>>, vector<16x128xf32>,
    } else {
    }
    %c0_1 = arith.constant 0 : index
    %c0_2 = arith.constant 0 : index
    %4 = vector.load %arg12[%c0_1, %c0_2] : memref<16x128xf32, #tpu.memory_space<vmem>>, vector<16x128xf32>
    %5 = arith.mulf %4, %4 : vector<16x128xf32>
    %cst = arith.constant dense<0.000000e+00> : vector<16xf32>
    %6 = vector.multi_reduction <add>, %5, %cst [1] : vector<16x128xf32> to vector<16xf32>
    %7 = vector.shape_cast %6 : vector<16xf32> to vector<16x1xf32>
    %cst_3 = arith.constant 1.280000e+02 : f32
    %8 = vector.broadcast %cst_3 : f32 to vector<16x1xf32>
    %9 = arith.divf %7, %8 : vector<16x1xf32>
    %cst_4 = arith.constant 9.99999974E-6 : f32
    %10 = vector.broadcast %cst_4 : f32 to vector<16x1xf32>
    %11 = arith.addf %9, %10 : vector<16x1xf32>
    %12 = math.rsqrt %11 : vector<16x1xf32>
    %13 = vector.broadcast %12 : vector<16x1xf32> to vector<16x128xf32>
    %14 = arith.mulf %4, %13 : vector<16x128xf32>
    %c0_5 = arith.constant 0 : index
    %c0_6 = arith.constant 0 : index
    %c0_7 = arith.constant 0 : index
    %15 = vector.load %arg4[%c0_5, %c0_6, %c0_7] : memref<1x1x128xf32, #tpu.memory_space<vmem>>, vector<1x1x128xf32>
    %16 = vector.shape_cast %15 : vector<1x1x128xf32> to vector<1x128xf32>
    %17 = vector.broadcast %16 : vector<1x128xf32> to vector<16x128xf32>
    %18 = arith.mulf %14, %17 : vector<16x128xf32>
    %19 = arith.truncf %18 : vector<16x128xf32> to vector<16x128xbf16>
    %c0_8 = arith.constant 0 : index
    %c0_9 = arith.constant 0 : index
    %c0_10 = arith.constant 0 : index
    %20 = vector.load %arg6[%c0_8, %c0_9, %c0_10] : memref<1x128x512xbf16, #tpu.memory_space<vmem>>, vector<1x128x512xbf16>
    %21 = vector.shape_cast %20 : vector<1x128x512xbf16> to vector<128x512xbf16>
    %cst_11 = arith.constant dense<0.000000e+00> : vector<16x512xf32>
    %22 = tpu.matmul %19, %21, %cst_11 {dimension_numbers = #tpu.dot_dimension_numbers<[1], [0], [0], [1], [0, 0, 1, 1], [], []>} : vector<16x128xbf16>, vector<128x512xbf16>, vector<16x512xf32> -> vector<16x512xf32>
    %23 = vector.extract_strided_slice %22 {offsets = [0, 0], sizes = [16, 256], strides = [1, 1]} : vector<16x512xf32> to vector<16x256xf32>
    %c0_12 = arith.constant 0 : index
    %c0_13 = arith.constant 0 : index
    %24 = vector.load %arg10[%c0_12, %c0_13] : memref<16x256xf32, #tpu.memory_space<vmem>>, vector<16x256xf32>
    %25 = arith.mulf %23, %24 : vector<16x256xf32>
    %26 = vector.extract_strided_slice %22 {offsets = [0, 256], sizes = [16, 256], strides = [1, 1]} : vector<16x512xf32> to vector<16x256xf32>
    %c0_14 = arith.constant 0 : index
    %c0_15 = arith.constant 0 : index
    %27 = vector.load %arg11[%c0_14, %c0_15] : memref<16x256xf32, #tpu.memory_space<vmem>>, vector<16x256xf32>
    %28 = arith.mulf %26, %27 : vector<16x256xf32>
    %29 = arith.addf %25, %28 : vector<16x256xf32>
    %30 = vector.extract_strided_slice %29 {offsets = [0, 0], sizes = [16, 128], strides = [1, 1]} : vector<16x256xf32> to vector<16x128xf32>
    %31 = vector.extract_strided_slice %29 {offsets = [0, 128], sizes = [16, 128], strides = [1, 1]} : vector<16x256xf32> to vector<16x128xf32>
    %c0_16 = arith.constant 0 : index
    %c0_17 = arith.constant 0 : index
    %c0_18 = arith.constant 0 : index
    %c0_19 = arith.constant 0 : index
    %32 = vector.load %arg3[%c0_16, %c0_17, %c0_18, %c0_19] : memref<1x4x16x128xf32, #tpu.memory_space<vmem>>, vector<1x4x16x128xf32>
    %33 = vector.shape_cast %32 : vector<1x4x16x128xf32> to vector<4x16x128xf32>
    %c0_20 = arith.constant 0 : index
    %c0_21 = arith.constant 0 : index
    %c0_22 = arith.constant 0 : index
    %c0_23 = arith.constant 0 : index
    %34 = vector.load %arg13[%c0_20, %c0_21, %c0_22, %c0_23] : memref<1x4x16x128xf32, #tpu.memory_space<vmem>>, vector<1x4x16x128xf32>
    %35 = vector.shape_cast %34 : vector<1x4x16x128xf32> to vector<4x16x128xf32>
    %36 = vector.shape_cast %33 : vector<4x16x128xf32> to vector<1x4x16x128xf32>
    tpu.vector_store %arg13[%c0_20, %c0_21, %c0_22, %c0_23], %36 {strides = array<i32>} : memref<1x4x16x128xf32, #tpu.memory_space<vmem>>, vector<1x4x16x128xf32>,
    %37 = vector.extract_strided_slice %31 {offsets = [0, 0], sizes = [8, 128], strides = [1, 1]} : vector<16x128xf32> to vector<8x128xf32>
    %c0_24 = arith.constant 0 : index
    %c0_25 = arith.constant 0 : index
    %38 = arith.index_cast %0 : i32 to index
    %c0_26 = arith.constant 0 : index
    %39 = vector.load %arg13[%c0_24, %c0_25, %38, %c0_26] : memref<1x4x16x128xf32, #tpu.memory_space<vmem>>, vector<1x1x8x128xf32>
    %40 = vector.shape_cast %39 : vector<1x1x8x128xf32> to vector<8x128xf32>
    %41 = vector.shape_cast %37 : vector<8x128xf32> to vector<1x1x8x128xf32>
    tpu.vector_store %arg13[%c0_24, %c0_25, %38, %c0_26], %41 {strides = array<i32>} : memref<1x4x16x128xf32, #tpu.memory_space<vmem>>, vector<1x1x8x128xf32>,
    %42 = vector.extract_strided_slice %31 {offsets = [8, 0], sizes = [8, 128], strides = [1, 1]} : vector<16x128xf32> to vector<8x128xf32>
    %c0_27 = arith.constant 0 : index
    %c1 = arith.constant 1 : index
    %43 = arith.index_cast %0 : i32 to index
    %c0_28 = arith.constant 0 : index
    %44 = vector.load %arg13[%c0_27, %c1, %43, %c0_28] : memref<1x4x16x128xf32, #tpu.memory_space<vmem>>, vector<1x1x8x128xf32>
    %45 = vector.shape_cast %44 : vector<1x1x8x128xf32> to vector<8x128xf32>
    %46 = vector.shape_cast %42 : vector<8x128xf32> to vector<1x1x8x128xf32>
    tpu.vector_store %arg13[%c0_27, %c1, %43, %c0_28], %46 {strides = array<i32>} : memref<1x4x16x128xf32, #tpu.memory_space<vmem>>, vector<1x1x8x128xf32>,
    %c0_29 = arith.constant 0 : index
    %c0_30 = arith.constant 0 : index
    %c0_31 = arith.constant 0 : index
    %c0_32 = arith.constant 0 : index
    %47 = vector.load %arg13[%c0_29, %c0_30, %c0_31, %c0_32] : memref<1x4x16x128xf32, #tpu.memory_space<vmem>>, vector<1x4x16x128xf32>
    %48 = vector.shape_cast %47 : vector<1x4x16x128xf32> to vector<4x16x128xf32>
    %49 = vector.extract_strided_slice %48 {offsets = [0, 0, 0], sizes = [2, 16, 64], strides = [1, 1, 1]} : vector<4x16x128xf32> to vector<2x16x64xf32>
    %50 = arith.truncf %49 : vector<2x16x64xf32> to vector<2x16x64xbf16>
    %51 = vector.extract_strided_slice %48 {offsets = [0, 0, 64], sizes = [2, 16, 64], strides = [1, 1, 1]} : vector<4x16x128xf32> to vector<2x16x64xf32>
    %52 = arith.truncf %51 : vector<2x16x64xf32> to vector<2x16x64xbf16>
    %53 = tpu.iota {dimensions = array<i32: 0>} : vector<8x16xi32>
    %54 = tpu.iota {dimensions = array<i32: 1>} : vector<8x16xi32>
    %55 = vector.broadcast %0 : i32 to vector<8x16xi32>
    %56 = arith.addi %53, %55 : vector<8x16xi32>
    %57 = arith.cmpi sle, %54, %56 : vector<8x16xi32>
    %cst_33 = arith.constant 0.000000e+00 : f32
    %cst_34 = arith.constant -1.000000e+30 : f32
    %58 = vector.broadcast %cst_33 : f32 to vector<8x16xf32>
    %59 = vector.broadcast %cst_34 : f32 to vector<8x16xf32>
    %60 = arith.select %57, %58, %59 : vector<8x16xi1>, vector<8x16xf32>
    %61 = vector.shape_cast %30 : vector<16x128xf32> to vector<2x8x128xf32>
    %62 = arith.truncf %61 : vector<2x8x128xf32> to vector<2x8x128xbf16>
    %63 = vector.extract_strided_slice %62 {offsets = [0, 0, 0], sizes = [2, 8, 32], strides = [1, 1, 1]} : vector<2x8x128xbf16> to vector<2x8x32xbf16>
    %64 = vector.extract_strided_slice %50 {offsets = [0, 0, 0], sizes = [2, 16, 32], strides = [1, 1, 1]} : vector<2x16x64xbf16> to vector<2x16x32xbf16>
    %65 = vector.extract_strided_slice %52 {offsets = [0, 0, 0], sizes = [2, 16, 32], strides = [1, 1, 1]} : vector<2x16x64xbf16> to vector<2x16x32xbf16>
    "tpu.trace_start"() <{level = 10 : i32, message = "bqd,bkd->bqk"}> : () -> ()
    %cst_35 = arith.constant dense<0.000000e+00> : vector<2x8x16xf32>
    %66 = tpu.matmul %63, %64, %cst_35 {dimension_numbers = #tpu.dot_dimension_numbers<[2], [2], [1], [1], [0, 0, 0, 1, 1, 1], [0], [0]>} : vector<2x8x32xbf16>, vector<2x16x32xbf16>, vector<2x8x16xf32> -> vector<2x8x16xf32>
    "tpu.trace_stop"() : () -> ()
    %cst_36 = arith.constant 0.176776692 : f32
    %67 = vector.broadcast %cst_36 : f32 to vector<2x8x16xf32>
    %68 = arith.mulf %66, %67 : vector<2x8x16xf32>
    %69 = vector.shape_cast %60 : vector<8x16xf32> to vector<1x8x16xf32>
    %70 = vector.broadcast %69 : vector<1x8x16xf32> to vector<2x8x16xf32>
    %71 = arith.addf %68, %70 : vector<2x8x16xf32>
    %cst_37 = arith.constant dense<0xFF800000> : vector<2x8xf32>
    %72 = vector.multi_reduction <maximumf>, %71, %cst_37 [2] : vector<2x8x16xf32> to vector<2x8xf32>
    %73 = vector.shape_cast %72 : vector<2x8xf32> to vector<2x8x1xf32>
    %74 = vector.broadcast %73 : vector<2x8x1xf32> to vector<2x8x16xf32>
    %75 = arith.subf %71, %74 : vector<2x8x16xf32>
    %76 = math.exp %75 : vector<2x8x16xf32>
    %cst_38 = arith.constant dense<0.000000e+00> : vector<2x8xf32>
    %77 = vector.multi_reduction <add>, %76, %cst_38 [2] : vector<2x8x16xf32> to vector<2x8xf32>
    %78 = vector.shape_cast %77 : vector<2x8xf32> to vector<2x8x1xf32>
    %79 = tpu.reciprocal %78 {approx = true} : vector<2x8x1xf32> -> vector<2x8x1xf32>
    %80 = vector.broadcast %79 : vector<2x8x1xf32> to vector<2x8x16xf32>
    %81 = arith.mulf %76, %80 : vector<2x8x16xf32>
    %82 = arith.truncf %81 : vector<2x8x16xf32> to vector<2x8x16xbf16>
    "tpu.trace_start"() <{level = 10 : i32, message = "bqk,bkd->bqd"}> : () -> ()
    %cst_39 = arith.constant dense<0.000000e+00> : vector<2x8x32xf32>
    %83 = tpu.matmul %82, %65, %cst_39 {dimension_numbers = #tpu.dot_dimension_numbers<[2], [1], [1], [2], [0, 0, 0, 1, 1, 2], [0], [0]>} : vector<2x8x16xbf16>, vector<2x16x32xbf16>, vector<2x8x32xf32> -> vector<2x8x32xf32>
    "tpu.trace_stop"() : () -> ()
    %84 = vector.shape_cast %83 : vector<2x8x32xf32> to vector<16x32xf32>
    %c0_40 = arith.constant 0 : index
    %c0_41 = arith.constant 0 : index
    %85 = vector.load %arg14[%c0_40, %c0_41] : memref<16x128xf32, #tpu.memory_space<vmem>>, vector<16x32xf32>
    tpu.vector_store %arg14[%c0_40, %c0_41], %84 {strides = array<i32>} : memref<16x128xf32, #tpu.memory_space<vmem>>, vector<16x32xf32>,
    %86 = vector.extract_strided_slice %62 {offsets = [0, 0, 32], sizes = [2, 8, 32], strides = [1, 1, 1]} : vector<2x8x128xbf16> to vector<2x8x32xbf16>
    %87 = vector.extract_strided_slice %50 {offsets = [0, 0, 0], sizes = [2, 16, 32], strides = [1, 1, 1]} : vector<2x16x64xbf16> to vector<2x16x32xbf16>
    %88 = vector.extract_strided_slice %52 {offsets = [0, 0, 0], sizes = [2, 16, 32], strides = [1, 1, 1]} : vector<2x16x64xbf16> to vector<2x16x32xbf16>
    "tpu.trace_start"() <{level = 10 : i32, message = "bqd,bkd->bqk"}> : () -> ()
    %cst_42 = arith.constant dense<0.000000e+00> : vector<2x8x16xf32>
    %89 = tpu.matmul %86, %87, %cst_42 {dimension_numbers = #tpu.dot_dimension_numbers<[2], [2], [1], [1], [0, 0, 0, 1, 1, 1], [0], [0]>} : vector<2x8x32xbf16>, vector<2x16x32xbf16>, vector<2x8x16xf32> -> vector<2x8x16xf32>
    "tpu.trace_stop"() : () -> ()
    %cst_43 = arith.constant 0.176776692 : f32
    %90 = vector.broadcast %cst_43 : f32 to vector<2x8x16xf32>
    %91 = arith.mulf %89, %90 : vector<2x8x16xf32>
    %92 = vector.shape_cast %60 : vector<8x16xf32> to vector<1x8x16xf32>
    %93 = vector.broadcast %92 : vector<1x8x16xf32> to vector<2x8x16xf32>
    %94 = arith.addf %91, %93 : vector<2x8x16xf32>
    %cst_44 = arith.constant dense<0xFF800000> : vector<2x8xf32>
    %95 = vector.multi_reduction <maximumf>, %94, %cst_44 [2] : vector<2x8x16xf32> to vector<2x8xf32>
    %96 = vector.shape_cast %95 : vector<2x8xf32> to vector<2x8x1xf32>
    %97 = vector.broadcast %96 : vector<2x8x1xf32> to vector<2x8x16xf32>
    %98 = arith.subf %94, %97 : vector<2x8x16xf32>
    %99 = math.exp %98 : vector<2x8x16xf32>
    %cst_45 = arith.constant dense<0.000000e+00> : vector<2x8xf32>
    %100 = vector.multi_reduction <add>, %99, %cst_45 [2] : vector<2x8x16xf32> to vector<2x8xf32>
    %101 = vector.shape_cast %100 : vector<2x8xf32> to vector<2x8x1xf32>
    %102 = tpu.reciprocal %101 {approx = true} : vector<2x8x1xf32> -> vector<2x8x1xf32>
    %103 = vector.broadcast %102 : vector<2x8x1xf32> to vector<2x8x16xf32>
    %104 = arith.mulf %99, %103 : vector<2x8x16xf32>
    %105 = arith.truncf %104 : vector<2x8x16xf32> to vector<2x8x16xbf16>
    "tpu.trace_start"() <{level = 10 : i32, message = "bqk,bkd->bqd"}> : () -> ()
    %cst_46 = arith.constant dense<0.000000e+00> : vector<2x8x32xf32>
    %106 = tpu.matmul %105, %88, %cst_46 {dimension_numbers = #tpu.dot_dimension_numbers<[2], [1], [1], [2], [0, 0, 0, 1, 1, 2], [0], [0]>} : vector<2x8x16xbf16>, vector<2x16x32xbf16>, vector<2x8x32xf32> -> vector<2x8x32xf32>
    "tpu.trace_stop"() : () -> ()
    %107 = vector.shape_cast %106 : vector<2x8x32xf32> to vector<16x32xf32>
    %c0_47 = arith.constant 0 : index
    %c32 = arith.constant 32 : index
    %108 = vector.load %arg14[%c0_47, %c32] : memref<16x128xf32, #tpu.memory_space<vmem>>, vector<16x32xf32>
    tpu.vector_store %arg14[%c0_47, %c32], %107 {strides = array<i32>} : memref<16x128xf32, #tpu.memory_space<vmem>>, vector<16x32xf32>,
    %109 = vector.extract_strided_slice %62 {offsets = [0, 0, 64], sizes = [2, 8, 32], strides = [1, 1, 1]} : vector<2x8x128xbf16> to vector<2x8x32xbf16>
    %110 = vector.extract_strided_slice %50 {offsets = [0, 0, 32], sizes = [2, 16, 32], strides = [1, 1, 1]} : vector<2x16x64xbf16> to vector<2x16x32xbf16>
    %111 = vector.extract_strided_slice %52 {offsets = [0, 0, 32], sizes = [2, 16, 32], strides = [1, 1, 1]} : vector<2x16x64xbf16> to vector<2x16x32xbf16>
    "tpu.trace_start"() <{level = 10 : i32, message = "bqd,bkd->bqk"}> : () -> ()
    %cst_48 = arith.constant dense<0.000000e+00> : vector<2x8x16xf32>
    %112 = tpu.matmul %109, %110, %cst_48 {dimension_numbers = #tpu.dot_dimension_numbers<[2], [2], [1], [1], [0, 0, 0, 1, 1, 1], [0], [0]>} : vector<2x8x32xbf16>, vector<2x16x32xbf16>, vector<2x8x16xf32> -> vector<2x8x16xf32>
    "tpu.trace_stop"() : () -> ()
    %cst_49 = arith.constant 0.176776692 : f32
    %113 = vector.broadcast %cst_49 : f32 to vector<2x8x16xf32>
    %114 = arith.mulf %112, %113 : vector<2x8x16xf32>
    %115 = vector.shape_cast %60 : vector<8x16xf32> to vector<1x8x16xf32>
    %116 = vector.broadcast %115 : vector<1x8x16xf32> to vector<2x8x16xf32>
    %117 = arith.addf %114, %116 : vector<2x8x16xf32>
    %cst_50 = arith.constant dense<0xFF800000> : vector<2x8xf32>
    %118 = vector.multi_reduction <maximumf>, %117, %cst_50 [2] : vector<2x8x16xf32> to vector<2x8xf32>
    %119 = vector.shape_cast %118 : vector<2x8xf32> to vector<2x8x1xf32>
    %120 = vector.broadcast %119 : vector<2x8x1xf32> to vector<2x8x16xf32>
    %121 = arith.subf %117, %120 : vector<2x8x16xf32>
    %122 = math.exp %121 : vector<2x8x16xf32>
    %cst_51 = arith.constant dense<0.000000e+00> : vector<2x8xf32>
    %123 = vector.multi_reduction <add>, %122, %cst_51 [2] : vector<2x8x16xf32> to vector<2x8xf32>
    %124 = vector.shape_cast %123 : vector<2x8xf32> to vector<2x8x1xf32>
    %125 = tpu.reciprocal %124 {approx = true} : vector<2x8x1xf32> -> vector<2x8x1xf32>
    %126 = vector.broadcast %125 : vector<2x8x1xf32> to vector<2x8x16xf32>
    %127 = arith.mulf %122, %126 : vector<2x8x16xf32>
    %128 = arith.truncf %127 : vector<2x8x16xf32> to vector<2x8x16xbf16>
    "tpu.trace_start"() <{level = 10 : i32, message = "bqk,bkd->bqd"}> : () -> ()
    %cst_52 = arith.constant dense<0.000000e+00> : vector<2x8x32xf32>
    %129 = tpu.matmul %128, %111, %cst_52 {dimension_numbers = #tpu.dot_dimension_numbers<[2], [1], [1], [2], [0, 0, 0, 1, 1, 2], [0], [0]>} : vector<2x8x16xbf16>, vector<2x16x32xbf16>, vector<2x8x32xf32> -> vector<2x8x32xf32>
    "tpu.trace_stop"() : () -> ()
    %130 = vector.shape_cast %129 : vector<2x8x32xf32> to vector<16x32xf32>
    %c0_53 = arith.constant 0 : index
    %c64 = arith.constant 64 : index
    %131 = vector.load %arg14[%c0_53, %c64] : memref<16x128xf32, #tpu.memory_space<vmem>>, vector<16x32xf32>
    tpu.vector_store %arg14[%c0_53, %c64], %130 {strides = array<i32>} : memref<16x128xf32, #tpu.memory_space<vmem>>, vector<16x32xf32>,
    %132 = vector.extract_strided_slice %62 {offsets = [0, 0, 96], sizes = [2, 8, 32], strides = [1, 1, 1]} : vector<2x8x128xbf16> to vector<2x8x32xbf16>
    %133 = vector.extract_strided_slice %50 {offsets = [0, 0, 32], sizes = [2, 16, 32], strides = [1, 1, 1]} : vector<2x16x64xbf16> to vector<2x16x32xbf16>
    %134 = vector.extract_strided_slice %52 {offsets = [0, 0, 32], sizes = [2, 16, 32], strides = [1, 1, 1]} : vector<2x16x64xbf16> to vector<2x16x32xbf16>
    "tpu.trace_start"() <{level = 10 : i32, message = "bqd,bkd->bqk"}> : () -> ()
    %cst_54 = arith.constant dense<0.000000e+00> : vector<2x8x16xf32>
    %135 = tpu.matmul %132, %133, %cst_54 {dimension_numbers = #tpu.dot_dimension_numbers<[2], [2], [1], [1], [0, 0, 0, 1, 1, 1], [0], [0]>} : vector<2x8x32xbf16>, vector<2x16x32xbf16>, vector<2x8x16xf32> -> vector<2x8x16xf32>
    "tpu.trace_stop"() : () -> ()
    %cst_55 = arith.constant 0.176776692 : f32
    %136 = vector.broadcast %cst_55 : f32 to vector<2x8x16xf32>
    %137 = arith.mulf %135, %136 : vector<2x8x16xf32>
    %138 = vector.shape_cast %60 : vector<8x16xf32> to vector<1x8x16xf32>
    %139 = vector.broadcast %138 : vector<1x8x16xf32> to vector<2x8x16xf32>
    %140 = arith.addf %137, %139 : vector<2x8x16xf32>
    %cst_56 = arith.constant dense<0xFF800000> : vector<2x8xf32>
    %141 = vector.multi_reduction <maximumf>, %140, %cst_56 [2] : vector<2x8x16xf32> to vector<2x8xf32>
    %142 = vector.shape_cast %141 : vector<2x8xf32> to vector<2x8x1xf32>
    %143 = vector.broadcast %142 : vector<2x8x1xf32> to vector<2x8x16xf32>
    %144 = arith.subf %140, %143 : vector<2x8x16xf32>
    %145 = math.exp %144 : vector<2x8x16xf32>
    %cst_57 = arith.constant dense<0.000000e+00> : vector<2x8xf32>
    %146 = vector.multi_reduction <add>, %145, %cst_57 [2] : vector<2x8x16xf32> to vector<2x8xf32>
    %147 = vector.shape_cast %146 : vector<2x8xf32> to vector<2x8x1xf32>
    %148 = tpu.reciprocal %147 {approx = true} : vector<2x8x1xf32> -> vector<2x8x1xf32>
    %149 = vector.broadcast %148 : vector<2x8x1xf32> to vector<2x8x16xf32>
    %150 = arith.mulf %145, %149 : vector<2x8x16xf32>
    %151 = arith.truncf %150 : vector<2x8x16xf32> to vector<2x8x16xbf16>
    "tpu.trace_start"() <{level = 10 : i32, message = "bqk,bkd->bqd"}> : () -> ()
    %cst_58 = arith.constant dense<0.000000e+00> : vector<2x8x32xf32>
    %152 = tpu.matmul %151, %134, %cst_58 {dimension_numbers = #tpu.dot_dimension_numbers<[2], [1], [1], [2], [0, 0, 0, 1, 1, 2], [0], [0]>} : vector<2x8x16xbf16>, vector<2x16x32xbf16>, vector<2x8x32xf32> -> vector<2x8x32xf32>
    "tpu.trace_stop"() : () -> ()
    %153 = vector.shape_cast %152 : vector<2x8x32xf32> to vector<16x32xf32>
    %c0_59 = arith.constant 0 : index
    %c96 = arith.constant 96 : index
    %154 = vector.load %arg14[%c0_59, %c96] : memref<16x128xf32, #tpu.memory_space<vmem>>, vector<16x32xf32>
    tpu.vector_store %arg14[%c0_59, %c96], %153 {strides = array<i32>} : memref<16x128xf32, #tpu.memory_space<vmem>>, vector<16x32xf32>,
    %c0_60 = arith.constant 0 : index
    %c0_61 = arith.constant 0 : index
    %155 = vector.load %arg14[%c0_60, %c0_61] : memref<16x128xf32, #tpu.memory_space<vmem>>, vector<16x128xf32>
    %156 = arith.truncf %155 : vector<16x128xf32> to vector<16x128xbf16>
    %c0_62 = arith.constant 0 : index
    %c0_63 = arith.constant 0 : index
    %c0_64 = arith.constant 0 : index
    %157 = vector.load %arg7[%c0_62, %c0_63, %c0_64] : memref<1x128x128xbf16, #tpu.memory_space<vmem>>, vector<1x128x128xbf16>
    %158 = vector.shape_cast %157 : vector<1x128x128xbf16> to vector<128x128xbf16>
    %cst_65 = arith.constant dense<0.000000e+00> : vector<16x128xf32>
    %159 = tpu.matmul %156, %158, %cst_65 {dimension_numbers = #tpu.dot_dimension_numbers<[1], [0], [0], [1], [0, 0, 1, 1], [], []>} : vector<16x128xbf16>, vector<128x128xbf16>, vector<16x128xf32> -> vector<16x128xf32>
    %160 = arith.addf %4, %159 : vector<16x128xf32>
    %161 = arith.mulf %160, %160 : vector<16x128xf32>
    %cst_66 = arith.constant dense<0.000000e+00> : vector<16xf32>
    %162 = vector.multi_reduction <add>, %161, %cst_66 [1] : vector<16x128xf32> to vector<16xf32>
    %163 = vector.shape_cast %162 : vector<16xf32> to vector<16x1xf32>
    %cst_67 = arith.constant 1.280000e+02 : f32
    %164 = vector.broadcast %cst_67 : f32 to vector<16x1xf32>
    %165 = arith.divf %163, %164 : vector<16x1xf32>
    %cst_68 = arith.constant 9.99999974E-6 : f32
    %166 = vector.broadcast %cst_68 : f32 to vector<16x1xf32>
    %167 = arith.addf %165, %166 : vector<16x1xf32>
    %168 = math.rsqrt %167 : vector<16x1xf32>
    %169 = vector.broadcast %168 : vector<16x1xf32> to vector<16x128xf32>
    %170 = arith.mulf %160, %169 : vector<16x128xf32>
    %c0_69 = arith.constant 0 : index
    %c0_70 = arith.constant 0 : index
    %c0_71 = arith.constant 0 : index
    %171 = vector.load %arg5[%c0_69, %c0_70, %c0_71] : memref<1x1x128xf32, #tpu.memory_space<vmem>>, vector<1x1x128xf32>
    %172 = vector.shape_cast %171 : vector<1x1x128xf32> to vector<1x128xf32>
    %173 = vector.broadcast %172 : vector<1x128xf32> to vector<16x128xf32>
    %174 = arith.mulf %170, %173 : vector<16x128xf32>
    %175 = arith.truncf %174 : vector<16x128xf32> to vector<16x128xbf16>
    %c0_72 = arith.constant 0 : index
    %c0_73 = arith.constant 0 : index
    %c0_74 = arith.constant 0 : index
    %176 = vector.load %arg8[%c0_72, %c0_73, %c0_74] : memref<1x128x768xbf16, #tpu.memory_space<vmem>>, vector<1x128x768xbf16>
    %177 = vector.shape_cast %176 : vector<1x128x768xbf16> to vector<128x768xbf16>
    %cst_75 = arith.constant dense<0.000000e+00> : vector<16x768xf32>
    %178 = tpu.matmul %175, %177, %cst_75 {dimension_numbers = #tpu.dot_dimension_numbers<[1], [0], [0], [1], [0, 0, 1, 1], [], []>} : vector<16x128xbf16>, vector<128x768xbf16>, vector<16x768xf32> -> vector<16x768xf32>
    %179 = vector.extract_strided_slice %178 {offsets = [0, 0], sizes = [16, 384], strides = [1, 1]} : vector<16x768xf32> to vector<16x384xf32>
    %180 = vector.extract_strided_slice %178 {offsets = [0, 384], sizes = [16, 384], strides = [1, 1]} : vector<16x768xf32> to vector<16x384xf32>
    %181 = arith.negf %179 : vector<16x384xf32>
    %182 = math.exp %181 : vector<16x384xf32>
    %cst_76 = arith.constant 1.000000e+00 : f32
    %183 = vector.broadcast %cst_76 : f32 to vector<16x384xf32>
    %184 = arith.addf %183, %182 : vector<16x384xf32>
    %185 = arith.divf %183, %184 : vector<16x384xf32>
    %186 = arith.mulf %179, %185 : vector<16x384xf32>
    %187 = arith.mulf %186, %180 : vector<16x384xf32>
    %188 = arith.truncf %187 : vector<16x384xf32> to vector<16x384xbf16>
    %c0_77 = arith.constant 0 : index
    %c0_78 = arith.constant 0 : index
    %c0_79 = arith.constant 0 : index
    %189 = vector.load %arg9[%c0_77, %c0_78, %c0_79] : memref<1x384x128xbf16, #tpu.memory_space<vmem>>, vector<1x384x128xbf16>
    %190 = vector.shape_cast %189 : vector<1x384x128xbf16> to vector<384x128xbf16>
    %cst_80 = arith.constant dense<0.000000e+00> : vector<16x128xf32>
    %191 = tpu.matmul %188, %190, %cst_80 {dimension_numbers = #tpu.dot_dimension_numbers<[1], [0], [0], [1], [0, 0, 1, 1], [], []>} : vector<16x384xbf16>, vector<384x128xbf16>, vector<16x128xf32> -> vector<16x128xf32>
    %192 = arith.addf %160, %191 : vector<16x128xf32>
    %c0_81 = arith.constant 0 : index
    %c0_82 = arith.constant 0 : index
    %193 = vector.load %arg12[%c0_81, %c0_82] : memref<16x128xf32, #tpu.memory_space<vmem>>, vector<16x128xf32>
    tpu.vector_store %arg12[%c0_81, %c0_82], %192 {strides = array<i32>} : memref<16x128xf32, #tpu.memory_space<vmem>>, vector<16x128xf32>,
    return
  }
  func.func @transform_0(%arg0: i32, %arg1: memref<1xi32, #tpu.memory_space<smem>>) -> (i32, i32) {
    %c0_i32 = arith.constant 0 : i32
    %c0_i32_0 = arith.constant 0 : i32
    %c0_i32_1 = arith.constant 0 : i32
    return %c0_i32, %c0_i32_0 : i32, i32
  }
  func.func @transform_1(%arg0: i32, %arg1: memref<1xi32, #tpu.memory_space<smem>>) -> (i32, i32, i32, i32) {
    %c0_i32 = arith.constant 0 : i32
    %c0_i32_0 = arith.constant 0 : i32
    %c0_i32_1 = arith.constant 0 : i32
    %c0_i32_2 = arith.constant 0 : i32
    return %arg0, %c0_i32, %c0_i32_0, %c0_i32_1 : i32, i32, i32, i32
  }
  func.func @transform_2(%arg0: i32, %arg1: memref<1xi32, #tpu.memory_space<smem>>) -> (i32, i32, i32) {
    %c0_i32 = arith.constant 0 : i32
    %c0_i32_0 = arith.constant 0 : i32
    %c0_i32_1 = arith.constant 0 : i32
    return %arg0, %c0_i32, %c0_i32_0 : i32, i32, i32
  }
  func.func @transform_3(%arg0: i32, %arg1: memref<1xi32, #tpu.memory_space<smem>>) -> (i32, i32, i32) {
    %c0_i32 = arith.constant 0 : i32
    %c0_i32_0 = arith.constant 0 : i32
    %c0_i32_1 = arith.constant 0 : i32
    return %arg0, %c0_i32, %c0_i32_0 : i32, i32, i32
  }
  func.func @transform_4(%arg0: i32, %arg1: memref<1xi32, #tpu.memory_space<smem>>) -> (i32, i32, i32) {
    %c0_i32 = arith.constant 0 : i32
    %c0_i32_0 = arith.constant 0 : i32
    %c0_i32_1 = arith.constant 0 : i32
    return %arg0, %c0_i32, %c0_i32_0 : i32, i32, i32
  }
  func.func @transform_5(%arg0: i32, %arg1: memref<1xi32, #tpu.memory_space<smem>>) -> (i32, i32, i32) {
    %c0_i32 = arith.constant 0 : i32
    %c0_i32_0 = arith.constant 0 : i32
    %c0_i32_1 = arith.constant 0 : i32
    return %arg0, %c0_i32, %c0_i32_0 : i32, i32, i32
  }
  func.func @transform_6(%arg0: i32, %arg1: memref<1xi32, #tpu.memory_space<smem>>) -> (i32, i32, i32) {
    %c0_i32 = arith.constant 0 : i32
    %c0_i32_0 = arith.constant 0 : i32
    %c0_i32_1 = arith.constant 0 : i32
    return %arg0, %c0_i32, %c0_i32_0 : i32, i32, i32
  }
  func.func @transform_7(%arg0: i32, %arg1: memref<1xi32, #tpu.memory_space<smem>>) -> (i32, i32, i32) {
    %c0_i32 = arith.constant 0 : i32
    %c0_i32_0 = arith.constant 0 : i32
    %c0_i32_1 = arith.constant 0 : i32
    return %arg0, %c0_i32, %c0_i32_0 : i32, i32, i32
  }
  func.func @transform_8(%arg0: i32, %arg1: memref<1xi32, #tpu.memory_space<smem>>) -> (i32, i32) {
    %c0_i32 = arith.constant 0 : i32
    %c0_i32_0 = arith.constant 0 : i32
    %c0_i32_1 = arith.constant 0 : i32
    return %c0_i32, %c0_i32_0 : i32, i32
  }
  func.func @transform_9(%arg0: i32, %arg1: memref<1xi32, #tpu.memory_space<smem>>) -> (i32, i32) {
    %c0_i32 = arith.constant 0 : i32
    %c0_i32_0 = arith.constant 0 : i32
    %c0_i32_1 = arith.constant 0 : i32
    return %c0_i32, %c0_i32_0 : i32, i32
  }
  func.func @transform_10(%arg0: i32, %arg1: memref<1xi32, #tpu.memory_space<smem>>) -> (i32, i32) {
    %c0_i32 = arith.constant 0 : i32
    %c0_i32_0 = arith.constant 0 : i32
    %c0_i32_1 = arith.constant 0 : i32
    return %c0_i32, %c0_i32_0 : i32, i32
  }
  func.func @transform_11(%arg0: i32, %arg1: memref<1xi32, #tpu.memory_space<smem>>) -> (i32, i32, i32, i32) {
    %c0_i32 = arith.constant 0 : i32
    %c0_i32_0 = arith.constant 0 : i32
    %c0_i32_1 = arith.constant 0 : i32
    %c0_i32_2 = arith.constant 0 : i32
    return %arg0, %c0_i32, %c0_i32_0, %c0_i32_1 : i32, i32, i32, i32
  }
}

</mosaic_0001>

<llo_original>
// kernel: transformer_forward.3
$region0: #{transformer_forward.3}
  #allocation0 [shape = 'u32[]', space=smem, size = 0x4, offset = 0x4, fixed_abs, tag = 'smem constant byte address 0x4 - core index']
  #allocation1 [shape = 'u32[144,128]{1,0:T(1,128)}', space=vmem, size = 0x12000, scoped, tag = 'internal scratch']
  %s0 = inlined_call_operand.vmem [shape: f32[16,128], index: 0, kind: input, shape index: {}]
  %s1 = inlined_call_operand.vmem [shape: f32[1,128], index: 1, kind: input, shape index: {}]
  %s2 = inlined_call_operand.vmem [shape: bf16[128,256], index: 2, kind: input, shape index: {}]
  %s3 = inlined_call_operand.hbm [shape: f32[16,256], index: 3, kind: output, shape index: {}]
  %s4 = sld [smem:[#allocation0]]
  $region22: #{transformer_forward.3} parent=0
    _
  %s6 = ssub.s32 1, %s4
  %s7 = scalar_select 0, %s6, %s4
  $region1: #{transformer_forward.3} parent=0
    #allocation2 [shape = 'u8[16384]{0}', space=vmem, size = 0x4000, scoped, tag = 'output window, operand 0, single buffered']
    #allocation3 [shape = 's32[1]{0}', space=sflag, size = 0x4, scoped, tag = 'scoped memory for transformer_forward.3']
    %8 = vsyncpa [#allocation3], 0
    // Predicated region
    $region2: #{transformer_forward.3} parent=1 // pred_check
      _
    $region3: #{transformer_forward.3} parent=1 // pred_check_branch
      %10 = sbr.rel (0) target = $region5
    $region4: #{transformer_forward.3} parent=1 // pred_region
      _
    $region5: #{transformer_forward.3} parent=1 // pred_fallthru
      _
    // Predicated region
    $region6: #{transformer_forward.3} parent=1 // pred_check
      _
    $region7: #{transformer_forward.3} parent=1 // pred_check_branch
      %12 = sbr.rel (0) target = $region9
    $region8: #{transformer_forward.3} parent=1 // pred_region
      _
    $region9: #{transformer_forward.3} parent=1 // pred_fallthru
      _
    // Predicated region
    $region10: #{transformer_forward.3} parent=1 // pred_check
      _
    $region11: #{transformer_forward.3} parent=1 // pred_check_branch
      %14 = sbr.rel (0) target = $region13
    $region12: #{transformer_forward.3} parent=1 // pred_region
      _
    $region13: #{transformer_forward.3} parent=1 // pred_fallthru
      _
    %v16 = vld [vmem:[%s0] sm:$0xff]
    %v17 = vld [vmem:[%s0 + $0x8] sm:$0xff]
    %v18 = vmul.f32 %v16, %v16
    %v19 = vmul.f32 %v17, %v17
    %20 = vadd.xlane.f32.xlu0 %v18
    %v21 = vpop.xlane.xlu0 %20
    %22 = vadd.xlane.f32.xlu0 %v19
    %v23 = vpop.xlane.xlu0 %22
    %v24 = vrcp.pop 128.0
    %v25 = vmul.f32 %v21, %v24
    %v26 = vmul.f32 %v23, %v24
    %v27 = vadd.f32 %v25, 1e-05
    %v28 = vadd.f32 %v26, 1e-05
    %v29 = vrsqrt.pop %v27
    %v30 = vrsqrt.pop %v28
    %v31 = vmul.f32 %v16, %v29
    %v32 = vmul.f32 %v17, %v30
    %v33 = vld [vmem:[%s1] sm:$0x1]
    %v35 = vlaneseq
    %v36 = vshrl.u32 %v35, 7
    %v37 = vsub.s32 0, %v36
    %v38 = vrot.slane %v33, %v37
    %v40 = vmul.f32 %v31, %v38
    %v41 = vmul.f32 %v32, %v38
    %v42 = vpack.c.bf16 %v41, %v40
    %v43 = vld [vmem:[%s2] sm:$0xff]
    %v44 = vld [vmem:[%s2 + $0x8] sm:$0xff]
    %v45 = vld [vmem:[%s2 + $0x10] sm:$0xff]
    %v46 = vld [vmem:[%s2 + $0x18] sm:$0xff]
    %v47 = vld [vmem:[%s2 + $0x20] sm:$0xff]
    %v48 = vld [vmem:[%s2 + $0x28] sm:$0xff]
    %v49 = vld [vmem:[%s2 + $0x30] sm:$0xff]
    %v50 = vld [vmem:[%s2 + $0x38] sm:$0xff]
    %v51 = vld [vmem:[%s2 + $0x40] sm:$0xff]
    %v52 = vld [vmem:[%s2 + $0x48] sm:$0xff]
    %v53 = vld [vmem:[%s2 + $0x50] sm:$0xff]
    %v54 = vld [vmem:[%s2 + $0x58] sm:$0xff]
    %v55 = vld [vmem:[%s2 + $0x60] sm:$0xff]
    %v56 = vld [vmem:[%s2 + $0x68] sm:$0xff]
    %v57 = vld [vmem:[%s2 + $0x70] sm:$0xff]
    %v58 = vld [vmem:[%s2 + $0x78] sm:$0xff]
    %v75 = vunpack.c.l.b16 %v43
    %v76 = vunpack.c.h.b16 %v43
    %v77 = vunpack.c.l.b16 %v44
    %v78 = vunpack.c.h.b16 %v44
    %v79 = vunpack.c.l.b16 %v45
    %v80 = vunpack.c.h.b16 %v45
    %v81 = vunpack.c.l.b16 %v46
    %v82 = vunpack.c.h.b16 %v46
    %v83 = vunpack.c.l.b16 %v47
    %v84 = vunpack.c.h.b16 %v47
    %v85 = vunpack.c.l.b16 %v48
    %v86 = vunpack.c.h.b16 %v48
    %v87 = vunpack.c.l.b16 %v49
    %v88 = vunpack.c.h.b16 %v49
    %v89 = vunpack.c.l.b16 %v50
    %v90 = vunpack.c.h.b16 %v50
    %v91 = vunpack.c.l.b16 %v51
    %v92 = vunpack.c.h.b16 %v51
    %v93 = vunpack.c.l.b16 %v52
    %v94 = vunpack.c.h.b16 %v52
    %v95 = vunpack.c.l.b16 %v53
    %v96 = vunpack.c.h.b16 %v53
    %v97 = vunpack.c.l.b16 %v54
    %v98 = vunpack.c.h.b16 %v54
    %v99 = vunpack.c.l.b16 %v55
    %v100 = vunpack.c.h.b16 %v55
    %v101 = vunpack.c.l.b16 %v56
    %v102 = vunpack.c.h.b16 %v56
    %v103 = vunpack.c.l.b16 %v57
    %v104 = vunpack.c.h.b16 %v57
    %v105 = vunpack.c.l.b16 %v58
    %v106 = vunpack.c.h.b16 %v58
    %v107 = vpack.c.b16 %v77, %v75
    %v108 = vpack.c.b16 %v78, %v76
    %v109 = vpack.c.b16 %v81, %v79
    %v110 = vpack.c.b16 %v82, %v80
    %v111 = vpack.c.b16 %v85, %v83
    %v112 = vpack.c.b16 %v86, %v84
    %v113 = vpack.c.b16 %v89, %v87
    %v114 = vpack.c.b16 %v90, %v88
    %v115 = vpack.c.b16 %v93, %v91
    %v116 = vpack.c.b16 %v94, %v92
    %v117 = vpack.c.b16 %v97, %v95
    %v118 = vpack.c.b16 %v98, %v96
    %v119 = vpack.c.b16 %v101, %v99
    %v120 = vpack.c.b16 %v102, %v100
    %v121 = vpack.c.b16 %v105, %v103
    %v122 = vpack.c.b16 %v106, %v104
    %139 = vmatprep.subr.bf16.mxu0 %v108
    %140 = vmatpush1.bf16.msra.mxu0 %v107
    %141 = vmatprep.subr.bf16.mxu0 %v110
    %142 = vmatpush1.bf16.msra.mxu0 %v109
    %143 = vmatprep.subr.bf16.mxu0 %v112
    %144 = vmatpush1.bf16.msra.mxu0 %v111
    %145 = vmatprep.subr.bf16.mxu0 %v114
    %146 = vmatpush1.bf16.msra.mxu0 %v113
    %147 = vmatprep.subr.bf16.mxu0 %v116
    %148 = vmatpush1.bf16.msra.mxu0 %v115
    %149 = vmatprep.subr.bf16.mxu0 %v118
    %150 = vmatpush1.bf16.msra.mxu0 %v117
    %151 = vmatprep.subr.bf16.mxu0 %v120
    %152 = vmatpush1.bf16.msra.mxu0 %v119
    %153 = vmatprep.subr.bf16.mxu0 %v122
    %154 = vmatpush1.bf16.msra.mxu0 %v121
    %155 = vmatprep.subr.bf16.mxu0 0
    %156 = vmatpush1.bf16.msra.mxu0 0
    %157 = vmatprep.subr.bf16.mxu0 0
    %158 = vmatpush1.bf16.msra.mxu0 0
    %159 = vmatprep.subr.bf16.mxu0 0
    %160 = vmatpush1.bf16.msra.mxu0 0
    %161 = vmatprep.subr.bf16.mxu0 0
    %162 = vmatpush1.bf16.msra.mxu0 0
    %163 = vmatprep.subr.bf16.mxu0 0
    %164 = vmatpush1.bf16.msra.mxu0 0
    %165 = vmatprep.subr.bf16.mxu0 0
    %166 = vmatpush1.bf16.msra.mxu0 0
    %167 = vmatprep.subr.bf16.mxu0 0
    %168 = vmatpush1.bf16.msra.mxu0 0
    %169 = vmatprep.subr.bf16.mxu0 0
    %170 = vmatpush1.bf16.msra.mxu0 0
    %171 = vmatprep.mubr.bf16.mxu0 0
    %172 = vmatmul.mubr.bf16.gmra.mrb[0].mxu0 %v42
    %v173 = vpop.f32.mrb[0].mxu0
    %v174 = vadd.f32 0.0, %v173
    %v175 = vpop.f32.mrb[0].mxu0
    %v176 = vadd.f32 0.0, %v175
    %v177 = vpop.f32.mrb[0].mxu0
    %v178 = vadd.f32 0.0, %v177
    %v179 = vpop.f32.mrb[0].mxu0
    %v180 = vadd.f32 0.0, %v179
    %181 = vdwg.mxu0
    %182 = vst [vmem:[#allocation2] sm:$0xff] %v174
    %183 = vst [vmem:[#allocation2 + $0x8] sm:$0xff] %v176
    %184 = vst [vmem:[#allocation2 + $0x10] sm:$0xff] %v178
    %185 = vst [vmem:[#allocation2 + $0x18] sm:$0xff] %v180
    // Predicated region
    $region14: #{transformer_forward.3} parent=1 // pred_check
      _
    $region15: #{transformer_forward.3} parent=1 // pred_check_branch
      %187 = sbr.rel (0) target = $region17
    $region16: #{transformer_forward.3} parent=1 // pred_region
      %s189 = ssub.s32 512, 512
      %190 = vsyncadd [#allocation3], %s189
      %s191 = sshll.u32 [#allocation2], 4
      %s192 = int_to_ptr.vmem [resolvable:$true] %s191
      %197 = dma.vmem_to_hbm [thread:$0]  %s192, 512, %s3, [#allocation3], 256, 256, 16
    $region17: #{transformer_forward.3} parent=1 // pred_fallthru
      _
    // Predicated region
    $region18: #{transformer_forward.3} parent=1 // pred_check
      _
    $region19: #{transformer_forward.3} parent=1 // pred_check_branch
      %199 = sbr.rel (0) target = $region21
    $region20: #{transformer_forward.3} parent=1 // pred_region
      %200 = dma.done [#allocation3], 512
    $region21: #{transformer_forward.3} parent=1 // pred_fallthru
      _
    %201 = vsyncpa [#allocation3], 1

// kernel: transformer_forward.2
$region0: #{transformer_forward.2}
  #allocation0 [shape = 'u32[]', space=smem, size = 0x4, offset = 0x4, fixed_abs, tag = 'smem constant byte address 0x4 - core index']
  #allocation1 [shape = 'u32[144,128]{1,0:T(1,128)}', space=vmem, size = 0x12000, scoped, tag = 'internal scratch']
  #allocation2 [shape = 'f32[16,128]{1,0:T(8,128)}', space=vmem, size = 0x2000, scoped, tag = 'scratch operand']
  #allocation3 [shape = 's32[1]{0}', space=sflag, size = 0x4, scoped, tag = 'scoped memory for transformer_forward.2']
  #allocation4 [shape = 's32[1]{0:T(128)S(6)}', space=smem, size = 0x200, scoped, tag = 'prefetched SMEM operand 0']
  %s0 = inlined_call_operand.<no memory space> [shape: s32[1], index: 0, kind: input, shape index: {}]
  %s1 = inlined_call_operand.vmem [shape: f32[16,128], index: 1, kind: input, shape index: {}]
  %s2 = inlined_call_operand.hbm [shape: f32[2,4,16,128], index: 2, kind: input, shape index: {}]
  %s3 = inlined_call_operand.vmem [shape: f32[2,1,128], index: 3, kind: input, shape index: {}]
  %s4 = inlined_call_operand.vmem [shape: f32[2,1,128], index: 4, kind: input, shape index: {}]
  %s5 = inlined_call_operand.hbm [shape: bf16[2,128,512], index: 5, kind: input, shape index: {}]
  %s6 = inlined_call_operand.hbm [shape: bf16[2,128,128], index: 6, kind: input, shape index: {}]
  %s7 = inlined_call_operand.hbm [shape: bf16[2,128,768], index: 7, kind: input, shape index: {}]
  %s8 = inlined_call_operand.vmem [shape: bf16[2,384,128], index: 8, kind: input, shape index: {}]
  %s9 = inlined_call_operand.vmem [shape: f32[16,256], index: 9, kind: input, shape index: {}]
  %s10 = inlined_call_operand.vmem [shape: f32[16,256], index: 10, kind: input, shape index: {}]
  %s11 = inlined_call_operand.vmem [shape: f32[16,128], index: 11, kind: output, shape index: {0}]
  %s12 = inlined_call_operand.hbm [shape: f32[2,4,16,128], index: 12, kind: output, shape index: {1}]
  %13 = xla_tuple %s11, %s12
  %s14 = sld [smem:[#allocation0]]
  $region101: #{transformer_forward.2} parent=0
    _
  %s16 = ssub.s32 1, %s14
  %s17 = scalar_select 0, %s16, %s14
  %18 = sst [smem:[#allocation4]] %s0
  $region1: #{transformer_forward.2} parent=0
    #allocation5 [shape = 'u8[65536]{0}', space=vmem, size = 0x10000, scoped, tag = 'input window, operand 2']
    #allocation6 [shape = 's32[2]{0}', space=sflag, size = 0x8, scoped, tag = 'scoped memory for transformer_forward.2']
    #allocation7 [shape = 's32[2]{0}', space=sflag, size = 0x8, scoped, tag = 'scoped memory for transformer_forward.2']
    #allocation8 [shape = 'u8[262144]{0}', space=vmem, size = 0x40000, scoped, tag = 'input window, operand 5']
    #allocation9 [shape = 's32[2]{0}', space=sflag, size = 0x8, scoped, tag = 'scoped memory for transformer_forward.2']
    #allocation10 [shape = 'u8[65536]{0}', space=vmem, size = 0x10000, scoped, tag = 'input window, operand 6']
    #allocation11 [shape = 'u8[393216]{0}', space=vmem, size = 0x60000, scoped, tag = 'input window, operand 7']
    #allocation12 [shape = 's32[2]{0}', space=sflag, size = 0x8, scoped, tag = 'scoped memory for transformer_forward.2']
    #allocation13 [shape = 'u8[65536]{0}', space=vmem, size = 0x10000, scoped, tag = 'output window, operand 1']
    %19 = vsyncpa [#allocation6], 0
    %s20 = scalar_lea.sflag [#allocation6], 1
    %21 = vsyncpa %s20, 0
    %22 = vsyncpa [#allocation9], 0
    %s23 = scalar_lea.sflag [#allocation9], 1
    %24 = vsyncpa %s23, 0
    %25 = vsyncpa [#allocation12], 0
    %s26 = scalar_lea.sflag [#allocation12], 1
    %27 = vsyncpa %s26, 0
    %28 = vsyncpa [#allocation7], 0
    %s29 = scalar_lea.sflag [#allocation7], 1
    %30 = vsyncpa %s29, 0
    loop: start=0, step=1, limit=4
    $region2: #{transformer_forward.2} parent=1 // loop_pre_header
      _
    $region3: #{transformer_forward.2} parent=1 // loop_header
      %s32 = sphi 0, %s36
      %p33 = scmp.ge.s32.totalorder %s32, 4
      %s40 = sphi 0, %s40
      %s42 = sphi 0, %s40
      %s43 = sphi 0, %s42
      %s57 = sphi 0, %s43
      %s63 = sphi 0, %s65
      %s66 = sphi 0, %s63
      %s67 = sphi 0, %s66
      %s83 = sphi 0, %s67
      %s89 = sphi 0, %s91
      %s92 = sphi 0, %s89
      %s93 = sphi 0, %s92
      %s109 = sphi 0, %s93
      %s115 = sphi 0, %s117
      %s118 = sphi 0, %s115
      %s119 = sphi 0, %s118
      %s135 = sphi 0, %s119
      %s141 = sphi 0, %s143
      %s144 = sphi 0, %s141
      %s145 = sphi 0, %s144
      %s161 = sphi 0, %s145
      %s167 = sphi 0, %s169
      %s170 = sphi 0, %s167
      %s171 = sphi 0, %s170
      %s187 = sphi 0, %s171
      %s193 = sphi 0, %s195
      %s196 = sphi 0, %s193
      %s197 = sphi 0, %s196
      %s213 = sphi 0, %s197
      %s219 = sphi 0, %s221
      %s222 = sphi 0, %s219
      %s223 = sphi 0, %s222
      %s239 = sphi 0, %s223
      %s243 = sphi 0, %s243
      %s245 = sphi 0, %s243
      %s246 = sphi 0, %s245
      %s260 = sphi 0, %s246
      %s264 = sphi 0, %s264
      %s266 = sphi 0, %s264
      %s267 = sphi 0, %s266
      %s281 = sphi 0, %s267
      %s285 = sphi 0, %s285
      %s287 = sphi 0, %s285
      %s288 = sphi 0, %s287
      %s302 = sphi 0, %s288
      %s308 = sphi 0, %s310
      %s311 = sphi 0, %s308
      %s312 = sphi 0, %s311
      %s328 = sphi 0, %s312
    $region4: #{transformer_forward.2} parent=1 // loop_header_branch
      %35 = sbr.rel (%p33) target = $region8
    $region5: #{transformer_forward.2} parent=1 // loop_body
      %s37 = ssub.s32 %s32, 1
      %s38 = ssub.s32 %s32, 2
      %s39 = sadd.s32 %s32, 1
      %s41 = sadd.s32 %s40, 1
      %p44 = scmp.eq.s32.totalorder %s32, 1
      %p45 = scmp.ne.s32.totalorder %s40, %s42
      %p46 = scmp.eq.s32.totalorder %s32, 0
      %p47 = por %p45, %p46
      %p48 = scmp.ne.s32.totalorder %s40, %s42
      %p49 = scmp.eq.s32.totalorder %s37, 1
      %p50 = por %p48, %p49
      %p51 = scmp.ne.s32.totalorder %s42, %s43
      %p52 = scmp.eq.s32.totalorder %s37, 0
      %p53 = por %p51, %p52
      %p54 = scmp.ne.s32.totalorder %s42, %s43
      %p55 = scmp.eq.s32.totalorder %s38, 1
      %p56 = por %p54, %p55
      %p58 = scmp.ne.s32.totalorder %s43, %s57
      %p59 = scmp.eq.s32.totalorder %s38, 0
      %p60 = por %p58, %p59
      %s61 = ssub.s32 %s32, %s39
      %p62 = scmp.eq.s32.totalorder %s61, 0
      %s64 = sadd.s32 %s63, 1
      %s65 = scalar_select %p62, %s63, %s64
      %p68 = pneg %p62
      %p69 = scmp.eq.s32.totalorder %s32, 1
      %p70 = por %p68, %p69
      %p71 = scmp.ne.s32.totalorder %s63, %s66
      %p72 = scmp.eq.s32.totalorder %s32, 0
      %p73 = por %p71, %p72
      %p74 = scmp.ne.s32.totalorder %s63, %s66
      %p75 = scmp.eq.s32.totalorder %s37, 1
      %p76 = por %p74, %p75
      %p77 = scmp.ne.s32.totalorder %s66, %s67
      %p78 = scmp.eq.s32.totalorder %s37, 0
      %p79 = por %p77, %p78
      %p80 = scmp.ne.s32.totalorder %s66, %s67
      %p81 = scmp.eq.s32.totalorder %s38, 1
      %p82 = por %p80, %p81
      %p84 = scmp.ne.s32.totalorder %s67, %s83
      %p85 = scmp.eq.s32.totalorder %s38, 0
      %p86 = por %p84, %p85
      %s87 = ssub.s32 %s32, %s39
      %p88 = scmp.eq.s32.totalorder %s87, 0
      %s90 = sadd.s32 %s89, 1
      %s91 = scalar_select %p88, %s89, %s90
      %p94 = pneg %p88
      %p95 = scmp.eq.s32.totalorder %s32, 1
      %p96 = por %p94, %p95
      %p97 = scmp.ne.s32.totalorder %s89, %s92
      %p98 = scmp.eq.s32.totalorder %s32, 0
      %p99 = por %p97, %p98
      %p100 = scmp.ne.s32.totalorder %s89, %s92
      %p101 = scmp.eq.s32.totalorder %s37, 1
      %p102 = por %p100, %p101
      %p103 = scmp.ne.s32.totalorder %s92, %s93
      %p104 = scmp.eq.s32.totalorder %s37, 0
      %p105 = por %p103, %p104
      %p106 = scmp.ne.s32.totalorder %s92, %s93
      %p107 = scmp.eq.s32.totalorder %s38, 1
      %p108 = por %p106, %p107
      %p110 = scmp.ne.s32.totalorder %s93, %s109
      %p111 = scmp.eq.s32.totalorder %s38, 0
      %p112 = por %p110, %p111
      %s113 = ssub.s32 %s32, %s39
      %p114 = scmp.eq.s32.totalorder %s113, 0
      %s116 = sadd.s32 %s115, 1
      %s117 = scalar_select %p114, %s115, %s116
      %p120 = pneg %p114
      %p121 = scmp.eq.s32.totalorder %s32, 1
      %p122 = por %p120, %p121
      %p123 = scmp.ne.s32.totalorder %s115, %s118
      %p124 = scmp.eq.s32.totalorder %s32, 0
      %p125 = por %p123, %p124
      %p126 = scmp.ne.s32.totalorder %s115, %s118
      %p127 = scmp.eq.s32.totalorder %s37, 1
      %p128 = por %p126, %p127
      %p129 = scmp.ne.s32.totalorder %s118, %s119
      %p130 = scmp.eq.s32.totalorder %s37, 0
      %p131 = por %p129, %p130
      %p132 = scmp.ne.s32.totalorder %s118, %s119
      %p133 = scmp.eq.s32.totalorder %s38, 1
      %p134 = por %p132, %p133
      %p136 = scmp.ne.s32.totalorder %s119, %s135
      %p137 = scmp.eq.s32.totalorder %s38, 0
      %p138 = por %p136, %p137
      %s139 = ssub.s32 %s32, %s39
      %p140 = scmp.eq.s32.totalorder %s139, 0
      %s142 = sadd.s32 %s141, 1
      %s143 = scalar_select %p140, %s141, %s142
      %p146 = pneg %p140
      %p147 = scmp.eq.s32.totalorder %s32, 1
      %p148 = por %p146, %p147
      %p149 = scmp.ne.s32.totalorder %s141, %s144
      %p150 = scmp.eq.s32.totalorder %s32, 0
      %p151 = por %p149, %p150
      %p152 = scmp.ne.s32.totalorder %s141, %s144
      %p153 = scmp.eq.s32.totalorder %s37, 1
      %p154 = por %p152, %p153
      %p155 = scmp.ne.s32.totalorder %s144, %s145
      %p156 = scmp.eq.s32.totalorder %s37, 0
      %p157 = por %p155, %p156
      %p158 = scmp.ne.s32.totalorder %s144, %s145
      %p159 = scmp.eq.s32.totalorder %s38, 1
      %p160 = por %p158, %p159
      %p162 = scmp.ne.s32.totalorder %s145, %s161
      %p163 = scmp.eq.s32.totalorder %s38, 0
      %p164 = por %p162, %p163
      %s165 = ssub.s32 %s32, %s39
      %p166 = scmp.eq.s32.totalorder %s165, 0
      %s168 = sadd.s32 %s167, 1
      %s169 = scalar_select %p166, %s167, %s168
      %p172 = pneg %p166
      %p173 = scmp.eq.s32.totalorder %s32, 1
      %p174 = por %p172, %p173
      %p175 = scmp.ne.s32.totalorder %s167, %s170
      %p176 = scmp.eq.s32.totalorder %s32, 0
      %p177 = por %p175, %p176
      %p178 = scmp.ne.s32.totalorder %s167, %s170
      %p179 = scmp.eq.s32.totalorder %s37, 1
      %p180 = por %p178, %p179
      %p181 = scmp.ne.s32.totalorder %s170, %s171
      %p182 = scmp.eq.s32.totalorder %s37, 0
      %p183 = por %p181, %p182
      %p184 = scmp.ne.s32.totalorder %s170, %s171
      %p185 = scmp.eq.s32.totalorder %s38, 1
      %p186 = por %p184, %p185
      %p188 = scmp.ne.s32.totalorder %s171, %s187
      %p189 = scmp.eq.s32.totalorder %s38, 0
      %p190 = por %p188, %p189
      %s191 = ssub.s32 %s32, %s39
      %p192 = scmp.eq.s32.totalorder %s191, 0
      %s194 = sadd.s32 %s193, 1
      %s195 = scalar_select %p192, %s193, %s194
      %p198 = pneg %p192
      %p199 = scmp.eq.s32.totalorder %s32, 1
      %p200 = por %p198, %p199
      %p201 = scmp.ne.s32.totalorder %s193, %s196
      %p202 = scmp.eq.s32.totalorder %s32, 0
      %p203 = por %p201, %p202
      %p204 = scmp.ne.s32.totalorder %s193, %s196
      %p205 = scmp.eq.s32.totalorder %s37, 1
      %p206 = por %p204, %p205
      %p207 = scmp.ne.s32.totalorder %s196, %s197
      %p208 = scmp.eq.s32.totalorder %s37, 0
      %p209 = por %p207, %p208
      %p210 = scmp.ne.s32.totalorder %s196, %s197
      %p211 = scmp.eq.s32.totalorder %s38, 1
      %p212 = por %p210, %p211
      %p214 = scmp.ne.s32.totalorder %s197, %s213
      %p215 = scmp.eq.s32.totalorder %s38, 0
      %p216 = por %p214, %p215
      %s217 = ssub.s32 %s32, %s39
      %p218 = scmp.eq.s32.totalorder %s217, 0
      %s220 = sadd.s32 %s219, 1
      %s221 = scalar_select %p218, %s219, %s220
      %p224 = pneg %p218
      %p225 = scmp.eq.s32.totalorder %s32, 1
      %p226 = por %p224, %p225
      %p227 = scmp.ne.s32.totalorder %s219, %s222
      %p228 = scmp.eq.s32.totalorder %s32, 0
      %p229 = por %p227, %p228
      %p230 = scmp.ne.s32.totalorder %s219, %s222
      %p231 = scmp.eq.s32.totalorder %s37, 1
      %p232 = por %p230, %p231
      %p233 = scmp.ne.s32.totalorder %s222, %s223
      %p234 = scmp.eq.s32.totalorder %s37, 0
      %p235 = por %p233, %p234
      %p236 = scmp.ne.s32.totalorder %s222, %s223
      %p237 = scmp.eq.s32.totalorder %s38, 1
      %p238 = por %p236, %p237
      %p240 = scmp.ne.s32.totalorder %s223, %s239
      %p241 = scmp.eq.s32.totalorder %s38, 0
      %p242 = por %p240, %p241
      %s244 = sadd.s32 %s243, 1
      %p247 = scmp.eq.s32.totalorder %s32, 1
      %p248 = scmp.ne.s32.totalorder %s243, %s245
      %p249 = scmp.eq.s32.totalorder %s32, 0
      %p250 = por %p248, %p249
      %p251 = scmp.ne.s32.totalorder %s243, %s245
      %p252 = scmp.eq.s32.totalorder %s37, 1
      %p253 = por %p251, %p252
      %p254 = scmp.ne.s32.totalorder %s245, %s246
      %p255 = scmp.eq.s32.totalorder %s37, 0
      %p256 = por %p254, %p255
      %p257 = scmp.ne.s32.totalorder %s245, %s246
      %p258 = scmp.eq.s32.totalorder %s38, 1
      %p259 = por %p257, %p258
      %p261 = scmp.ne.s32.totalorder %s246, %s260
      %p262 = scmp.eq.s32.totalorder %s38, 0
      %p263 = por %p261, %p262
      %s265 = sadd.s32 %s264, 1
      %p268 = scmp.eq.s32.totalorder %s32, 1
      %p269 = scmp.ne.s32.totalorder %s264, %s266
      %p270 = scmp.eq.s32.totalorder %s32, 0
      %p271 = por %p269, %p270
      %p272 = scmp.ne.s32.totalorder %s264, %s266
      %p273 = scmp.eq.s32.totalorder %s37, 1
      %p274 = por %p272, %p273
      %p275 = scmp.ne.s32.totalorder %s266, %s267
      %p276 = scmp.eq.s32.totalorder %s37, 0
      %p277 = por %p275, %p276
      %p278 = scmp.ne.s32.totalorder %s266, %s267
      %p279 = scmp.eq.s32.totalorder %s38, 1
      %p280 = por %p278, %p279
      %p282 = scmp.ne.s32.totalorder %s267, %s281
      %p283 = scmp.eq.s32.totalorder %s38, 0
      %p284 = por %p282, %p283
      %s286 = sadd.s32 %s285, 1
      %p289 = scmp.eq.s32.totalorder %s32, 1
      %p290 = scmp.ne.s32.totalorder %s285, %s287
      %p291 = scmp.eq.s32.totalorder %s32, 0
      %p292 = por %p290, %p291
      %p293 = scmp.ne.s32.totalorder %s285, %s287
      %p294 = scmp.eq.s32.totalorder %s37, 1
      %p295 = por %p293, %p294
      %p296 = scmp.ne.s32.totalorder %s287, %s288
      %p297 = scmp.eq.s32.totalorder %s37, 0
      %p298 = por %p296, %p297
      %p299 = scmp.ne.s32.totalorder %s287, %s288
      %p300 = scmp.eq.s32.totalorder %s38, 1
      %p301 = por %p299, %p300
      %p303 = scmp.ne.s32.totalorder %s288, %s302
      %p304 = scmp.eq.s32.totalorder %s38, 0
      %p305 = por %p303, %p304
      %s306 = ssub.s32 %s32, %s39
      %p307 = scmp.eq.s32.totalorder %s306, 0
      %s309 = sadd.s32 %s308, 1
      %s310 = scalar_select %p307, %s308, %s309
      %p313 = pneg %p307
      %p314 = scmp.eq.s32.totalorder %s32, 1
      %p315 = por %p313, %p314
      %p316 = scmp.ne.s32.totalorder %s308, %s311
      %p317 = scmp.eq.s32.totalorder %s32, 0
      %p318 = por %p316, %p317
      %p319 = scmp.ne.s32.totalorder %s308, %s311
      %p320 = scmp.eq.s32.totalorder %s37, 1
      %p321 = por %p319, %p320
      %p322 = scmp.ne.s32.totalorder %s311, %s312
      %p323 = scmp.eq.s32.totalorder %s37, 0
      %p324 = por %p322, %p323
      %p325 = scmp.ne.s32.totalorder %s311, %s312
      %p326 = scmp.eq.s32.totalorder %s38, 1
      %p327 = por %p325, %p326
      %p329 = scmp.ne.s32.totalorder %s312, %s328
      %p330 = scmp.eq.s32.totalorder %s38, 0
      %p331 = por %p329, %p330
      %p332 = scmp.le.s32.totalorder 1, %s32
      %p333 = scmp.lt.s32.totalorder %s32, 3
      %p334 = pnand %p332, %p333
      %p335 = pneg %p334
      // Predicated region
      $region9: #{transformer_forward.2} parent=5 // pred_check
        _
      $region10: #{transformer_forward.2} parent=5 // pred_check_branch
        %337 = sbr.rel (%p334) target = $region12
      $region11: #{transformer_forward.2} parent=5 // pred_region
        %s338 = ssub.s32 %s32, 1
        // Predicated region
        $region13: #{transformer_forward.2} parent=11 // pred_check
          %p339 = pneg %p53
        $region14: #{transformer_forward.2} parent=11 // pred_check_branch
          %341 = sbr.rel (%p339) target = $region16
        $region15: #{transformer_forward.2} parent=11 // pred_region
          _
        $region16: #{transformer_forward.2} parent=11 // pred_fallthru
          _
        // Predicated region
        $region17: #{transformer_forward.2} parent=11 // pred_check
          %p342 = pneg %p256
        $region18: #{transformer_forward.2} parent=11 // pred_check_branch
          %344 = sbr.rel (%p342) target = $region20
        $region19: #{transformer_forward.2} parent=11 // pred_region
          _
        $region20: #{transformer_forward.2} parent=11 // pred_fallthru
          _
        // Predicated region
        $region21: #{transformer_forward.2} parent=11 // pred_check
          %p345 = pneg %p277
        $region22: #{transformer_forward.2} parent=11 // pred_check_branch
          %347 = sbr.rel (%p345) target = $region24
        $region23: #{transformer_forward.2} parent=11 // pred_region
          _
        $region24: #{transformer_forward.2} parent=11 // pred_fallthru
          _
      $region12: #{transformer_forward.2} parent=5 // pred_fallthru
        _
      %p348 = scmp.lt.s32.totalorder %s32, 2
      // Predicated region
      $region25: #{transformer_forward.2} parent=5 // pred_check
        %p349 = pneg %p348
      $region26: #{transformer_forward.2} parent=5 // pred_check_branch
        %351 = sbr.rel (%p349) target = $region28
      $region27: #{transformer_forward.2} parent=5 // pred_region
        // Predicated region
        $region29: #{transformer_forward.2} parent=27 // pred_check
          %p352 = pneg %p73
        $region30: #{transformer_forward.2} parent=27 // pred_check_branch
          %354 = sbr.rel (%p352) target = $region32
        $region31: #{transformer_forward.2} parent=27 // pred_region
          %s355 = sand.u32 %s63, 1
          %s356 = scalar_lea.sflag [#allocation6], %s355
          %s357 = sand.u32 %s63, 1
          %s358 = smul.addr %s357, 64
          %s359 = scalar_lea.vmem [#allocation5], %s358
          %s361 = ssub.s32 1024, 1024
          %362 = vsyncadd %s356, %s361
          %s363 = smul.addr %s32, 8
          %s364 = smul.addr %s363, 128
          %s365 = scalar_lea.hbm %s2, %s364
          %s366 = sshll.u32 %s359, 4
          %s367 = int_to_ptr.vmem [resolvable:$true] %s366
          %372 = dma.hbm_to_vmem [thread:$0]  %s365, 1024, %s367, %s356, 128, 128, 8
        $region32: #{transformer_forward.2} parent=27 // pred_fallthru
          _
        // Predicated region
        $region33: #{transformer_forward.2} parent=27 // pred_check
          %p373 = pneg %p99
        $region34: #{transformer_forward.2} parent=27 // pred_check_branch
          %375 = sbr.rel (%p373) target = $region36
        $region35: #{transformer_forward.2} parent=27 // pred_region
          %p376 = scmp.lt.s32.totalorder %s32, 1
          %s377 = scalar_select %p376, %s32, 1
          %s378 = scalar_lea.vmem %s3, %s377
        $region36: #{transformer_forward.2} parent=27 // pred_fallthru
          _
        // Predicated region
        $region37: #{transformer_forward.2} parent=27 // pred_check
          %p379 = pneg %p125
        $region38: #{transformer_forward.2} parent=27 // pred_check_branch
          %381 = sbr.rel (%p379) target = $region40
        $region39: #{transformer_forward.2} parent=27 // pred_region
          %p382 = scmp.lt.s32.totalorder %s32, 1
          %s383 = scalar_select %p382, %s32, 1
          %s384 = scalar_lea.vmem %s4, %s383
        $region40: #{transformer_forward.2} parent=27 // pred_fallthru
          _
        // Predicated region
        $region41: #{transformer_forward.2} parent=27 // pred_check
          %p385 = pneg %p151
        $region42: #{transformer_forward.2} parent=27 // pred_check_branch
          %387 = sbr.rel (%p385) target = $region44
        $region43: #{transformer_forward.2} parent=27 // pred_region
          %s388 = sand.u32 %s32, 1
          %s389 = scalar_lea.sflag [#allocation9], %s388
          %s390 = sand.u32 %s141, 1
          %s391 = smul.addr %s390, 256
          %s392 = scalar_lea.vmem [#allocation8], %s391
          %s394 = ssub.s32 4096, 4096
          %395 = vsyncadd %s389, %s394
          %s396 = smul.addr %s32, 64
          %s397 = smul.addr %s396, 64
          %s398 = scalar_lea.hbm %s5, %s397
          %s399 = sshll.u32 %s392, 4
          %s400 = int_to_ptr.vmem [resolvable:$true] %s399
          %405 = dma.hbm_to_vmem [thread:$0]  %s398, 4096, %s400, %s389, 256, 256, 16
        $region44: #{transformer_forward.2} parent=27 // pred_fallthru
          _
        // Predicated region
        $region45: #{transformer_forward.2} parent=27 // pred_check
          %p406 = pneg %p177
        $region46: #{transformer_forward.2} parent=27 // pred_check_branch
          %408 = sbr.rel (%p406) target = $region48
        $region47: #{transformer_forward.2} parent=27 // pred_region
          %s409 = sand.u32 %s32, 1
          %s410 = scalar_lea.sflag [#allocation9], %s409
          %s411 = sand.u32 %s167, 1
          %s412 = smul.addr %s411, 64
          %s413 = scalar_lea.vmem [#allocation10], %s412
          %s415 = ssub.s32 1024, 1024
          %416 = vsyncadd %s410, %s415
          %s417 = smul.addr %s32, 16
          %s418 = smul.addr %s417, 64
          %s419 = scalar_lea.hbm %s6, %s418
          %s420 = sshll.u32 %s413, 4
          %s421 = int_to_ptr.vmem [resolvable:$true] %s420
          %426 = dma.hbm_to_vmem [thread:$0]  %s419, 1024, %s421, %s410, 64, 64, 4
        $region48: #{transformer_forward.2} parent=27 // pred_fallthru
          _
        // Predicated region
        $region49: #{transformer_forward.2} parent=27 // pred_check
          %p427 = pneg %p203
        $region50: #{transformer_forward.2} parent=27 // pred_check_branch
          %429 = sbr.rel (%p427) target = $region52
        $region51: #{transformer_forward.2} parent=27 // pred_region
          %s430 = sand.u32 %s193, 1
          %s431 = scalar_lea.sflag [#allocation12], %s430
          %s432 = sand.u32 %s193, 1
          %s433 = smul.addr %s432, 384
          %s434 = scalar_lea.vmem [#allocation11], %s433
          %s436 = ssub.s32 6144, 6144
          %437 = vsyncadd %s431, %s436
          %s438 = smul.addr %s32, 96
          %s439 = smul.addr %s438, 64
          %s440 = scalar_lea.hbm %s7, %s439
          %s441 = sshll.u32 %s434, 4
          %s442 = int_to_ptr.vmem [resolvable:$true] %s441
          %447 = dma.hbm_to_vmem [thread:$0]  %s440, 6144, %s442, %s431, 384, 384, 24
        $region52: #{transformer_forward.2} parent=27 // pred_fallthru
          _
        // Predicated region
        $region53: #{transformer_forward.2} parent=27 // pred_check
          %p448 = pneg %p229
        $region54: #{transformer_forward.2} parent=27 // pred_check_branch
          %450 = sbr.rel (%p448) target = $region56
        $region55: #{transformer_forward.2} parent=27 // pred_region
          %p451 = scmp.lt.s32.totalorder %s32, 1
          %s452 = scalar_select %p451, %s32, 1
          %s453 = smul.addr %s452, 48
          %s454 = smul.addr %s453, 4
          %s455 = scalar_lea.vmem %s8, %s454
        $region56: #{transformer_forward.2} parent=27 // pred_fallthru
          _
      $region28: #{transformer_forward.2} parent=5 // pred_fallthru
        _
      %p456 = scmp.le.s32.totalorder 1, %s32
      %p457 = scmp.lt.s32.totalorder %s32, 3
      %p458 = pnand %p456, %p457
      %p459 = pneg %p458
      // Predicated region
      $region57: #{transformer_forward.2} parent=5 // pred_check
        _
      $region58: #{transformer_forward.2} parent=5 // pred_check_branch
        %461 = sbr.rel (%p458) target = $region60
      $region59: #{transformer_forward.2} parent=5 // pred_region
        %s462 = ssub.s32 %s32, 1
        %s463 = sand.u32 %s66, 1
        %s464 = scalar_lea.sflag [#allocation6], %s463
        %s465 = sand.u32 %s66, 1
        %s466 = smul.addr %s465, 64
        %s467 = scalar_lea.vmem [#allocation5], %s466
        // Predicated region
        $region61: #{transformer_forward.2} parent=59 // pred_check
          %p468 = pneg %p79
        $region62: #{transformer_forward.2} parent=59 // pred_check_branch
          %470 = sbr.rel (%p468) target = $region64
        $region63: #{transformer_forward.2} parent=59 // pred_region
          %471 = dma.done %s464, 1024
        $region64: #{transformer_forward.2} parent=59 // pred_fallthru
          _
        %s472 = sand.u32 %s37, 1
        %s473 = scalar_lea.sflag [#allocation9], %s472
        %s474 = sand.u32 %s144, 1
        %s475 = smul.addr %s474, 256
        %s476 = scalar_lea.vmem [#allocation8], %s475
        // Predicated region
        $region65: #{transformer_forward.2} parent=59 // pred_check
          %p477 = pneg %p157
        $region66: #{transformer_forward.2} parent=59 // pred_check_branch
          %479 = sbr.rel (%p477) target = $region68
        $region67: #{transformer_forward.2} parent=59 // pred_region
          %480 = dma.done %s473, 4096
        $region68: #{transformer_forward.2} parent=59 // pred_fallthru
          _
        %s481 = sand.u32 %s37, 1
        %s482 = scalar_lea.sflag [#allocation9], %s481
        %s483 = sand.u32 %s170, 1
        %s484 = smul.addr %s483, 64
        %s485 = scalar_lea.vmem [#allocation10], %s484
        // Predicated region
        $region69: #{transformer_forward.2} parent=59 // pred_check
          %p486 = pneg %p183
        $region70: #{transformer_forward.2} parent=59 // pred_check_branch
          %488 = sbr.rel (%p486) target = $region72
        $region71: #{transformer_forward.2} parent=59 // pred_region
          %489 = dma.done %s482, 1024
        $region72: #{transformer_forward.2} parent=59 // pred_fallthru
          _
        %s490 = sand.u32 %s196, 1
        %s491 = scalar_lea.sflag [#allocation12], %s490
        %s492 = sand.u32 %s196, 1
        %s493 = smul.addr %s492, 384
        %s494 = scalar_lea.vmem [#allocation11], %s493
        // Predicated region
        $region73: #{transformer_forward.2} parent=59 // pred_check
          %p495 = pneg %p209
        $region74: #{transformer_forward.2} parent=59 // pred_check_branch
          %497 = sbr.rel (%p495) target = $region76
        $region75: #{transformer_forward.2} parent=59 // pred_region
          %498 = dma.done %s491, 6144
        $region76: #{transformer_forward.2} parent=59 // pred_fallthru
          _
        %p499 = pneg %p53
        %p500 = pneg %p50
        %s501 = sand.u32 %s66, 1
        %s502 = scalar_lea.sflag [#allocation6], %s501
        %s503 = sand.u32 %s66, 1
        %s504 = smul.addr %s503, 64
        %s505 = scalar_lea.vmem [#allocation5], %s504
        %p506 = pneg %p79
        %p507 = pneg %p76
        %p508 = scmp.lt.s32.totalorder %s37, 1
        %s509 = scalar_select %p508, %s37, 1
        %s510 = scalar_lea.vmem %s3, %s509
        %p511 = pneg %p105
        %p512 = pneg %p102
        %p513 = scmp.lt.s32.totalorder %s37, 1
        %s514 = scalar_select %p513, %s37, 1
        %s515 = scalar_lea.vmem %s4, %s514
        %p516 = pneg %p131
        %p517 = pneg %p128
        %s518 = sand.u32 %s37, 1
        %s519 = scalar_lea.sflag [#allocation9], %s518
        %s520 = sand.u32 %s144, 1
        %s521 = smul.addr %s520, 256
        %s522 = scalar_lea.vmem [#allocation8], %s521
        %p523 = pneg %p157
        %p524 = pneg %p154
        %s525 = sand.u32 %s37, 1
        %s526 = scalar_lea.sflag [#allocation9], %s525
        %s527 = sand.u32 %s170, 1
        %s528 = smul.addr %s527, 64
        %s529 = scalar_lea.vmem [#allocation10], %s528
        %p530 = pneg %p183
        %p531 = pneg %p180
        %s532 = sand.u32 %s196, 1
        %s533 = scalar_lea.sflag [#allocation12], %s532
        %s534 = sand.u32 %s196, 1
        %s535 = smul.addr %s534, 384
        %s536 = scalar_lea.vmem [#allocation11], %s535
        %p537 = pneg %p209
        %p538 = pneg %p206
        %p539 = scmp.lt.s32.totalorder %s37, 1
        %s540 = scalar_select %p539, %s37, 1
        %s541 = smul.addr %s540, 48
        %s542 = smul.addr %s541, 4
        %s543 = scalar_lea.vmem %s8, %s542
        %p544 = pneg %p235
        %p545 = pneg %p232
        %p546 = pneg %p256
        %p547 = pneg %p253
        %p548 = pneg %p277
        %p549 = pneg %p274
        %p550 = pneg %p298
        %p551 = pneg %p295
        %p552 = pneg %p324
        %p553 = pneg %p321
        %s554 = sand.u32 %s311, 1
        %s555 = scalar_lea.sflag [#allocation7], %s554
        %s556 = sand.u32 %s311, 1
        %s557 = smul.addr %s556, 64
        %s558 = scalar_lea.vmem [#allocation13], %s557
        %p559 = scmp.lt.s32.totalorder %s37, 1
        %s560 = scalar_select %p559, %s37, 1
        %s561 = scalar_lea.vmem %s3, %s560
        %p562 = scmp.lt.s32.totalorder %s37, 1
        %s563 = scalar_select %p562, %s37, 1
        %s564 = scalar_lea.vmem %s4, %s563
        %p565 = scmp.lt.s32.totalorder %s37, 1
        %s566 = scalar_select %p565, %s37, 1
        %s567 = smul.addr %s566, 48
        %s568 = smul.addr %s567, 4
        %s569 = scalar_lea.vmem %s8, %s568
        %s571 = sld [smem:[#allocation4]]
        %p572 = scmp.eq.s32.totalorder %s37, 0
        // Predicated region
        $region77: #{transformer_forward.2} parent=59 // pred_check
          %p573 = pneg %p572
        $region78: #{transformer_forward.2} parent=59 // pred_check_branch
          %575 = sbr.rel (%p573) target = $region80
        $region79: #{transformer_forward.2} parent=59 // pred_region
          %v576 = vld [vmem:[%s1] sm:$0xff]
          %v577 = vld [vmem:[%s1 + $0x8] sm:$0xff]
          %578 = vst [vmem:[%s11] sm:$0xff] %v576
          %579 = vst [vmem:[%s11 + $0x8] sm:$0xff] %v577
        $region80: #{transformer_forward.2} parent=59 // pred_fallthru
          _
        %v580 = vld [vmem:[%s11] sm:$0xff]
        %v581 = vld [vmem:[%s11 + $0x8] sm:$0xff]
        %v582 = vmul.f32 %v580, %v580
        %v583 = vmul.f32 %v581, %v581
        %584 = vadd.xlane.f32.xlu0 %v582
        %v585 = vpop.xlane.xlu0 %584
        %586 = vadd.xlane.f32.xlu0 %v583
        %v587 = vpop.xlane.xlu0 %586
        %v588 = vrcp.pop 128.0
        %v589 = vmul.f32 %v585, %v588
        %v590 = vmul.f32 %v587, %v588
        %v591 = vadd.f32 %v589, 1e-05
        %v592 = vadd.f32 %v590, 1e-05
        %v593 = vrsqrt.pop %v591
        %v594 = vrsqrt.pop %v592
        %v595 = vmul.f32 %v580, %v593
        %v596 = vmul.f32 %v581, %v594
        %v597 = vld [vmem:[%s561] sm:$0x1]
        %v599 = vlaneseq
        %v600 = vshrl.u32 %v599, 7
        %v601 = vsub.s32 0, %v600
        %v602 = vrot.slane %v597, %v601
        %v604 = vmul.f32 %v595, %v602
        %v605 = vmul.f32 %v596, %v602
        %v606 = vpack.c.bf16 %v605, %v604
        %v607 = vld [vmem:[%s476] sm:$0xff]
        %v608 = vld [vmem:[%s476 + $0x8] sm:$0xff]
        %v609 = vld [vmem:[%s476 + $0x10] sm:$0xff]
        %v610 = vld [vmem:[%s476 + $0x18] sm:$0xff]
        %v611 = vld [vmem:[%s476 + $0x20] sm:$0xff]
        %v612 = vld [vmem:[%s476 + $0x28] sm:$0xff]
        %v613 = vld [vmem:[%s476 + $0x30] sm:$0xff]
        %v614 = vld [vmem:[%s476 + $0x38] sm:$0xff]
        %v615 = vld [vmem:[%s476 + $0x40] sm:$0xff]
        %v616 = vld [vmem:[%s476 + $0x48] sm:$0xff]
        %v617 = vld [vmem:[%s476 + $0x50] sm:$0xff]
        %v618 = vld [vmem:[%s476 + $0x58] sm:$0xff]
        %v619 = vld [vmem:[%s476 + $0x60] sm:$0xff]
        %v620 = vld [vmem:[%s476 + $0x68] sm:$0xff]
        %v621 = vld [vmem:[%s476 + $0x70] sm:$0xff]
        %v622 = vld [vmem:[%s476 + $0x78] sm:$0xff]
        %v623 = vld [vmem:[%s476 + $0x80] sm:$0xff]
        %v624 = vld [vmem:[%s476 + $0x88] sm:$0xff]
        %v625 = vld [vmem:[%s476 + $0x90] sm:$0xff]
        %v626 = vld [vmem:[%s476 + $0x98] sm:$0xff]
        %v627 = vld [vmem:[%s476 + $0xa0] sm:$0xff]
        %v628 = vld [vmem:[%s476 + $0xa8] sm:$0xff]
        %v629 = vld [vmem:[%s476 + $0xb0] sm:$0xff]
        %v630 = vld [vmem:[%s476 + $0xb8] sm:$0xff]
        %v631 = vld [vmem:[%s476 + $0xc0] sm:$0xff]
        %v632 = vld [vmem:[%s476 + $0xc8] sm:$0xff]
        %v633 = vld [vmem:[%s476 + $0xd0] sm:$0xff]
        %v634 = vld [vmem:[%s476 + $0xd8] sm:$0xff]
        %v635 = vld [vmem:[%s476 + $0xe0] sm:$0xff]
        %v636 = vld [vmem:[%s476 + $0xe8] sm:$0xff]
        %v637 = vld [vmem:[%s476 + $0xf0] sm:$0xff]
        %v638 = vld [vmem:[%s476 + $0xf8] sm:$0xff]
        %v671 = vunpack.c.l.b16 %v607
        %v672 = vunpack.c.h.b16 %v607
        %v673 = vunpack.c.l.b16 %v608
        %v674 = vunpack.c.h.b16 %v608
        %v675 = vunpack.c.l.b16 %v609
        %v676 = vunpack.c.h.b16 %v609
        %v677 = vunpack.c.l.b16 %v610
        %v678 = vunpack.c.h.b16 %v610
        %v679 = vunpack.c.l.b16 %v611
        %v680 = vunpack.c.h.b16 %v611
        %v681 = vunpack.c.l.b16 %v612
        %v682 = vunpack.c.h.b16 %v612
        %v683 = vunpack.c.l.b16 %v613
        %v684 = vunpack.c.h.b16 %v613
        %v685 = vunpack.c.l.b16 %v614
        %v686 = vunpack.c.h.b16 %v614
        %v687 = vunpack.c.l.b16 %v615
        %v688 = vunpack.c.h.b16 %v615
        %v689 = vunpack.c.l.b16 %v616
        %v690 = vunpack.c.h.b16 %v616
        %v691 = vunpack.c.l.b16 %v617
        %v692 = vunpack.c.h.b16 %v617
        %v693 = vunpack.c.l.b16 %v618
        %v694 = vunpack.c.h.b16 %v618
        %v695 = vunpack.c.l.b16 %v619
        %v696 = vunpack.c.h.b16 %v619
        %v697 = vunpack.c.l.b16 %v620
        %v698 = vunpack.c.h.b16 %v620
        %v699 = vunpack.c.l.b16 %v621
        %v700 = vunpack.c.h.b16 %v621
        %v701 = vunpack.c.l.b16 %v622
        %v702 = vunpack.c.h.b16 %v622
        %v703 = vunpack.c.l.b16 %v623
        %v704 = vunpack.c.h.b16 %v623
        %v705 = vunpack.c.l.b16 %v624
        %v706 = vunpack.c.h.b16 %v624
        %v707 = vunpack.c.l.b16 %v625
        %v708 = vunpack.c.h.b16 %v625
        %v709 = vunpack.c.l.b16 %v626
        %v710 = vunpack.c.h.b16 %v626
        %v711 = vunpack.c.l.b16 %v627
        %v712 = vunpack.c.h.b16 %v627
        %v713 = vunpack.c.l.b16 %v628
        %v714 = vunpack.c.h.b16 %v628
        %v715 = vunpack.c.l.b16 %v629
        %v716 = vunpack.c.h.b16 %v629
        %v717 = vunpack.c.l.b16 %v630
        %v718 = vunpack.c.h.b16 %v630
        %v719 = vunpack.c.l.b16 %v631
        %v720 = vunpack.c.h.b16 %v631
        %v721 = vunpack.c.l.b16 %v632
        %v722 = vunpack.c.h.b16 %v632
        %v723 = vunpack.c.l.b16 %v633
        %v724 = vunpack.c.h.b16 %v633
        %v725 = vunpack.c.l.b16 %v634
        %v726 = vunpack.c.h.b16 %v634
        %v727 = vunpack.c.l.b16 %v635
        %v728 = vunpack.c.h.b16 %v635
        %v729 = vunpack.c.l.b16 %v636
        %v730 = vunpack.c.h.b16 %v636
        %v731 = vunpack.c.l.b16 %v637
        %v732 = vunpack.c.h.b16 %v637
        %v733 = vunpack.c.l.b16 %v638
        %v734 = vunpack.c.h.b16 %v638
        %v735 = vpack.c.b16 %v675, %v671
        %v736 = vpack.c.b16 %v676, %v672
        %v737 = vpack.c.b16 %v677, %v673
        %v738 = vpack.c.b16 %v678, %v674
        %v739 = vpack.c.b16 %v683, %v679
        %v740 = vpack.c.b16 %v684, %v680
        %v741 = vpack.c.b16 %v685, %v681
        %v742 = vpack.c.b16 %v686, %v682
        %v743 = vpack.c.b16 %v691, %v687
        %v744 = vpack.c.b16 %v692, %v688
        %v745 = vpack.c.b16 %v693, %v689
        %v746 = vpack.c.b16 %v694, %v690
        %v747 = vpack.c.b16 %v699, %v695
        %v748 = vpack.c.b16 %v700, %v696
        %v749 = vpack.c.b16 %v701, %v697
        %v750 = vpack.c.b16 %v702, %v698
        %v751 = vpack.c.b16 %v707, %v703
        %v752 = vpack.c.b16 %v708, %v704
        %v753 = vpack.c.b16 %v709, %v705
        %v754 = vpack.c.b16 %v710, %v706
        %v755 = vpack.c.b16 %v715, %v711
        %v756 = vpack.c.b16 %v716, %v712
        %v757 = vpack.c.b16 %v717, %v713
        %v758 = vpack.c.b16 %v718, %v714
        %v759 = vpack.c.b16 %v723, %v719
        %v760 = vpack.c.b16 %v724, %v720
        %v761 = vpack.c.b16 %v725, %v721
        %v762 = vpack.c.b16 %v726, %v722
        %v763 = vpack.c.b16 %v731, %v727
        %v764 = vpack.c.b16 %v732, %v728
        %v765 = vpack.c.b16 %v733, %v729
        %v766 = vpack.c.b16 %v734, %v730
        %799 = vmatprep.subr.bf16.mxu0 %v736
        %800 = vmatpush1.bf16.msra.mxu0 %v735
        %801 = vmatprep.subr.bf16.mxu0 %v740
        %802 = vmatpush1.bf16.msra.mxu0 %v739
        %803 = vmatprep.subr.bf16.mxu0 %v744
        %804 = vmatpush1.bf16.msra.mxu0 %v743
        %805 = vmatprep.subr.bf16.mxu0 %v748
        %806 = vmatpush1.bf16.msra.mxu0 %v747
        %807 = vmatprep.subr.bf16.mxu0 %v752
        %808 = vmatpush1.bf16.msra.mxu0 %v751
        %809 = vmatprep.subr.bf16.mxu0 %v756
        %810 = vmatpush1.bf16.msra.mxu0 %v755
        %811 = vmatprep.subr.bf16.mxu0 %v760
        %812 = vmatpush1.bf16.msra.mxu0 %v759
        %813 = vmatprep.subr.bf16.mxu0 %v764
        %814 = vmatpush1.bf16.msra.mxu0 %v763
        %815 = vmatprep.subr.bf16.mxu0 0
        %816 = vmatpush1.bf16.msra.mxu0 0
        %817 = vmatprep.subr.bf16.mxu0 0
        %818 = vmatpush1.bf16.msra.mxu0 0
        %819 = vmatprep.subr.bf16.mxu0 0
        %820 = vmatpush1.bf16.msra.mxu0 0
        %821 = vmatprep.subr.bf16.mxu0 0
        %822 = vmatpush1.bf16.msra.mxu0 0
        %823 = vmatprep.subr.bf16.mxu0 0
        %824 = vmatpush1.bf16.msra.mxu0 0
        %825 = vmatprep.subr.bf16.mxu0 0
        %826 = vmatpush1.bf16.msra.mxu0 0
        %827 = vmatprep.subr.bf16.mxu0 0
        %828 = vmatpush1.bf16.msra.mxu0 0
        %829 = vmatprep.subr.bf16.mxu0 0
        %830 = vmatpush1.bf16.msra.mxu0 0
        %831 = vmatprep.mubr.bf16.mxu0 0
        %832 = vmatmul.mubr.bf16.gmra.mrb[0].mxu0 %v606
        %v833 = vpop.f32.mrb[0].mxu0
        %v834 = vadd.f32 0.0, %v833
        %v835 = vpop.f32.mrb[0].mxu0
        %v836 = vadd.f32 0.0, %v835
        %v837 = vpop.f32.mrb[0].mxu0
        %v838 = vadd.f32 0.0, %v837
        %v839 = vpop.f32.mrb[0].mxu0
        %v840 = vadd.f32 0.0, %v839
        %841 = vdwg.mxu0
        %842 = vmatprep.subr.bf16.mxu0 %v738
        %843 = vmatpush1.bf16.msra.mxu0 %v737
        %844 = vmatprep.subr.bf16.mxu0 %v742
        %845 = vmatpush1.bf16.msra.mxu0 %v741
        %846 = vmatprep.subr.bf16.mxu0 %v746
        %847 = vmatpush1.bf16.msra.mxu0 %v745
        %848 = vmatprep.subr.bf16.mxu0 %v750
        %849 = vmatpush1.bf16.msra.mxu0 %v749
        %850 = vmatprep.subr.bf16.mxu0 %v754
        %851 = vmatpush1.bf16.msra.mxu0 %v753
        %852 = vmatprep.subr.bf16.mxu0 %v758
        %853 = vmatpush1.bf16.msra.mxu0 %v757
        %854 = vmatprep.subr.bf16.mxu0 %v762
        %855 = vmatpush1.bf16.msra.mxu0 %v761
        %856 = vmatprep.subr.bf16.mxu0 %v766
        %857 = vmatpush1.bf16.msra.mxu0 %v765
        %858 = vmatprep.subr.bf16.mxu0 0
        %859 = vmatpush1.bf16.msra.mxu0 0
        %860 = vmatprep.subr.bf16.mxu0 0
        %861 = vmatpush1.bf16.msra.mxu0 0
        %862 = vmatprep.subr.bf16.mxu0 0
        %863 = vmatpush1.bf16.msra.mxu0 0
        %864 = vmatprep.subr.bf16.mxu0 0
        %865 = vmatpush1.bf16.msra.mxu0 0
        %866 = vmatprep.subr.bf16.mxu0 0
        %867 = vmatpush1.bf16.msra.mxu0 0
        %868 = vmatprep.subr.bf16.mxu0 0
        %869 = vmatpush1.bf16.msra.mxu0 0
        %870 = vmatprep.subr.bf16.mxu0 0
        %871 = vmatpush1.bf16.msra.mxu0 0
        %872 = vmatprep.subr.bf16.mxu0 0
        %873 = vmatpush1.bf16.msra.mxu0 0
        %874 = vmatprep.mubr.bf16.mxu0 0
        %875 = vmatmul.mubr.bf16.gmra.mrb[0].mxu0 %v606
        %v876 = vpop.f32.mrb[0].mxu0
        %v877 = vadd.f32 0.0, %v876
        %v878 = vpop.f32.mrb[0].mxu0
        %v879 = vadd.f32 0.0, %v878
        %v880 = vpop.f32.mrb[0].mxu0
        %v881 = vadd.f32 0.0, %v880
        %v882 = vpop.f32.mrb[0].mxu0
        %v883 = vadd.f32 0.0, %v882
        %884 = vdwg.mxu0
        %v885 = vld [vmem:[%s9] sm:$0xff]
        %v886 = vld [vmem:[%s9 + $0x8] sm:$0xff]
        %v887 = vld [vmem:[%s9 + $0x10] sm:$0xff]
        %v888 = vld [vmem:[%s9 + $0x18] sm:$0xff]
        %v889 = vmul.f32 %v834, %v885
        %v890 = vmul.f32 %v836, %v886
        %v891 = vmul.f32 %v838, %v887
        %v892 = vmul.f32 %v840, %v888
        %v893 = vld [vmem:[%s10] sm:$0xff]
        %v894 = vld [vmem:[%s10 + $0x8] sm:$0xff]
        %v895 = vld [vmem:[%s10 + $0x10] sm:$0xff]
        %v896 = vld [vmem:[%s10 + $0x18] sm:$0xff]
        %v897 = vmul.f32 %v877, %v893
        %v898 = vmul.f32 %v879, %v894
        %v899 = vmul.f32 %v881, %v895
        %v900 = vmul.f32 %v883, %v896
        %v901 = vadd.f32 %v889, %v897
        %v902 = vadd.f32 %v890, %v898
        %v903 = vadd.f32 %v891, %v899
        %v904 = vadd.f32 %v892, %v900
        %v905 = vld [vmem:[%s467] sm:$0xff]
        %v906 = vld [vmem:[%s467 + $0x8] sm:$0xff]
        %v907 = vld [vmem:[%s467 + $0x10] sm:$0xff]
        %v908 = vld [vmem:[%s467 + $0x18] sm:$0xff]
        %v909 = vld [vmem:[%s467 + $0x20] sm:$0xff]
        %v910 = vld [vmem:[%s467 + $0x28] sm:$0xff]
        %v911 = vld [vmem:[%s467 + $0x30] sm:$0xff]
        %v912 = vld [vmem:[%s467 + $0x38] sm:$0xff]
        %913 = vst [vmem:[%s558] sm:$0xff] %v905
        %914 = vst [vmem:[%s558 + $0x8] sm:$0xff] %v906
        %915 = vst [vmem:[%s558 + $0x10] sm:$0xff] %v907
        %916 = vst [vmem:[%s558 + $0x18] sm:$0xff] %v908
        %917 = vst [vmem:[%s558 + $0x20] sm:$0xff] %v909
        %918 = vst [vmem:[%s558 + $0x28] sm:$0xff] %v910
        %919 = vst [vmem:[%s558 + $0x30] sm:$0xff] %v911
        %920 = vst [vmem:[%s558 + $0x38] sm:$0xff] %v912
        %s921 = scalar_lea.vmem %s558, %s571 [#allocation13]
        %922 = vst [vmem:[%s921] sm:$0xff] %v902
        %s923 = sadd.s32 %s571, 16
        %s924 = scalar_lea.vmem %s558, %s923 [#allocation13]
        %925 = vst [vmem:[%s924] sm:$0xff] %v904
        %v926 = vld [vmem:[%s558] sm:$0xff]
        %v927 = vld [vmem:[%s558 + $0x8] sm:$0xff]
        %v928 = vld [vmem:[%s558 + $0x10] sm:$0xff]
        %v929 = vld [vmem:[%s558 + $0x18] sm:$0xff]
        %v930 = vpack.c.bf16 %v927, %v926
        %v931 = vpack.c.bf16 %v929, %v928
        %v932 = vlaneseq
        %v933 = vshrl.u32 %v932, 7
        %v934 = vlaneseq
        %v935 = vand.u32 %v934, 127
        %v936 = vstv %s571
        %v937 = vadd.s32 %v933, %v936
        %vm938 = vcmp.le.s32.totalorder %v935, %v937
        %v939 = vsel %vm938, 0.0, -1e+30
        %v940 = vpack.c.bf16 %v901, %v901
        %v941 = vpack.c.bf16 %v903, %v903
        %vm942 = vcmask 261120
        %v944 = vsel %vm942, %v940, 0
        %v947 = vsel %vm942, %v930, 0
        %949 = vmatprep.subr.bf16.mxu0 0
        %950 = vmatpush1.bf16.xpose.msra.mxu0 %v947
        %951 = vmatprep.subr.bf16.mxu0 0
        %952 = vmatpush1.bf16.xpose.msra.mxu0 0
        %953 = vmatprep.subr.bf16.mxu0 0
        %954 = vmatpush1.bf16.xpose.msra.mxu0 0
        %955 = vmatprep.subr.bf16.mxu0 0
        %956 = vmatpush1.bf16.xpose.msra.mxu0 0
        %957 = vmatprep.subr.bf16.mxu0 0
        %958 = vmatpush1.bf16.xpose.msra.mxu0 0
        %959 = vmatprep.subr.bf16.mxu0 0
        %960 = vmatpush1.bf16.xpose.msra.mxu0 0
        %961 = vmatprep.subr.bf16.mxu0 0
        %962 = vmatpush1.bf16.xpose.msra.mxu0 0
        %963 = vmatprep.subr.bf16.mxu0 0
        %964 = vmatpush1.bf16.xpose.msra.mxu0 0
        %965 = vmatprep.subr.bf16.mxu0 0
        %966 = vmatpush1.bf16.xpose.msra.mxu0 0
        %967 = vmatprep.subr.bf16.mxu0 0
        %968 = vmatpush1.bf16.xpose.msra.mxu0 0
        %969 = vmatprep.subr.bf16.mxu0 0
        %970 = vmatpush1.bf16.xpose.msra.mxu0 0
        %971 = vmatprep.subr.bf16.mxu0 0
        %972 = vmatpush1.bf16.xpose.msra.mxu0 0
        %973 = vmatprep.subr.bf16.mxu0 0
        %974 = vmatpush1.bf16.xpose.msra.mxu0 0
        %975 = vmatprep.subr.bf16.mxu0 0
        %976 = vmatpush1.bf16.xpose.msra.mxu0 0
        %977 = vmatprep.subr.bf16.mxu0 0
        %978 = vmatpush1.bf16.xpose.msra.mxu0 0
        %979 = vmatprep.subr.bf16.mxu0 0
        %980 = vmatpush1.bf16.xpose.msra.mxu0 0
        %981 = vmatprep.mubr.bf16.mxu0 0
        %982 = vmatmul.mubr.bf16.gmra.mrb[0].mxu0 %v944
        %v983 = vpop.f32.mrb[0].mxu0
        %v984 = vadd.f32 0.0, %v983
        %v985 = vpop.f32.mrb[0].mxu0
        %v986 = vpop.f32.mrb[0].mxu0
        %v987 = vpop.f32.mrb[0].mxu0
        %988 = vdwg.mxu0
        %v990 = vsel %vm942, %v941, 0
        %v993 = vsel %vm942, %v931, 0
        %995 = vmatprep.subr.bf16.mxu0 0
        %996 = vmatpush1.bf16.xpose.msra.mxu0 %v993
        %997 = vmatprep.subr.bf16.mxu0 0
        %998 = vmatpush1.bf16.xpose.msra.mxu0 0
        %999 = vmatprep.subr.bf16.mxu0 0
        %1000 = vmatpush1.bf16.xpose.msra.mxu0 0
        %1001 = vmatprep.subr.bf16.mxu0 0
        %1002 = vmatpush1.bf16.xpose.msra.mxu0 0
        %1003 = vmatprep.subr.bf16.mxu0 0
        %1004 = vmatpush1.bf16.xpose.msra.mxu0 0
        %1005 = vmatprep.subr.bf16.mxu0 0
        %1006 = vmatpush1.bf16.xpose.msra.mxu0 0
        %1007 = vmatprep.subr.bf16.mxu0 0
        %1008 = vmatpush1.bf16.xpose.msra.mxu0 0
        %1009 = vmatprep.subr.bf16.mxu0 0
        %1010 = vmatpush1.bf16.xpose.msra.mxu0 0
        %1011 = vmatprep.subr.bf16.mxu0 0
        %1012 = vmatpush1.bf16.xpose.msra.mxu0 0
        %1013 = vmatprep.subr.bf16.mxu0 0
        %1014 = vmatpush1.bf16.xpose.msra.mxu0 0
        %1015 = vmatprep.subr.bf16.mxu0 0
        %1016 = vmatpush1.bf16.xpose.msra.mxu0 0
        %1017 = vmatprep.subr.bf16.mxu0 0
        %1018 = vmatpush1.bf16.xpose.msra.mxu0 0
        %1019 = vmatprep.subr.bf16.mxu0 0
        %1020 = vmatpush1.bf16.xpose.msra.mxu0 0
        %1021 = vmatprep.subr.bf16.mxu0 0
        %1022 = vmatpush1.bf16.xpose.msra.mxu0 0
        %1023 = vmatprep.subr.bf16.mxu0 0
        %1024 = vmatpush1.bf16.xpose.msra.mxu0 0
        %1025 = vmatprep.subr.bf16.mxu0 0
        %1026 = vmatpush1.bf16.xpose.msra.mxu0 0
        %1027 = vmatprep.mubr.bf16.mxu0 0
        %1028 = vmatmul.mubr.bf16.gmra.mrb[0].mxu0 %v990
        %v1029 = vpop.f32.mrb[0].mxu0
        %v1030 = vadd.f32 0.0, %v1029
        %v1031 = vpop.f32.mrb[0].mxu0
        %v1032 = vpop.f32.mrb[0].mxu0
        %v1033 = vpop.f32.mrb[0].mxu0
        %1034 = vdwg.mxu0
        %v1035 = vmul.f32 %v984, 0.17677669
        %v1036 = vmul.f32 %v1030, 0.17677669
        %v1037 = vadd.f32 %v1035, %v939
        %v1038 = vadd.f32 %v1036, %v939
        %vm1039 = vcmask 130048
        %v1040 = vsel %vm1039, %v1037, -inf
        %1041 = vmax.xlane.f32.xlu0 %v1040
        %v1042 = vpop.xlane.xlu0 %1041
        %v1043 = vsel %vm1039, %v1038, -inf
        %1044 = vmax.xlane.f32.xlu0 %v1043
        %v1045 = vpop.xlane.xlu0 %1044
        %v1046 = vsub.f32 %v1037, %v1042
        %v1047 = vsub.f32 %v1038, %v1045
        %v1048 = vmul.f32 %v1046, 1.442695
        %v1049 = vpow.pop %v1048
        %v1050 = vmul.f32 %v1047, 1.442695
        %v1051 = vpow.pop %v1050
        %v1052 = vsel %vm1039, %v1049, 0.0
        %1053 = vadd.xlane.f32.xlu0 %v1052
        %v1054 = vpop.xlane.xlu0 %1053
        %v1055 = vsel %vm1039, %v1051, 0.0
        %1056 = vadd.xlane.f32.xlu0 %v1055
        %v1057 = vpop.xlane.xlu0 %1056
        %v1058 = vrcp.pop %v1054
        %v1059 = vrcp.pop %v1057
        %v1060 = vmul.f32 %v1049, %v1058
        %v1061 = vmul.f32 %v1051, %v1059
        %v1062 = vpack.c.bf16 %v1060, %v1060
        %v1063 = vpack.c.bf16 %v1061, %v1061
        %1065 = vrot.lane.b32.xlu0 %v930, 64
        %v1066 = vpop.permute.xlu0 %1065
        %v1069 = vsel %vm1039, %v1062, 0
        %1071 = vmatprep.subr.bf16.mxu0 0
        %1072 = vmatpush1.bf16.msra.mxu0 %v1066
        %1073 = vmatprep.subr.bf16.mxu0 0
        %1074 = vmatpush1.bf16.msra.mxu0 0
        %1075 = vmatprep.subr.bf16.mxu0 0
        %1076 = vmatpush1.bf16.msra.mxu0 0
        %1077 = vmatprep.subr.bf16.mxu0 0
        %1078 = vmatpush1.bf16.msra.mxu0 0
        %1079 = vmatprep.subr.bf16.mxu0 0
        %1080 = vmatpush1.bf16.msra.mxu0 0
        %1081 = vmatprep.subr.bf16.mxu0 0
        %1082 = vmatpush1.bf16.msra.mxu0 0
        %1083 = vmatprep.subr.bf16.mxu0 0
        %1084 = vmatpush1.bf16.msra.mxu0 0
        %1085 = vmatprep.subr.bf16.mxu0 0
        %1086 = vmatpush1.bf16.msra.mxu0 0
        %1087 = vmatprep.subr.bf16.mxu0 0
        %1088 = vmatpush1.bf16.msra.mxu0 0
        %1089 = vmatprep.subr.bf16.mxu0 0
        %1090 = vmatpush1.bf16.msra.mxu0 0
        %1091 = vmatprep.subr.bf16.mxu0 0
        %1092 = vmatpush1.bf16.msra.mxu0 0
        %1093 = vmatprep.subr.bf16.mxu0 0
        %1094 = vmatpush1.bf16.msra.mxu0 0
        %1095 = vmatprep.subr.bf16.mxu0 0
        %1096 = vmatpush1.bf16.msra.mxu0 0
        %1097 = vmatprep.subr.bf16.mxu0 0
        %1098 = vmatpush1.bf16.msra.mxu0 0
        %1099 = vmatprep.subr.bf16.mxu0 0
        %1100 = vmatpush1.bf16.msra.mxu0 0
        %1101 = vmatprep.subr.bf16.mxu0 0
        %1102 = vmatpush1.bf16.msra.mxu0 0
        %1103 = vmatprep.mubr.bf16.mxu0 0
        %1104 = vmatmul.mubr.bf16.gmra.mrb[0].mxu0 %v1069
        %v1105 = vpop.f32.mrb[0].mxu0
        %v1106 = vadd.f32 0.0, %v1105
        %v1107 = vpop.f32.mrb[0].mxu0
        %v1108 = vpop.f32.mrb[0].mxu0
        %v1109 = vpop.f32.mrb[0].mxu0
        %1110 = vdwg.mxu0
        %1112 = vrot.lane.b32.xlu0 %v931, 64
        %v1113 = vpop.permute.xlu0 %1112
        %v1116 = vsel %vm1039, %v1063, 0
        %1118 = vmatprep.subr.bf16.mxu0 0
        %1119 = vmatpush1.bf16.msra.mxu0 %v1113
        %1120 = vmatprep.subr.bf16.mxu0 0
        %1121 = vmatpush1.bf16.msra.mxu0 0
        %1122 = vmatprep.subr.bf16.mxu0 0
        %1123 = vmatpush1.bf16.msra.mxu0 0
        %1124 = vmatprep.subr.bf16.mxu0 0
        %1125 = vmatpush1.bf16.msra.mxu0 0
        %1126 = vmatprep.subr.bf16.mxu0 0
        %1127 = vmatpush1.bf16.msra.mxu0 0
        %1128 = vmatprep.subr.bf16.mxu0 0
        %1129 = vmatpush1.bf16.msra.mxu0 0
        %1130 = vmatprep.subr.bf16.mxu0 0
        %1131 = vmatpush1.bf16.msra.mxu0 0
        %1132 = vmatprep.subr.bf16.mxu0 0
        %1133 = vmatpush1.bf16.msra.mxu0 0
        %1134 = vmatprep.subr.bf16.mxu0 0
        %1135 = vmatpush1.bf16.msra.mxu0 0
        %1136 = vmatprep.subr.bf16.mxu0 0
        %1137 = vmatpush1.bf16.msra.mxu0 0
        %1138 = vmatprep.subr.bf16.mxu0 0
        %1139 = vmatpush1.bf16.msra.mxu0 0
        %1140 = vmatprep.subr.bf16.mxu0 0
        %1141 = vmatpush1.bf16.msra.mxu0 0
        %1142 = vmatprep.subr.bf16.mxu0 0
        %1143 = vmatpush1.bf16.msra.mxu0 0
        %1144 = vmatprep.subr.bf16.mxu0 0
        %1145 = vmatpush1.bf16.msra.mxu0 0
        %1146 = vmatprep.subr.bf16.mxu0 0
        %1147 = vmatpush1.bf16.msra.mxu0 0
        %1148 = vmatprep.subr.bf16.mxu0 0
        %1149 = vmatpush1.bf16.msra.mxu0 0
        %1150 = vmatprep.mubr.bf16.mxu0 0
        %1151 = vmatmul.mubr.bf16.gmra.mrb[0].mxu0 %v1116
        %v1152 = vpop.f32.mrb[0].mxu0
        %v1153 = vadd.f32 0.0, %v1152
        %v1154 = vpop.f32.mrb[0].mxu0
        %v1155 = vpop.f32.mrb[0].mxu0
        %v1156 = vpop.f32.mrb[0].mxu0
        %1157 = vdwg.mxu0
        %1158 = vst.msk [vmem:[#allocation2] sm:$0xff] %vm942, %v1106
        %1159 = vst.msk [vmem:[#allocation2 + $0x8] sm:$0xff] %vm942, %v1153
        %1161 = vrot.lane.b32.xlu0 %v940, 96
        %v1162 = vpop.permute.xlu0 %1161
        %v1164 = vsel %vm942, %v1162, 0
        %1166 = vmatprep.subr.bf16.mxu0 0
        %1167 = vmatpush1.bf16.xpose.msra.mxu0 %v947
        %1168 = vmatprep.subr.bf16.mxu0 0
        %1169 = vmatpush1.bf16.xpose.msra.mxu0 0
        %1170 = vmatprep.subr.bf16.mxu0 0
        %1171 = vmatpush1.bf16.xpose.msra.mxu0 0
        %1172 = vmatprep.subr.bf16.mxu0 0
        %1173 = vmatpush1.bf16.xpose.msra.mxu0 0
        %1174 = vmatprep.subr.bf16.mxu0 0
        %1175 = vmatpush1.bf16.xpose.msra.mxu0 0
        %1176 = vmatprep.subr.bf16.mxu0 0
        %1177 = vmatpush1.bf16.xpose.msra.mxu0 0
        %1178 = vmatprep.subr.bf16.mxu0 0
        %1179 = vmatpush1.bf16.xpose.msra.mxu0 0
        %1180 = vmatprep.subr.bf16.mxu0 0
        %1181 = vmatpush1.bf16.xpose.msra.mxu0 0
        %1182 = vmatprep.subr.bf16.mxu0 0
        %1183 = vmatpush1.bf16.xpose.msra.mxu0 0
        %1184 = vmatprep.subr.bf16.mxu0 0
        %1185 = vmatpush1.bf16.xpose.msra.mxu0 0
        %1186 = vmatprep.subr.bf16.mxu0 0
        %1187 = vmatpush1.bf16.xpose.msra.mxu0 0
        %1188 = vmatprep.subr.bf16.mxu0 0
        %1189 = vmatpush1.bf16.xpose.msra.mxu0 0
        %1190 = vmatprep.subr.bf16.mxu0 0
        %1191 = vmatpush1.bf16.xpose.msra.mxu0 0
        %1192 = vmatprep.subr.bf16.mxu0 0
        %1193 = vmatpush1.bf16.xpose.msra.mxu0 0
        %1194 = vmatprep.subr.bf16.mxu0 0
        %1195 = vmatpush1.bf16.xpose.msra.mxu0 0
        %1196 = vmatprep.subr.bf16.mxu0 0
        %1197 = vmatpush1.bf16.xpose.msra.mxu0 0
        %1198 = vmatprep.mubr.bf16.mxu0 0
        %1199 = vmatmul.mubr.bf16.gmra.mrb[0].mxu0 %v1164
        %v1200 = vpop.f32.mrb[0].mxu0
        %v1201 = vadd.f32 0.0, %v1200
        %v1202 = vpop.f32.mrb[0].mxu0
        %v1203 = vpop.f32.mrb[0].mxu0
        %v1204 = vpop.f32.mrb[0].mxu0
        %1205 = vdwg.mxu0
        %1207 = vrot.lane.b32.xlu0 %v941, 96
        %v1208 = vpop.permute.xlu0 %1207
        %v1210 = vsel %vm942, %v1208, 0
        %1212 = vmatprep.subr.bf16.mxu0 0
        %1213 = vmatpush1.bf16.xpose.msra.mxu0 %v993
        %1214 = vmatprep.subr.bf16.mxu0 0
        %1215 = vmatpush1.bf16.xpose.msra.mxu0 0
        %1216 = vmatprep.subr.bf16.mxu0 0
        %1217 = vmatpush1.bf16.xpose.msra.mxu0 0
        %1218 = vmatprep.subr.bf16.mxu0 0
        %1219 = vmatpush1.bf16.xpose.msra.mxu0 0
        %1220 = vmatprep.subr.bf16.mxu0 0
        %1221 = vmatpush1.bf16.xpose.msra.mxu0 0
        %1222 = vmatprep.subr.bf16.mxu0 0
        %1223 = vmatpush1.bf16.xpose.msra.mxu0 0
        %1224 = vmatprep.subr.bf16.mxu0 0
        %1225 = vmatpush1.bf16.xpose.msra.mxu0 0
        %1226 = vmatprep.subr.bf16.mxu0 0
        %1227 = vmatpush1.bf16.xpose.msra.mxu0 0
        %1228 = vmatprep.subr.bf16.mxu0 0
        %1229 = vmatpush1.bf16.xpose.msra.mxu0 0
        %1230 = vmatprep.subr.bf16.mxu0 0
        %1231 = vmatpush1.bf16.xpose.msra.mxu0 0
        %1232 = vmatprep.subr.bf16.mxu0 0
        %1233 = vmatpush1.bf16.xpose.msra.mxu0 0
        %1234 = vmatprep.subr.bf16.mxu0 0
        %1235 = vmatpush1.bf16.xpose.msra.mxu0 0
        %1236 = vmatprep.subr.bf16.mxu0 0
        %1237 = vmatpush1.bf16.xpose.msra.mxu0 0
        %1238 = vmatprep.subr.bf16.mxu0 0
        %1239 = vmatpush1.bf16.xpose.msra.mxu0 0
        %1240 = vmatprep.subr.bf16.mxu0 0
        %1241 = vmatpush1.bf16.xpose.msra.mxu0 0
        %1242 = vmatprep.subr.bf16.mxu0 0
        %1243 = vmatpush1.bf16.xpose.msra.mxu0 0
        %1244 = vmatprep.mubr.bf16.mxu0 0
        %1245 = vmatmul.mubr.bf16.gmra.mrb[0].mxu0 %v1210
        %v1246 = vpop.f32.mrb[0].mxu0
        %v1247 = vadd.f32 0.0, %v1246
        %v1248 = vpop.f32.mrb[0].mxu0
        %v1249 = vpop.f32.mrb[0].mxu0
        %v1250 = vpop.f32.mrb[0].mxu0
        %1251 = vdwg.mxu0
        %v1252 = vmul.f32 %v1201, 0.17677669
        %v1253 = vmul.f32 %v1247, 0.17677669
        %v1254 = vadd.f32 %v1252, %v939
        %v1255 = vadd.f32 %v1253, %v939
        %v1256 = vsel %vm1039, %v1254, -inf
        %1257 = vmax.xlane.f32.xlu0 %v1256
        %v1258 = vpop.xlane.xlu0 %1257
        %v1259 = vsel %vm1039, %v1255, -inf
        %1260 = vmax.xlane.f32.xlu0 %v1259
        %v1261 = vpop.xlane.xlu0 %1260
        %v1262 = vsub.f32 %v1254, %v1258
        %v1263 = vsub.f32 %v1255, %v1261
        %v1264 = vmul.f32 %v1262, 1.442695
        %v1265 = vpow.pop %v1264
        %v1266 = vmul.f32 %v1263, 1.442695
        %v1267 = vpow.pop %v1266
        %v1268 = vsel %vm1039, %v1265, 0.0
        %1269 = vadd.xlane.f32.xlu0 %v1268
        %v1270 = vpop.xlane.xlu0 %1269
        %v1271 = vsel %vm1039, %v1267, 0.0
        %1272 = vadd.xlane.f32.xlu0 %v1271
        %v1273 = vpop.xlane.xlu0 %1272
        %v1274 = vrcp.pop %v1270
        %v1275 = vrcp.pop %v1273
        %v1276 = vmul.f32 %v1265, %v1274
        %v1277 = vmul.f32 %v1267, %v1275
        %v1278 = vpack.c.bf16 %v1276, %v1276
        %v1279 = vpack.c.bf16 %v1277, %v1277
        %v1281 = vsel %vm1039, %v1278, 0
        %1283 = vmatprep.subr.bf16.mxu0 0
        %1284 = vmatpush1.bf16.msra.mxu0 %v1066
        %1285 = vmatprep.subr.bf16.mxu0 0
        %1286 = vmatpush1.bf16.msra.mxu0 0
        %1287 = vmatprep.subr.bf16.mxu0 0
        %1288 = vmatpush1.bf16.msra.mxu0 0
        %1289 = vmatprep.subr.bf16.mxu0 0
        %1290 = vmatpush1.bf16.msra.mxu0 0
        %1291 = vmatprep.subr.bf16.mxu0 0
        %1292 = vmatpush1.bf16.msra.mxu0 0
        %1293 = vmatprep.subr.bf16.mxu0 0
        %1294 = vmatpush1.bf16.msra.mxu0 0
        %1295 = vmatprep.subr.bf16.mxu0 0
        %1296 = vmatpush1.bf16.msra.mxu0 0
        %1297 = vmatprep.subr.bf16.mxu0 0
        %1298 = vmatpush1.bf16.msra.mxu0 0
        %1299 = vmatprep.subr.bf16.mxu0 0
        %1300 = vmatpush1.bf16.msra.mxu0 0
        %1301 = vmatprep.subr.bf16.mxu0 0
        %1302 = vmatpush1.bf16.msra.mxu0 0
        %1303 = vmatprep.subr.bf16.mxu0 0
        %1304 = vmatpush1.bf16.msra.mxu0 0
        %1305 = vmatprep.subr.bf16.mxu0 0
        %1306 = vmatpush1.bf16.msra.mxu0 0
        %1307 = vmatprep.subr.bf16.mxu0 0
        %1308 = vmatpush1.bf16.msra.mxu0 0
        %1309 = vmatprep.subr.bf16.mxu0 0
        %1310 = vmatpush1.bf16.msra.mxu0 0
        %1311 = vmatprep.subr.bf16.mxu0 0
        %1312 = vmatpush1.bf16.msra.mxu0 0
        %1313 = vmatprep.subr.bf16.mxu0 0
        %1314 = vmatpush1.bf16.msra.mxu0 0
        %1315 = vmatprep.mubr.bf16.mxu0 0
        %1316 = vmatmul.mubr.bf16.gmra.mrb[0].mxu0 %v1281
        %v1317 = vpop.f32.mrb[0].mxu0
        %v1318 = vadd.f32 0.0, %v1317
        %v1319 = vpop.f32.mrb[0].mxu0
        %v1320 = vpop.f32.mrb[0].mxu0
        %v1321 = vpop.f32.mrb[0].mxu0
        %1322 = vdwg.mxu0
        %v1324 = vsel %vm1039, %v1279, 0
        %1326 = vmatprep.subr.bf16.mxu0 0
        %1327 = vmatpush1.bf16.msra.mxu0 %v1113
        %1328 = vmatprep.subr.bf16.mxu0 0
        %1329 = vmatpush1.bf16.msra.mxu0 0
        %1330 = vmatprep.subr.bf16.mxu0 0
        %1331 = vmatpush1.bf16.msra.mxu0 0
        %1332 = vmatprep.subr.bf16.mxu0 0
        %1333 = vmatpush1.bf16.msra.mxu0 0
        %1334 = vmatprep.subr.bf16.mxu0 0
        %1335 = vmatpush1.bf16.msra.mxu0 0
        %1336 = vmatprep.subr.bf16.mxu0 0
        %1337 = vmatpush1.bf16.msra.mxu0 0
        %1338 = vmatprep.subr.bf16.mxu0 0
        %1339 = vmatpush1.bf16.msra.mxu0 0
        %1340 = vmatprep.subr.bf16.mxu0 0
        %1341 = vmatpush1.bf16.msra.mxu0 0
        %1342 = vmatprep.subr.bf16.mxu0 0
        %1343 = vmatpush1.bf16.msra.mxu0 0
        %1344 = vmatprep.subr.bf16.mxu0 0
        %1345 = vmatpush1.bf16.msra.mxu0 0
        %1346 = vmatprep.subr.bf16.mxu0 0
        %1347 = vmatpush1.bf16.msra.mxu0 0
        %1348 = vmatprep.subr.bf16.mxu0 0
        %1349 = vmatpush1.bf16.msra.mxu0 0
        %1350 = vmatprep.subr.bf16.mxu0 0
        %1351 = vmatpush1.bf16.msra.mxu0 0
        %1352 = vmatprep.subr.bf16.mxu0 0
        %1353 = vmatpush1.bf16.msra.mxu0 0
        %1354 = vmatprep.subr.bf16.mxu0 0
        %1355 = vmatpush1.bf16.msra.mxu0 0
        %1356 = vmatprep.subr.bf16.mxu0 0
        %1357 = vmatpush1.bf16.msra.mxu0 0
        %1358 = vmatprep.mubr.bf16.mxu0 0
        %1359 = vmatmul.mubr.bf16.gmra.mrb[0].mxu0 %v1324
        %v1360 = vpop.f32.mrb[0].mxu0
        %v1361 = vadd.f32 0.0, %v1360
        %v1362 = vpop.f32.mrb[0].mxu0
        %v1363 = vpop.f32.mrb[0].mxu0
        %v1364 = vpop.f32.mrb[0].mxu0
        %1365 = vdwg.mxu0
        %1368 = vrot.lane.b32.xlu0 %v1318, 32
        %v1369 = vpop.permute.xlu0 %1368
        %1370 = vrot.lane.b32.xlu0 %v1361, 32
        %v1371 = vpop.permute.xlu0 %1370
        %vm1374 = vcmask 523520
        %1375 = vst.msk [vmem:[#allocation2] sm:$0xff] %vm1374, %v1369
        %1376 = vst.msk [vmem:[#allocation2 + $0x8] sm:$0xff] %vm1374, %v1371
        %1377 = vrot.lane.b32.xlu0 %v940, 64
        %v1378 = vpop.permute.xlu0 %1377
        %1379 = vrot.lane.b32.xlu0 %v930, 96
        %v1380 = vpop.permute.xlu0 %1379
        %v1382 = vsel %vm942, %v1378, 0
        %v1385 = vsel %vm942, %v1380, 0
        %1387 = vmatprep.subr.bf16.mxu0 0
        %1388 = vmatpush1.bf16.xpose.msra.mxu0 %v1385
        %1389 = vmatprep.subr.bf16.mxu0 0
        %1390 = vmatpush1.bf16.xpose.msra.mxu0 0
        %1391 = vmatprep.subr.bf16.mxu0 0
        %1392 = vmatpush1.bf16.xpose.msra.mxu0 0
        %1393 = vmatprep.subr.bf16.mxu0 0
        %1394 = vmatpush1.bf16.xpose.msra.mxu0 0
        %1395 = vmatprep.subr.bf16.mxu0 0
        %1396 = vmatpush1.bf16.xpose.msra.mxu0 0
        %1397 = vmatprep.subr.bf16.mxu0 0
        %1398 = vmatpush1.bf16.xpose.msra.mxu0 0
        %1399 = vmatprep.subr.bf16.mxu0 0
        %1400 = vmatpush1.bf16.xpose.msra.mxu0 0
        %1401 = vmatprep.subr.bf16.mxu0 0
        %1402 = vmatpush1.bf16.xpose.msra.mxu0 0
        %1403 = vmatprep.subr.bf16.mxu0 0
        %1404 = vmatpush1.bf16.xpose.msra.mxu0 0
        %1405 = vmatprep.subr.bf16.mxu0 0
        %1406 = vmatpush1.bf16.xpose.msra.mxu0 0
        %1407 = vmatprep.subr.bf16.mxu0 0
        %1408 = vmatpush1.bf16.xpose.msra.mxu0 0
        %1409 = vmatprep.subr.bf16.mxu0 0
        %1410 = vmatpush1.bf16.xpose.msra.mxu0 0
        %1411 = vmatprep.subr.bf16.mxu0 0
        %1412 = vmatpush1.bf16.xpose.msra.mxu0 0
        %1413 = vmatprep.subr.bf16.mxu0 0
        %1414 = vmatpush1.bf16.xpose.msra.mxu0 0
        %1415 = vmatprep.subr.bf16.mxu0 0
        %1416 = vmatpush1.bf16.xpose.msra.mxu0 0
        %1417 = vmatprep.subr.bf16.mxu0 0
        %1418 = vmatpush1.bf16.xpose.msra.mxu0 0
        %1419 = vmatprep.mubr.bf16.mxu0 0
        %1420 = vmatmul.mubr.bf16.gmra.mrb[0].mxu0 %v1382
        %v1421 = vpop.f32.mrb[0].mxu0
        %v1422 = vadd.f32 0.0, %v1421
        %v1423 = vpop.f32.mrb[0].mxu0
        %v1424 = vpop.f32.mrb[0].mxu0
        %v1425 = vpop.f32.mrb[0].mxu0
        %1426 = vdwg.mxu0
        %1427 = vrot.lane.b32.xlu0 %v941, 64
        %v1428 = vpop.permute.xlu0 %1427
        %1429 = vrot.lane.b32.xlu0 %v931, 96
        %v1430 = vpop.permute.xlu0 %1429
        %v1432 = vsel %vm942, %v1428, 0
        %v1435 = vsel %vm942, %v1430, 0
        %1437 = vmatprep.subr.bf16.mxu0 0
        %1438 = vmatpush1.bf16.xpose.msra.mxu0 %v1435
        %1439 = vmatprep.subr.bf16.mxu0 0
        %1440 = vmatpush1.bf16.xpose.msra.mxu0 0
        %1441 = vmatprep.subr.bf16.mxu0 0
        %1442 = vmatpush1.bf16.xpose.msra.mxu0 0
        %1443 = vmatprep.subr.bf16.mxu0 0
        %1444 = vmatpush1.bf16.xpose.msra.mxu0 0
        %1445 = vmatprep.subr.bf16.mxu0 0
        %1446 = vmatpush1.bf16.xpose.msra.mxu0 0
        %1447 = vmatprep.subr.bf16.mxu0 0
        %1448 = vmatpush1.bf16.xpose.msra.mxu0 0
        %1449 = vmatprep.subr.bf16.mxu0 0
        %1450 = vmatpush1.bf16.xpose.msra.mxu0 0
        %1451 = vmatprep.subr.bf16.mxu0 0
        %1452 = vmatpush1.bf16.xpose.msra.mxu0 0
        %1453 = vmatprep.subr.bf16.mxu0 0
        %1454 = vmatpush1.bf16.xpose.msra.mxu0 0
        %1455 = vmatprep.subr.bf16.mxu0 0
        %1456 = vmatpush1.bf16.xpose.msra.mxu0 0
        %1457 = vmatprep.subr.bf16.mxu0 0
        %1458 = vmatpush1.bf16.xpose.msra.mxu0 0
        %1459 = vmatprep.subr.bf16.mxu0 0
        %1460 = vmatpush1.bf16.xpose.msra.mxu0 0
        %1461 = vmatprep.subr.bf16.mxu0 0
        %1462 = vmatpush1.bf16.xpose.msra.mxu0 0
        %1463 = vmatprep.subr.bf16.mxu0 0
        %1464 = vmatpush1.bf16.xpose.msra.mxu0 0
        %1465 = vmatprep.subr.bf16.mxu0 0
        %1466 = vmatpush1.bf16.xpose.msra.mxu0 0
        %1467 = vmatprep.subr.bf16.mxu0 0
        %1468 = vmatpush1.bf16.xpose.msra.mxu0 0
        %1469 = vmatprep.mubr.bf16.mxu0 0
        %1470 = vmatmul.mubr.bf16.gmra.mrb[0].mxu0 %v1432
        %v1471 = vpop.f32.mrb[0].mxu0
        %v1472 = vadd.f32 0.0, %v1471
        %v1473 = vpop.f32.mrb[0].mxu0
        %v1474 = vpop.f32.mrb[0].mxu0
        %v1475 = vpop.f32.mrb[0].mxu0
        %1476 = vdwg.mxu0
        %v1477 = vmul.f32 %v1422, 0.17677669
        %v1478 = vmul.f32 %v1472, 0.17677669
        %v1479 = vadd.f32 %v1477, %v939
        %v1480 = vadd.f32 %v1478, %v939
        %v1481 = vsel %vm1039, %v1479, -inf
        %1482 = vmax.xlane.f32.xlu0 %v1481
        %v1483 = vpop.xlane.xlu0 %1482
        %v1484 = vsel %vm1039, %v1480, -inf
        %1485 = vmax.xlane.f32.xlu0 %v1484
        %v1486 = vpop.xlane.xlu0 %1485
        %v1487 = vsub.f32 %v1479, %v1483
        %v1488 = vsub.f32 %v1480, %v1486
        %v1489 = vmul.f32 %v1487, 1.442695
        %v1490 = vpow.pop %v1489
        %v1491 = vmul.f32 %v1488, 1.442695
        %v1492 = vpow.pop %v1491
        %v1493 = vsel %vm1039, %v1490, 0.0
        %1494 = vadd.xlane.f32.xlu0 %v1493
        %v1495 = vpop.xlane.xlu0 %1494
        %v1496 = vsel %vm1039, %v1492, 0.0
        %1497 = vadd.xlane.f32.xlu0 %v1496
        %v1498 = vpop.xlane.xlu0 %1497
        %v1499 = vrcp.pop %v1495
        %v1500 = vrcp.pop %v1498
        %v1501 = vmul.f32 %v1490, %v1499
        %v1502 = vmul.f32 %v1492, %v1500
        %v1503 = vpack.c.bf16 %v1501, %v1501
        %v1504 = vpack.c.bf16 %v1502, %v1502
        %1505 = vrot.lane.b32.xlu0 %v930, 32
        %v1506 = vpop.permute.xlu0 %1505
        %v1509 = vsel %vm1039, %v1503, 0
        %1511 = vmatprep.subr.bf16.mxu0 0
        %1512 = vmatpush1.bf16.msra.mxu0 %v1506
        %1513 = vmatprep.subr.bf16.mxu0 0
        %1514 = vmatpush1.bf16.msra.mxu0 0
        %1515 = vmatprep.subr.bf16.mxu0 0
        %1516 = vmatpush1.bf16.msra.mxu0 0
        %1517 = vmatprep.subr.bf16.mxu0 0
        %1518 = vmatpush1.bf16.msra.mxu0 0
        %1519 = vmatprep.subr.bf16.mxu0 0
        %1520 = vmatpush1.bf16.msra.mxu0 0
        %1521 = vmatprep.subr.bf16.mxu0 0
        %1522 = vmatpush1.bf16.msra.mxu0 0
        %1523 = vmatprep.subr.bf16.mxu0 0
        %1524 = vmatpush1.bf16.msra.mxu0 0
        %1525 = vmatprep.subr.bf16.mxu0 0
        %1526 = vmatpush1.bf16.msra.mxu0 0
        %1527 = vmatprep.subr.bf16.mxu0 0
        %1528 = vmatpush1.bf16.msra.mxu0 0
        %1529 = vmatprep.subr.bf16.mxu0 0
        %1530 = vmatpush1.bf16.msra.mxu0 0
        %1531 = vmatprep.subr.bf16.mxu0 0
        %1532 = vmatpush1.bf16.msra.mxu0 0
        %1533 = vmatprep.subr.bf16.mxu0 0
        %1534 = vmatpush1.bf16.msra.mxu0 0
        %1535 = vmatprep.subr.bf16.mxu0 0
        %1536 = vmatpush1.bf16.msra.mxu0 0
        %1537 = vmatprep.subr.bf16.mxu0 0
        %1538 = vmatpush1.bf16.msra.mxu0 0
        %1539 = vmatprep.subr.bf16.mxu0 0
        %1540 = vmatpush1.bf16.msra.mxu0 0
        %1541 = vmatprep.subr.bf16.mxu0 0
        %1542 = vmatpush1.bf16.msra.mxu0 0
        %1543 = vmatprep.mubr.bf16.mxu0 0
        %1544 = vmatmul.mubr.bf16.gmra.mrb[0].mxu0 %v1509
        %v1545 = vpop.f32.mrb[0].mxu0
        %v1546 = vadd.f32 0.0, %v1545
        %v1547 = vpop.f32.mrb[0].mxu0
        %v1548 = vpop.f32.mrb[0].mxu0
        %v1549 = vpop.f32.mrb[0].mxu0
        %1550 = vdwg.mxu0
        %1551 = vrot.lane.b32.xlu0 %v931, 32
        %v1552 = vpop.permute.xlu0 %1551
        %v1555 = vsel %vm1039, %v1504, 0
        %1557 = vmatprep.subr.bf16.mxu0 0
        %1558 = vmatpush1.bf16.msra.mxu0 %v1552
        %1559 = vmatprep.subr.bf16.mxu0 0
        %1560 = vmatpush1.bf16.msra.mxu0 0
        %1561 = vmatprep.subr.bf16.mxu0 0
        %1562 = vmatpush1.bf16.msra.mxu0 0
        %1563 = vmatprep.subr.bf16.mxu0 0
        %1564 = vmatpush1.bf16.msra.mxu0 0
        %1565 = vmatprep.subr.bf16.mxu0 0
        %1566 = vmatpush1.bf16.msra.mxu0 0
        %1567 = vmatprep.subr.bf16.mxu0 0
        %1568 = vmatpush1.bf16.msra.mxu0 0
        %1569 = vmatprep.subr.bf16.mxu0 0
        %1570 = vmatpush1.bf16.msra.mxu0 0
        %1571 = vmatprep.subr.bf16.mxu0 0
        %1572 = vmatpush1.bf16.msra.mxu0 0
        %1573 = vmatprep.subr.bf16.mxu0 0
        %1574 = vmatpush1.bf16.msra.mxu0 0
        %1575 = vmatprep.subr.bf16.mxu0 0
        %1576 = vmatpush1.bf16.msra.mxu0 0
        %1577 = vmatprep.subr.bf16.mxu0 0
        %1578 = vmatpush1.bf16.msra.mxu0 0
        %1579 = vmatprep.subr.bf16.mxu0 0
        %1580 = vmatpush1.bf16.msra.mxu0 0
        %1581 = vmatprep.subr.bf16.mxu0 0
        %1582 = vmatpush1.bf16.msra.mxu0 0
        %1583 = vmatprep.subr.bf16.mxu0 0
        %1584 = vmatpush1.bf16.msra.mxu0 0
        %1585 = vmatprep.subr.bf16.mxu0 0
        %1586 = vmatpush1.bf16.msra.mxu0 0
        %1587 = vmatprep.subr.bf16.mxu0 0
        %1588 = vmatpush1.bf16.msra.mxu0 0
        %1589 = vmatprep.mubr.bf16.mxu0 0
        %1590 = vmatmul.mubr.bf16.gmra.mrb[0].mxu0 %v1555
        %v1591 = vpop.f32.mrb[0].mxu0
        %v1592 = vadd.f32 0.0, %v1591
        %v1593 = vpop.f32.mrb[0].mxu0
        %v1594 = vpop.f32.mrb[0].mxu0
        %v1595 = vpop.f32.mrb[0].mxu0
        %1596 = vdwg.mxu0
        %1599 = vrot.lane.b32.xlu0 %v1546, 64
        %v1600 = vpop.permute.xlu0 %1599
        %1601 = vrot.lane.b32.xlu0 %v1592, 64
        %v1602 = vpop.permute.xlu0 %1601
        %vm1605 = vcmask 785920
        %1606 = vst.msk [vmem:[#allocation2] sm:$0xff] %vm1605, %v1600
        %1607 = vst.msk [vmem:[#allocation2 + $0x8] sm:$0xff] %vm1605, %v1602
        %1608 = vrot.lane.b32.xlu0 %v940, 32
        %v1609 = vpop.permute.xlu0 %1608
        %v1611 = vsel %vm942, %v1609, 0
        %1613 = vmatprep.subr.bf16.mxu0 0
        %1614 = vmatpush1.bf16.xpose.msra.mxu0 %v1385
        %1615 = vmatprep.subr.bf16.mxu0 0
        %1616 = vmatpush1.bf16.xpose.msra.mxu0 0
        %1617 = vmatprep.subr.bf16.mxu0 0
        %1618 = vmatpush1.bf16.xpose.msra.mxu0 0
        %1619 = vmatprep.subr.bf16.mxu0 0
        %1620 = vmatpush1.bf16.xpose.msra.mxu0 0
        %1621 = vmatprep.subr.bf16.mxu0 0
        %1622 = vmatpush1.bf16.xpose.msra.mxu0 0
        %1623 = vmatprep.subr.bf16.mxu0 0
        %1624 = vmatpush1.bf16.xpose.msra.mxu0 0
        %1625 = vmatprep.subr.bf16.mxu0 0
        %1626 = vmatpush1.bf16.xpose.msra.mxu0 0
        %1627 = vmatprep.subr.bf16.mxu0 0
        %1628 = vmatpush1.bf16.xpose.msra.mxu0 0
        %1629 = vmatprep.subr.bf16.mxu0 0
        %1630 = vmatpush1.bf16.xpose.msra.mxu0 0
        %1631 = vmatprep.subr.bf16.mxu0 0
        %1632 = vmatpush1.bf16.xpose.msra.mxu0 0
        %1633 = vmatprep.subr.bf16.mxu0 0
        %1634 = vmatpush1.bf16.xpose.msra.mxu0 0
        %1635 = vmatprep.subr.bf16.mxu0 0
        %1636 = vmatpush1.bf16.xpose.msra.mxu0 0
        %1637 = vmatprep.subr.bf16.mxu0 0
        %1638 = vmatpush1.bf16.xpose.msra.mxu0 0
        %1639 = vmatprep.subr.bf16.mxu0 0
        %1640 = vmatpush1.bf16.xpose.msra.mxu0 0
        %1641 = vmatprep.subr.bf16.mxu0 0
        %1642 = vmatpush1.bf16.xpose.msra.mxu0 0
        %1643 = vmatprep.subr.bf16.mxu0 0
        %1644 = vmatpush1.bf16.xpose.msra.mxu0 0
        %1645 = vmatprep.mubr.bf16.mxu0 0
        %1646 = vmatmul.mubr.bf16.gmra.mrb[0].mxu0 %v1611
        %v1647 = vpop.f32.mrb[0].mxu0
        %v1648 = vadd.f32 0.0, %v1647
        %v1649 = vpop.f32.mrb[0].mxu0
        %v1650 = vpop.f32.mrb[0].mxu0
        %v1651 = vpop.f32.mrb[0].mxu0
        %1652 = vdwg.mxu0
        %1653 = vrot.lane.b32.xlu0 %v941, 32
        %v1654 = vpop.permute.xlu0 %1653
        %v1656 = vsel %vm942, %v1654, 0
        %1658 = vmatprep.subr.bf16.mxu0 0
        %1659 = vmatpush1.bf16.xpose.msra.mxu0 %v1435
        %1660 = vmatprep.subr.bf16.mxu0 0
        %1661 = vmatpush1.bf16.xpose.msra.mxu0 0
        %1662 = vmatprep.subr.bf16.mxu0 0
        %1663 = vmatpush1.bf16.xpose.msra.mxu0 0
        %1664 = vmatprep.subr.bf16.mxu0 0
        %1665 = vmatpush1.bf16.xpose.msra.mxu0 0
        %1666 = vmatprep.subr.bf16.mxu0 0
        %1667 = vmatpush1.bf16.xpose.msra.mxu0 0
        %1668 = vmatprep.subr.bf16.mxu0 0
        %1669 = vmatpush1.bf16.xpose.msra.mxu0 0
        %1670 = vmatprep.subr.bf16.mxu0 0
        %1671 = vmatpush1.bf16.xpose.msra.mxu0 0
        %1672 = vmatprep.subr.bf16.mxu0 0
        %1673 = vmatpush1.bf16.xpose.msra.mxu0 0
        %1674 = vmatprep.subr.bf16.mxu0 0
        %1675 = vmatpush1.bf16.xpose.msra.mxu0 0
        %1676 = vmatprep.subr.bf16.mxu0 0
        %1677 = vmatpush1.bf16.xpose.msra.mxu0 0
        %1678 = vmatprep.subr.bf16.mxu0 0
        %1679 = vmatpush1.bf16.xpose.msra.mxu0 0
        %1680 = vmatprep.subr.bf16.mxu0 0
        %1681 = vmatpush1.bf16.xpose.msra.mxu0 0
        %1682 = vmatprep.subr.bf16.mxu0 0
        %1683 = vmatpush1.bf16.xpose.msra.mxu0 0
        %1684 = vmatprep.subr.bf16.mxu0 0
        %1685 = vmatpush1.bf16.xpose.msra.mxu0 0
        %1686 = vmatprep.subr.bf16.mxu0 0
        %1687 = vmatpush1.bf16.xpose.msra.mxu0 0
        %1688 = vmatprep.subr.bf16.mxu0 0
        %1689 = vmatpush1.bf16.xpose.msra.mxu0 0
        %1690 = vmatprep.mubr.bf16.mxu0 0
        %1691 = vmatmul.mubr.bf16.gmra.mrb[0].mxu0 %v1656
        %v1692 = vpop.f32.mrb[0].mxu0
        %v1693 = vadd.f32 0.0, %v1692
        %v1694 = vpop.f32.mrb[0].mxu0
        %v1695 = vpop.f32.mrb[0].mxu0
        %v1696 = vpop.f32.mrb[0].mxu0
        %1697 = vdwg.mxu0
        %v1698 = vmul.f32 %v1648, 0.17677669
        %v1699 = vmul.f32 %v1693, 0.17677669
        %v1700 = vadd.f32 %v1698, %v939
        %v1701 = vadd.f32 %v1699, %v939
        %v1702 = vsel %vm1039, %v1700, -inf
        %1703 = vmax.xlane.f32.xlu0 %v1702
        %v1704 = vpop.xlane.xlu0 %1703
        %v1705 = vsel %vm1039, %v1701, -inf
        %1706 = vmax.xlane.f32.xlu0 %v1705
        %v1707 = vpop.xlane.xlu0 %1706
        %v1708 = vsub.f32 %v1700, %v1704
        %v1709 = vsub.f32 %v1701, %v1707
        %v1710 = vmul.f32 %v1708, 1.442695
        %v1711 = vpow.pop %v1710
        %v1712 = vmul.f32 %v1709, 1.442695
        %v1713 = vpow.pop %v1712
        %v1714 = vsel %vm1039, %v1711, 0.0
        %1715 = vadd.xlane.f32.xlu0 %v1714
        %v1716 = vpop.xlane.xlu0 %1715
        %v1717 = vsel %vm1039, %v1713, 0.0
        %1718 = vadd.xlane.f32.xlu0 %v1717
        %v1719 = vpop.xlane.xlu0 %1718
        %v1720 = vrcp.pop %v1716
        %v1721 = vrcp.pop %v1719
        %v1722 = vmul.f32 %v1711, %v1720
        %v1723 = vmul.f32 %v1713, %v1721
        %v1724 = vpack.c.bf16 %v1722, %v1722
        %v1725 = vpack.c.bf16 %v1723, %v1723
        %v1727 = vsel %vm1039, %v1724, 0
        %1729 = vmatprep.subr.bf16.mxu0 0
        %1730 = vmatpush1.bf16.msra.mxu0 %v1506
        %1731 = vmatprep.subr.bf16.mxu0 0
        %1732 = vmatpush1.bf16.msra.mxu0 0
        %1733 = vmatprep.subr.bf16.mxu0 0
        %1734 = vmatpush1.bf16.msra.mxu0 0
        %1735 = vmatprep.subr.bf16.mxu0 0
        %1736 = vmatpush1.bf16.msra.mxu0 0
        %1737 = vmatprep.subr.bf16.mxu0 0
        %1738 = vmatpush1.bf16.msra.mxu0 0
        %1739 = vmatprep.subr.bf16.mxu0 0
        %1740 = vmatpush1.bf16.msra.mxu0 0
        %1741 = vmatprep.subr.bf16.mxu0 0
        %1742 = vmatpush1.bf16.msra.mxu0 0
        %1743 = vmatprep.subr.bf16.mxu0 0
        %1744 = vmatpush1.bf16.msra.mxu0 0
        %1745 = vmatprep.subr.bf16.mxu0 0
        %1746 = vmatpush1.bf16.msra.mxu0 0
        %1747 = vmatprep.subr.bf16.mxu0 0
        %1748 = vmatpush1.bf16.msra.mxu0 0
        %1749 = vmatprep.subr.bf16.mxu0 0
        %1750 = vmatpush1.bf16.msra.mxu0 0
        %1751 = vmatprep.subr.bf16.mxu0 0
        %1752 = vmatpush1.bf16.msra.mxu0 0
        %1753 = vmatprep.subr.bf16.mxu0 0
        %1754 = vmatpush1.bf16.msra.mxu0 0
        %1755 = vmatprep.subr.bf16.mxu0 0
        %1756 = vmatpush1.bf16.msra.mxu0 0
        %1757 = vmatprep.subr.bf16.mxu0 0
        %1758 = vmatpush1.bf16.msra.mxu0 0
        %1759 = vmatprep.subr.bf16.mxu0 0
        %1760 = vmatpush1.bf16.msra.mxu0 0
        %1761 = vmatprep.mubr.bf16.mxu0 0
        %1762 = vmatmul.mubr.bf16.gmra.mrb[0].mxu0 %v1727
        %v1763 = vpop.f32.mrb[0].mxu0
        %v1764 = vadd.f32 0.0, %v1763
        %v1765 = vpop.f32.mrb[0].mxu0
        %v1766 = vpop.f32.mrb[0].mxu0
        %v1767 = vpop.f32.mrb[0].mxu0
        %1768 = vdwg.mxu0
        %v1770 = vsel %vm1039, %v1725, 0
        %1772 = vmatprep.subr.bf16.mxu0 0
        %1773 = vmatpush1.bf16.msra.mxu0 %v1552
        %1774 = vmatprep.subr.bf16.mxu0 0
        %1775 = vmatpush1.bf16.msra.mxu0 0
        %1776 = vmatprep.subr.bf16.mxu0 0
        %1777 = vmatpush1.bf16.msra.mxu0 0
        %1778 = vmatprep.subr.bf16.mxu0 0
        %1779 = vmatpush1.bf16.msra.mxu0 0
        %1780 = vmatprep.subr.bf16.mxu0 0
        %1781 = vmatpush1.bf16.msra.mxu0 0
        %1782 = vmatprep.subr.bf16.mxu0 0
        %1783 = vmatpush1.bf16.msra.mxu0 0
        %1784 = vmatprep.subr.bf16.mxu0 0
        %1785 = vmatpush1.bf16.msra.mxu0 0
        %1786 = vmatprep.subr.bf16.mxu0 0
        %1787 = vmatpush1.bf16.msra.mxu0 0
        %1788 = vmatprep.subr.bf16.mxu0 0
        %1789 = vmatpush1.bf16.msra.mxu0 0
        %1790 = vmatprep.subr.bf16.mxu0 0
        %1791 = vmatpush1.bf16.msra.mxu0 0
        %1792 = vmatprep.subr.bf16.mxu0 0
        %1793 = vmatpush1.bf16.msra.mxu0 0
        %1794 = vmatprep.subr.bf16.mxu0 0
        %1795 = vmatpush1.bf16.msra.mxu0 0
        %1796 = vmatprep.subr.bf16.mxu0 0
        %1797 = vmatpush1.bf16.msra.mxu0 0
        %1798 = vmatprep.subr.bf16.mxu0 0
        %1799 = vmatpush1.bf16.msra.mxu0 0
        %1800 = vmatprep.subr.bf16.mxu0 0
        %1801 = vmatpush1.bf16.msra.mxu0 0
        %1802 = vmatprep.subr.bf16.mxu0 0
        %1803 = vmatpush1.bf16.msra.mxu0 0
        %1804 = vmatprep.mubr.bf16.mxu0 0
        %1805 = vmatmul.mubr.bf16.gmra.mrb[0].mxu0 %v1770
        %v1806 = vpop.f32.mrb[0].mxu0
        %v1807 = vadd.f32 0.0, %v1806
        %v1808 = vpop.f32.mrb[0].mxu0
        %v1809 = vpop.f32.mrb[0].mxu0
        %v1810 = vpop.f32.mrb[0].mxu0
        %1811 = vdwg.mxu0
        %1814 = vrot.lane.b32.xlu0 %v1764, 96
        %v1815 = vpop.permute.xlu0 %1814
        %1816 = vrot.lane.b32.xlu0 %v1807, 96
        %v1817 = vpop.permute.xlu0 %1816
        %vm1820 = vcmask 1048320
        %1821 = vst.msk [vmem:[#allocation2] sm:$0xff] %vm1820, %v1815
        %1822 = vst.msk [vmem:[#allocation2 + $0x8] sm:$0xff] %vm1820, %v1817
        %v1823 = vld [vmem:[#allocation2] sm:$0xff]
        %v1824 = vld [vmem:[#allocation2 + $0x8] sm:$0xff]
        %v1825 = vpack.c.bf16 %v1824, %v1823
        %v1826 = vld [vmem:[%s485] sm:$0xf]
        %v1827 = vld [vmem:[%s485 + $0x4] sm:$0xf]
        %v1828 = vld [vmem:[%s485 + $0x8] sm:$0xf]
        %v1829 = vld [vmem:[%s485 + $0xc] sm:$0xf]
        %v1830 = vld [vmem:[%s485 + $0x10] sm:$0xf]
        %v1831 = vld [vmem:[%s485 + $0x14] sm:$0xf]
        %v1832 = vld [vmem:[%s485 + $0x18] sm:$0xf]
        %v1833 = vld [vmem:[%s485 + $0x1c] sm:$0xf]
        %v1834 = vld [vmem:[%s485 + $0x20] sm:$0xf]
        %v1835 = vld [vmem:[%s485 + $0x24] sm:$0xf]
        %v1836 = vld [vmem:[%s485 + $0x28] sm:$0xf]
        %v1837 = vld [vmem:[%s485 + $0x2c] sm:$0xf]
        %v1838 = vld [vmem:[%s485 + $0x30] sm:$0xf]
        %v1839 = vld [vmem:[%s485 + $0x34] sm:$0xf]
        %v1840 = vld [vmem:[%s485 + $0x38] sm:$0xf]
        %v1841 = vld [vmem:[%s485 + $0x3c] sm:$0xf]
        %v1858 = vunpack.c.l.b16 %v1826
        %v1859 = vunpack.c.l.b16 %v1827
        %v1860 = vunpack.c.l.b16 %v1828
        %v1861 = vunpack.c.l.b16 %v1829
        %v1862 = vunpack.c.l.b16 %v1830
        %v1863 = vunpack.c.l.b16 %v1831
        %v1864 = vunpack.c.l.b16 %v1832
        %v1865 = vunpack.c.l.b16 %v1833
        %v1866 = vunpack.c.l.b16 %v1834
        %v1867 = vunpack.c.l.b16 %v1835
        %v1868 = vunpack.c.l.b16 %v1836
        %v1869 = vunpack.c.l.b16 %v1837
        %v1870 = vunpack.c.l.b16 %v1838
        %v1871 = vunpack.c.l.b16 %v1839
        %v1872 = vunpack.c.l.b16 %v1840
        %v1873 = vunpack.c.l.b16 %v1841
        %v1874 = vpack.c.b16 %v1859, %v1858
        %v1875 = vpack.c.b16 %v1861, %v1860
        %v1876 = vpack.c.b16 %v1863, %v1862
        %v1877 = vpack.c.b16 %v1865, %v1864
        %v1878 = vpack.c.b16 %v1867, %v1866
        %v1879 = vpack.c.b16 %v1869, %v1868
        %v1880 = vpack.c.b16 %v1871, %v1870
        %v1881 = vpack.c.b16 %v1873, %v1872
        %1890 = vmatprep.subr.bf16.mxu0 0
        %1891 = vmatpush1.bf16.msra.mxu0 %v1874
        %1892 = vmatprep.subr.bf16.mxu0 0
        %1893 = vmatpush1.bf16.msra.mxu0 %v1875
        %1894 = vmatprep.subr.bf16.mxu0 0
        %1895 = vmatpush1.bf16.msra.mxu0 %v1876
        %1896 = vmatprep.subr.bf16.mxu0 0
        %1897 = vmatpush1.bf16.msra.mxu0 %v1877
        %1898 = vmatprep.subr.bf16.mxu0 0
        %1899 = vmatpush1.bf16.msra.mxu0 %v1878
        %1900 = vmatprep.subr.bf16.mxu0 0
        %1901 = vmatpush1.bf16.msra.mxu0 %v1879
        %1902 = vmatprep.subr.bf16.mxu0 0
        %1903 = vmatpush1.bf16.msra.mxu0 %v1880
        %1904 = vmatprep.subr.bf16.mxu0 0
        %1905 = vmatpush1.bf16.msra.mxu0 %v1881
        %1906 = vmatprep.subr.bf16.mxu0 0
        %1907 = vmatpush1.bf16.msra.mxu0 0
        %1908 = vmatprep.subr.bf16.mxu0 0
        %1909 = vmatpush1.bf16.msra.mxu0 0
        %1910 = vmatprep.subr.bf16.mxu0 0
        %1911 = vmatpush1.bf16.msra.mxu0 0
        %1912 = vmatprep.subr.bf16.mxu0 0
        %1913 = vmatpush1.bf16.msra.mxu0 0
        %1914 = vmatprep.subr.bf16.mxu0 0
        %1915 = vmatpush1.bf16.msra.mxu0 0
        %1916 = vmatprep.subr.bf16.mxu0 0
        %1917 = vmatpush1.bf16.msra.mxu0 0
        %1918 = vmatprep.subr.bf16.mxu0 0
        %1919 = vmatpush1.bf16.msra.mxu0 0
        %1920 = vmatprep.subr.bf16.mxu0 0
        %1921 = vmatpush1.bf16.msra.mxu0 0
        %1922 = vmatprep.mubr.bf16.mxu0 0
        %1923 = vmatmul.mubr.bf16.gmra.mrb[0].mxu0 %v1825
        %v1924 = vpop.f32.mrb[0].mxu0
        %v1925 = vadd.f32 0.0, %v1924
        %v1926 = vpop.f32.mrb[0].mxu0
        %v1927 = vpop.f32.mrb[0].mxu0
        %v1928 = vadd.f32 0.0, %v1927
        %v1929 = vpop.f32.mrb[0].mxu0
        %1930 = vdwg.mxu0
        %v1931 = vadd.f32 %v580, %v1925
        %v1932 = vadd.f32 %v581, %v1928
        %v1933 = vmul.f32 %v1931, %v1931
        %v1934 = vmul.f32 %v1932, %v1932
        %1935 = vadd.xlane.f32.xlu0 %v1933
        %v1936 = vpop.xlane.xlu0 %1935
        %1937 = vadd.xlane.f32.xlu0 %v1934
        %v1938 = vpop.xlane.xlu0 %1937
        %v1939 = vmul.f32 %v1936, %v588
        %v1940 = vmul.f32 %v1938, %v588
        %v1941 = vadd.f32 %v1939, 1e-05
        %v1942 = vadd.f32 %v1940, 1e-05
        %v1943 = vrsqrt.pop %v1941
        %v1944 = vrsqrt.pop %v1942
        %v1945 = vmul.f32 %v1931, %v1943
        %v1946 = vmul.f32 %v1932, %v1944
        %v1947 = vld [vmem:[%s564] sm:$0x1]
        %v1949 = vlaneseq
        %v1950 = vshrl.u32 %v1949, 7
        %v1951 = vsub.s32 0, %v1950
        %v1952 = vrot.slane %v1947, %v1951
        %v1954 = vmul.f32 %v1945, %v1952
        %v1955 = vmul.f32 %v1946, %v1952
        %v1956 = vpack.c.bf16 %v1955, %v1954
        %v1957 = vld [vmem:[%s494] sm:$0xff]
        %v1958 = vld [vmem:[%s494 + $0x8] sm:$0xff]
        %v1959 = vld [vmem:[%s494 + $0x10] sm:$0xff]
        %v1960 = vld [vmem:[%s494 + $0x18] sm:$0xff]
        %v1961 = vld [vmem:[%s494 + $0x20] sm:$0xff]
        %v1962 = vld [vmem:[%s494 + $0x28] sm:$0xff]
        %v1963 = vld [vmem:[%s494 + $0x30] sm:$0xff]
        %v1964 = vld [vmem:[%s494 + $0x38] sm:$0xff]
        %v1965 = vld [vmem:[%s494 + $0x40] sm:$0xff]
        %v1966 = vld [vmem:[%s494 + $0x48] sm:$0xff]
        %v1967 = vld [vmem:[%s494 + $0x50] sm:$0xff]
        %v1968 = vld [vmem:[%s494 + $0x58] sm:$0xff]
        %v1969 = vld [vmem:[%s494 + $0x60] sm:$0xff]
        %v1970 = vld [vmem:[%s494 + $0x68] sm:$0xff]
        %v1971 = vld [vmem:[%s494 + $0x70] sm:$0xff]
        %v1972 = vld [vmem:[%s494 + $0x78] sm:$0xff]
        %v1973 = vld [vmem:[%s494 + $0x80] sm:$0xff]
        %v1974 = vld [vmem:[%s494 + $0x88] sm:$0xff]
        %v1975 = vld [vmem:[%s494 + $0x90] sm:$0xff]
        %v1976 = vld [vmem:[%s494 + $0x98] sm:$0xff]
        %v1977 = vld [vmem:[%s494 + $0xa0] sm:$0xff]
        %v1978 = vld [vmem:[%s494 + $0xa8] sm:$0xff]
        %v1979 = vld [vmem:[%s494 + $0xb0] sm:$0xff]
        %v1980 = vld [vmem:[%s494 + $0xb8] sm:$0xff]
        %v1981 = vld [vmem:[%s494 + $0xc0] sm:$0xff]
        %v1982 = vld [vmem:[%s494 + $0xc8] sm:$0xff]
        %v1983 = vld [vmem:[%s494 + $0xd0] sm:$0xff]
        %v1984 = vld [vmem:[%s494 + $0xd8] sm:$0xff]
        %v1985 = vld [vmem:[%s494 + $0xe0] sm:$0xff]
        %v1986 = vld [vmem:[%s494 + $0xe8] sm:$0xff]
        %v1987 = vld [vmem:[%s494 + $0xf0] sm:$0xff]
        %v1988 = vld [vmem:[%s494 + $0xf8] sm:$0xff]
        %v1989 = vld [vmem:[%s494 + $0x100] sm:$0xff]
        %v1990 = vld [vmem:[%s494 + $0x108] sm:$0xff]
        %v1991 = vld [vmem:[%s494 + $0x110] sm:$0xff]
        %v1992 = vld [vmem:[%s494 + $0x118] sm:$0xff]
        %v1993 = vld [vmem:[%s494 + $0x120] sm:$0xff]
        %v1994 = vld [vmem:[%s494 + $0x128] sm:$0xff]
        %v1995 = vld [vmem:[%s494 + $0x130] sm:$0xff]
        %v1996 = vld [vmem:[%s494 + $0x138] sm:$0xff]
        %v1997 = vld [vmem:[%s494 + $0x140] sm:$0xff]
        %v1998 = vld [vmem:[%s494 + $0x148] sm:$0xff]
        %v1999 = vld [vmem:[%s494 + $0x150] sm:$0xff]
        %v2000 = vld [vmem:[%s494 + $0x158] sm:$0xff]
        %v2001 = vld [vmem:[%s494 + $0x160] sm:$0xff]
        %v2002 = vld [vmem:[%s494 + $0x168] sm:$0xff]
        %v2003 = vld [vmem:[%s494 + $0x170] sm:$0xff]
        %v2004 = vld [vmem:[%s494 + $0x178] sm:$0xff]
        %v2053 = vunpack.c.l.b16 %v1957
        %v2054 = vunpack.c.h.b16 %v1957
        %v2055 = vunpack.c.l.b16 %v1958
        %v2056 = vunpack.c.h.b16 %v1958
        %v2057 = vunpack.c.l.b16 %v1959
        %v2058 = vunpack.c.h.b16 %v1959
        %v2059 = vunpack.c.l.b16 %v1960
        %v2060 = vunpack.c.h.b16 %v1960
        %v2061 = vunpack.c.l.b16 %v1961
        %v2062 = vunpack.c.h.b16 %v1961
        %v2063 = vunpack.c.l.b16 %v1962
        %v2064 = vunpack.c.h.b16 %v1962
        %v2065 = vunpack.c.l.b16 %v1963
        %v2066 = vunpack.c.h.b16 %v1963
        %v2067 = vunpack.c.l.b16 %v1964
        %v2068 = vunpack.c.h.b16 %v1964
        %v2069 = vunpack.c.l.b16 %v1965
        %v2070 = vunpack.c.h.b16 %v1965
        %v2071 = vunpack.c.l.b16 %v1966
        %v2072 = vunpack.c.h.b16 %v1966
        %v2073 = vunpack.c.l.b16 %v1967
        %v2074 = vunpack.c.h.b16 %v1967
        %v2075 = vunpack.c.l.b16 %v1968
        %v2076 = vunpack.c.h.b16 %v1968
        %v2077 = vunpack.c.l.b16 %v1969
        %v2078 = vunpack.c.h.b16 %v1969
        %v2079 = vunpack.c.l.b16 %v1970
        %v2080 = vunpack.c.h.b16 %v1970
        %v2081 = vunpack.c.l.b16 %v1971
        %v2082 = vunpack.c.h.b16 %v1971
        %v2083 = vunpack.c.l.b16 %v1972
        %v2084 = vunpack.c.h.b16 %v1972
        %v2085 = vunpack.c.l.b16 %v1973
        %v2086 = vunpack.c.h.b16 %v1973
        %v2087 = vunpack.c.l.b16 %v1974
        %v2088 = vunpack.c.h.b16 %v1974
        %v2089 = vunpack.c.l.b16 %v1975
        %v2090 = vunpack.c.h.b16 %v1975
        %v2091 = vunpack.c.l.b16 %v1976
        %v2092 = vunpack.c.h.b16 %v1976
        %v2093 = vunpack.c.l.b16 %v1977
        %v2094 = vunpack.c.h.b16 %v1977
        %v2095 = vunpack.c.l.b16 %v1978
        %v2096 = vunpack.c.h.b16 %v1978
        %v2097 = vunpack.c.l.b16 %v1979
        %v2098 = vunpack.c.h.b16 %v1979
        %v2099 = vunpack.c.l.b16 %v1980
        %v2100 = vunpack.c.h.b16 %v1980
        %v2101 = vunpack.c.l.b16 %v1981
        %v2102 = vunpack.c.h.b16 %v1981
        %v2103 = vunpack.c.l.b16 %v1982
        %v2104 = vunpack.c.h.b16 %v1982
        %v2105 = vunpack.c.l.b16 %v1983
        %v2106 = vunpack.c.h.b16 %v1983
        %v2107 = vunpack.c.l.b16 %v1984
        %v2108 = vunpack.c.h.b16 %v1984
        %v2109 = vunpack.c.l.b16 %v1985
        %v2110 = vunpack.c.h.b16 %v1985
        %v2111 = vunpack.c.l.b16 %v1986
        %v2112 = vunpack.c.h.b16 %v1986
        %v2113 = vunpack.c.l.b16 %v1987
        %v2114 = vunpack.c.h.b16 %v1987
        %v2115 = vunpack.c.l.b16 %v1988
        %v2116 = vunpack.c.h.b16 %v1988
        %v2117 = vunpack.c.l.b16 %v1989
        %v2118 = vunpack.c.h.b16 %v1989
        %v2119 = vunpack.c.l.b16 %v1990
        %v2120 = vunpack.c.h.b16 %v1990
        %v2121 = vunpack.c.l.b16 %v1991
        %v2122 = vunpack.c.h.b16 %v1991
        %v2123 = vunpack.c.l.b16 %v1992
        %v2124 = vunpack.c.h.b16 %v1992
        %v2125 = vunpack.c.l.b16 %v1993
        %v2126 = vunpack.c.h.b16 %v1993
        %v2127 = vunpack.c.l.b16 %v1994
        %v2128 = vunpack.c.h.b16 %v1994
        %v2129 = vunpack.c.l.b16 %v1995
        %v2130 = vunpack.c.h.b16 %v1995
        %v2131 = vunpack.c.l.b16 %v1996
        %v2132 = vunpack.c.h.b16 %v1996
        %v2133 = vunpack.c.l.b16 %v1997
        %v2134 = vunpack.c.h.b16 %v1997
        %v2135 = vunpack.c.l.b16 %v1998
        %v2136 = vunpack.c.h.b16 %v1998
        %v2137 = vunpack.c.l.b16 %v1999
        %v2138 = vunpack.c.h.b16 %v1999
        %v2139 = vunpack.c.l.b16 %v2000
        %v2140 = vunpack.c.h.b16 %v2000
        %v2141 = vunpack.c.l.b16 %v2001
        %v2142 = vunpack.c.h.b16 %v2001
        %v2143 = vunpack.c.l.b16 %v2002
        %v2144 = vunpack.c.h.b16 %v2002
        %v2145 = vunpack.c.l.b16 %v2003
        %v2146 = vunpack.c.h.b16 %v2003
        %v2147 = vunpack.c.l.b16 %v2004
        %v2148 = vunpack.c.h.b16 %v2004
        %v2149 = vpack.c.b16 %v2059, %v2053
        %v2150 = vpack.c.b16 %v2060, %v2054
        %v2151 = vpack.c.b16 %v2061, %v2055
        %v2152 = vpack.c.b16 %v2062, %v2056
        %v2153 = vpack.c.b16 %v2063, %v2057
        %v2154 = vpack.c.b16 %v2064, %v2058
        %v2155 = vpack.c.b16 %v2071, %v2065
        %v2156 = vpack.c.b16 %v2072, %v2066
        %v2157 = vpack.c.b16 %v2073, %v2067
        %v2158 = vpack.c.b16 %v2074, %v2068
        %v2159 = vpack.c.b16 %v2075, %v2069
        %v2160 = vpack.c.b16 %v2076, %v2070
        %v2161 = vpack.c.b16 %v2083, %v2077
        %v2162 = vpack.c.b16 %v2084, %v2078
        %v2163 = vpack.c.b16 %v2085, %v2079
        %v2164 = vpack.c.b16 %v2086, %v2080
        %v2165 = vpack.c.b16 %v2087, %v2081
        %v2166 = vpack.c.b16 %v2088, %v2082
        %v2167 = vpack.c.b16 %v2095, %v2089
        %v2168 = vpack.c.b16 %v2096, %v2090
        %v2169 = vpack.c.b16 %v2097, %v2091
        %v2170 = vpack.c.b16 %v2098, %v2092
        %v2171 = vpack.c.b16 %v2099, %v2093
        %v2172 = vpack.c.b16 %v2100, %v2094
        %v2173 = vpack.c.b16 %v2107, %v2101
        %v2174 = vpack.c.b16 %v2108, %v2102
        %v2175 = vpack.c.b16 %v2109, %v2103
        %v2176 = vpack.c.b16 %v2110, %v2104
        %v2177 = vpack.c.b16 %v2111, %v2105
        %v2178 = vpack.c.b16 %v2112, %v2106
        %v2179 = vpack.c.b16 %v2119, %v2113
        %v2180 = vpack.c.b16 %v2120, %v2114
        %v2181 = vpack.c.b16 %v2121, %v2115
        %v2182 = vpack.c.b16 %v2122, %v2116
        %v2183 = vpack.c.b16 %v2123, %v2117
        %v2184 = vpack.c.b16 %v2124, %v2118
        %v2185 = vpack.c.b16 %v2131, %v2125
        %v2186 = vpack.c.b16 %v2132, %v2126
        %v2187 = vpack.c.b16 %v2133, %v2127
        %v2188 = vpack.c.b16 %v2134, %v2128
        %v2189 = vpack.c.b16 %v2135, %v2129
        %v2190 = vpack.c.b16 %v2136, %v2130
        %v2191 = vpack.c.b16 %v2143, %v2137
        %v2192 = vpack.c.b16 %v2144, %v2138
        %v2193 = vpack.c.b16 %v2145, %v2139
        %v2194 = vpack.c.b16 %v2146, %v2140
        %v2195 = vpack.c.b16 %v2147, %v2141
        %v2196 = vpack.c.b16 %v2148, %v2142
        %2245 = vmatprep.subr.bf16.mxu0 %v2150
        %2246 = vmatpush1.bf16.msra.mxu0 %v2149
        %2247 = vmatprep.subr.bf16.mxu0 %v2156
        %2248 = vmatpush1.bf16.msra.mxu0 %v2155
        %2249 = vmatprep.subr.bf16.mxu0 %v2162
        %2250 = vmatpush1.bf16.msra.mxu0 %v2161
        %2251 = vmatprep.subr.bf16.mxu0 %v2168
        %2252 = vmatpush1.bf16.msra.mxu0 %v2167
        %2253 = vmatprep.subr.bf16.mxu0 %v2174
        %2254 = vmatpush1.bf16.msra.mxu0 %v2173
        %2255 = vmatprep.subr.bf16.mxu0 %v2180
        %2256 = vmatpush1.bf16.msra.mxu0 %v2179
        %2257 = vmatprep.subr.bf16.mxu0 %v2186
        %2258 = vmatpush1.bf16.msra.mxu0 %v2185
        %2259 = vmatprep.subr.bf16.mxu0 %v2192
        %2260 = vmatpush1.bf16.msra.mxu0 %v2191
        %2261 = vmatprep.subr.bf16.mxu0 0
        %2262 = vmatpush1.bf16.msra.mxu0 0
        %2263 = vmatprep.subr.bf16.mxu0 0
        %2264 = vmatpush1.bf16.msra.mxu0 0
        %2265 = vmatprep.subr.bf16.mxu0 0
        %2266 = vmatpush1.bf16.msra.mxu0 0
        %2267 = vmatprep.subr.bf16.mxu0 0
        %2268 = vmatpush1.bf16.msra.mxu0 0
        %2269 = vmatprep.subr.bf16.mxu0 0
        %2270 = vmatpush1.bf16.msra.mxu0 0
        %2271 = vmatprep.subr.bf16.mxu0 0
        %2272 = vmatpush1.bf16.msra.mxu0 0
        %2273 = vmatprep.subr.bf16.mxu0 0
        %2274 = vmatpush1.bf16.msra.mxu0 0
        %2275 = vmatprep.subr.bf16.mxu0 0
        %2276 = vmatpush1.bf16.msra.mxu0 0
        %2277 = vmatprep.mubr.bf16.mxu0 0
        %2278 = vmatmul.mubr.bf16.gmra.mrb[0].mxu0 %v1956
        %v2279 = vpop.f32.mrb[0].mxu0
        %v2280 = vadd.f32 0.0, %v2279
        %v2281 = vpop.f32.mrb[0].mxu0
        %v2282 = vadd.f32 0.0, %v2281
        %v2283 = vpop.f32.mrb[0].mxu0
        %v2284 = vadd.f32 0.0, %v2283
        %v2285 = vpop.f32.mrb[0].mxu0
        %v2286 = vadd.f32 0.0, %v2285
        %2287 = vdwg.mxu0
        %2288 = vmatprep.subr.bf16.mxu0 %v2152
        %2289 = vmatpush1.bf16.msra.mxu0 %v2151
        %2290 = vmatprep.subr.bf16.mxu0 %v2158
        %2291 = vmatpush1.bf16.msra.mxu0 %v2157
        %2292 = vmatprep.subr.bf16.mxu0 %v2164
        %2293 = vmatpush1.bf16.msra.mxu0 %v2163
        %2294 = vmatprep.subr.bf16.mxu0 %v2170
        %2295 = vmatpush1.bf16.msra.mxu0 %v2169
        %2296 = vmatprep.subr.bf16.mxu0 %v2176
        %2297 = vmatpush1.bf16.msra.mxu0 %v2175
        %2298 = vmatprep.subr.bf16.mxu0 %v2182
        %2299 = vmatpush1.bf16.msra.mxu0 %v2181
        %2300 = vmatprep.subr.bf16.mxu0 %v2188
        %2301 = vmatpush1.bf16.msra.mxu0 %v2187
        %2302 = vmatprep.subr.bf16.mxu0 %v2194
        %2303 = vmatpush1.bf16.msra.mxu0 %v2193
        %2304 = vmatprep.subr.bf16.mxu0 0
        %2305 = vmatpush1.bf16.msra.mxu0 0
        %2306 = vmatprep.subr.bf16.mxu0 0
        %2307 = vmatpush1.bf16.msra.mxu0 0
        %2308 = vmatprep.subr.bf16.mxu0 0
        %2309 = vmatpush1.bf16.msra.mxu0 0
        %2310 = vmatprep.subr.bf16.mxu0 0
        %2311 = vmatpush1.bf16.msra.mxu0 0
        %2312 = vmatprep.subr.bf16.mxu0 0
        %2313 = vmatpush1.bf16.msra.mxu0 0
        %2314 = vmatprep.subr.bf16.mxu0 0
        %2315 = vmatpush1.bf16.msra.mxu0 0
        %2316 = vmatprep.subr.bf16.mxu0 0
        %2317 = vmatpush1.bf16.msra.mxu0 0
        %2318 = vmatprep.subr.bf16.mxu0 0
        %2319 = vmatpush1.bf16.msra.mxu0 0
        %2320 = vmatprep.mubr.bf16.mxu0 0
        %2321 = vmatmul.mubr.bf16.gmra.mrb[0].mxu0 %v1956
        %v2322 = vpop.f32.mrb[0].mxu0
        %v2323 = vadd.f32 0.0, %v2322
        %v2324 = vpop.f32.mrb[0].mxu0
        %v2325 = vadd.f32 0.0, %v2324
        %v2326 = vpop.f32.mrb[0].mxu0
        %v2327 = vadd.f32 0.0, %v2326
        %v2328 = vpop.f32.mrb[0].mxu0
        %v2329 = vadd.f32 0.0, %v2328
        %2330 = vdwg.mxu0
        %2331 = vmatprep.subr.bf16.mxu0 %v2154
        %2332 = vmatpush1.bf16.msra.mxu0 %v2153
        %2333 = vmatprep.subr.bf16.mxu0 %v2160
        %2334 = vmatpush1.bf16.msra.mxu0 %v2159
        %2335 = vmatprep.subr.bf16.mxu0 %v2166
        %2336 = vmatpush1.bf16.msra.mxu0 %v2165
        %2337 = vmatprep.subr.bf16.mxu0 %v2172
        %2338 = vmatpush1.bf16.msra.mxu0 %v2171
        %2339 = vmatprep.subr.bf16.mxu0 %v2178
        %2340 = vmatpush1.bf16.msra.mxu0 %v2177
        %2341 = vmatprep.subr.bf16.mxu0 %v2184
        %2342 = vmatpush1.bf16.msra.mxu0 %v2183
        %2343 = vmatprep.subr.bf16.mxu0 %v2190
        %2344 = vmatpush1.bf16.msra.mxu0 %v2189
        %2345 = vmatprep.subr.bf16.mxu0 %v2196
        %2346 = vmatpush1.bf16.msra.mxu0 %v2195
        %2347 = vmatprep.subr.bf16.mxu0 0
        %2348 = vmatpush1.bf16.msra.mxu0 0
        %2349 = vmatprep.subr.bf16.mxu0 0
        %2350 = vmatpush1.bf16.msra.mxu0 0
        %2351 = vmatprep.subr.bf16.mxu0 0
        %2352 = vmatpush1.bf16.msra.mxu0 0
        %2353 = vmatprep.subr.bf16.mxu0 0
        %2354 = vmatpush1.bf16.msra.mxu0 0
        %2355 = vmatprep.subr.bf16.mxu0 0
        %2356 = vmatpush1.bf16.msra.mxu0 0
        %2357 = vmatprep.subr.bf16.mxu0 0
        %2358 = vmatpush1.bf16.msra.mxu0 0
        %2359 = vmatprep.subr.bf16.mxu0 0
        %2360 = vmatpush1.bf16.msra.mxu0 0
        %2361 = vmatprep.subr.bf16.mxu0 0
        %2362 = vmatpush1.bf16.msra.mxu0 0
        %2363 = vmatprep.mubr.bf16.mxu0 0
        %2364 = vmatmul.mubr.bf16.gmra.mrb[0].mxu0 %v1956
        %v2365 = vpop.f32.mrb[0].mxu0
        %v2366 = vadd.f32 0.0, %v2365
        %v2367 = vpop.f32.mrb[0].mxu0
        %v2368 = vadd.f32 0.0, %v2367
        %v2369 = vpop.f32.mrb[0].mxu0
        %v2370 = vadd.f32 0.0, %v2369
        %v2371 = vpop.f32.mrb[0].mxu0
        %v2372 = vadd.f32 0.0, %v2371
        %2373 = vdwg.mxu0
        %v2374 = vxor.u32 %v2280, 2147483648
        %v2375 = vxor.u32 %v2282, 2147483648
        %v2376 = vxor.u32 %v2323, 2147483648
        %v2377 = vxor.u32 %v2284, 2147483648
        %v2378 = vxor.u32 %v2286, 2147483648
        %v2379 = vxor.u32 %v2327, 2147483648
        %v2380 = vmul.f32 %v2374, 1.442695
        %v2381 = vpow.pop %v2380
        %v2382 = vmul.f32 %v2375, 1.442695
        %v2383 = vpow.pop %v2382
        %v2384 = vmul.f32 %v2376, 1.442695
        %v2385 = vpow.pop %v2384
        %v2386 = vmul.f32 %v2377, 1.442695
        %v2387 = vpow.pop %v2386
        %v2388 = vmul.f32 %v2378, 1.442695
        %v2389 = vpow.pop %v2388
        %v2390 = vmul.f32 %v2379, 1.442695
        %v2391 = vpow.pop %v2390
        %v2392 = vadd.f32 %v2381, 1.0
        %v2393 = vadd.f32 %v2383, 1.0
        %v2394 = vadd.f32 %v2385, 1.0
        %v2395 = vadd.f32 %v2387, 1.0
        %v2396 = vadd.f32 %v2389, 1.0
        %v2397 = vadd.f32 %v2391, 1.0
        %v2398 = vrcp.pop %v2392
        %v2399 = vmul.f32 1.0, %v2398
        %v2400 = vrcp.pop %v2393
        %v2401 = vmul.f32 1.0, %v2400
        %v2402 = vrcp.pop %v2394
        %v2403 = vmul.f32 1.0, %v2402
        %v2404 = vrcp.pop %v2395
        %v2405 = vmul.f32 1.0, %v2404
        %v2406 = vrcp.pop %v2396
        %v2407 = vmul.f32 1.0, %v2406
        %v2408 = vrcp.pop %v2397
        %v2409 = vmul.f32 1.0, %v2408
        %v2410 = vmul.f32 %v2280, %v2399
        %v2411 = vmul.f32 %v2282, %v2401
        %v2412 = vmul.f32 %v2323, %v2403
        %v2413 = vmul.f32 %v2284, %v2405
        %v2414 = vmul.f32 %v2286, %v2407
        %v2415 = vmul.f32 %v2327, %v2409
        %v2416 = vmul.f32 %v2410, %v2325
        %v2417 = vmul.f32 %v2411, %v2366
        %v2418 = vmul.f32 %v2412, %v2368
        %v2419 = vmul.f32 %v2413, %v2329
        %v2420 = vmul.f32 %v2414, %v2370
        %v2421 = vmul.f32 %v2415, %v2372
        %v2422 = vpack.c.bf16 %v2419, %v2416
        %v2423 = vpack.c.bf16 %v2420, %v2417
        %v2424 = vpack.c.bf16 %v2421, %v2418
        %v2425 = vld [vmem:[%s569] sm:$0xf]
        %v2426 = vld [vmem:[%s569 + $0x4] sm:$0xf]
        %v2427 = vld [vmem:[%s569 + $0x8] sm:$0xf]
        %v2428 = vld [vmem:[%s569 + $0xc] sm:$0xf]
        %v2429 = vld [vmem:[%s569 + $0x10] sm:$0xf]
        %v2430 = vld [vmem:[%s569 + $0x14] sm:$0xf]
        %v2431 = vld [vmem:[%s569 + $0x18] sm:$0xf]
        %v2432 = vld [vmem:[%s569 + $0x1c] sm:$0xf]
        %v2433 = vld [vmem:[%s569 + $0x20] sm:$0xf]
        %v2434 = vld [vmem:[%s569 + $0x24] sm:$0xf]
        %v2435 = vld [vmem:[%s569 + $0x28] sm:$0xf]
        %v2436 = vld [vmem:[%s569 + $0x2c] sm:$0xf]
        %v2437 = vld [vmem:[%s569 + $0x30] sm:$0xf]
        %v2438 = vld [vmem:[%s569 + $0x34] sm:$0xf]
        %v2439 = vld [vmem:[%s569 + $0x38] sm:$0xf]
        %v2440 = vld [vmem:[%s569 + $0x3c] sm:$0xf]
        %v2441 = vld [vmem:[%s569 + $0x40] sm:$0xf]
        %v2442 = vld [vmem:[%s569 + $0x44] sm:$0xf]
        %v2443 = vld [vmem:[%s569 + $0x48] sm:$0xf]
        %v2444 = vld [vmem:[%s569 + $0x4c] sm:$0xf]
        %v2445 = vld [vmem:[%s569 + $0x50] sm:$0xf]
        %v2446 = vld [vmem:[%s569 + $0x54] sm:$0xf]
        %v2447 = vld [vmem:[%s569 + $0x58] sm:$0xf]
        %v2448 = vld [vmem:[%s569 + $0x5c] sm:$0xf]
        %v2449 = vld [vmem:[%s569 + $0x60] sm:$0xf]
        %v2450 = vld [vmem:[%s569 + $0x64] sm:$0xf]
        %v2451 = vld [vmem:[%s569 + $0x68] sm:$0xf]
        %v2452 = vld [vmem:[%s569 + $0x6c] sm:$0xf]
        %v2453 = vld [vmem:[%s569 + $0x70] sm:$0xf]
        %v2454 = vld [vmem:[%s569 + $0x74] sm:$0xf]
        %v2455 = vld [vmem:[%s569 + $0x78] sm:$0xf]
        %v2456 = vld [vmem:[%s569 + $0x7c] sm:$0xf]
        %v2457 = vld [vmem:[%s569 + $0x80] sm:$0xf]
        %v2458 = vld [vmem:[%s569 + $0x84] sm:$0xf]
        %v2459 = vld [vmem:[%s569 + $0x88] sm:$0xf]
        %v2460 = vld [vmem:[%s569 + $0x8c] sm:$0xf]
        %v2461 = vld [vmem:[%s569 + $0x90] sm:$0xf]
        %v2462 = vld [vmem:[%s569 + $0x94] sm:$0xf]
        %v2463 = vld [vmem:[%s569 + $0x98] sm:$0xf]
        %v2464 = vld [vmem:[%s569 + $0x9c] sm:$0xf]
        %v2465 = vld [vmem:[%s569 + $0xa0] sm:$0xf]
        %v2466 = vld [vmem:[%s569 + $0xa4] sm:$0xf]
        %v2467 = vld [vmem:[%s569 + $0xa8] sm:$0xf]
        %v2468 = vld [vmem:[%s569 + $0xac] sm:$0xf]
        %v2469 = vld [vmem:[%s569 + $0xb0] sm:$0xf]
        %v2470 = vld [vmem:[%s569 + $0xb4] sm:$0xf]
        %v2471 = vld [vmem:[%s569 + $0xb8] sm:$0xf]
        %v2472 = vld [vmem:[%s569 + $0xbc] sm:$0xf]
        %v2521 = vunpack.c.l.b16 %v2425
        %v2522 = vunpack.c.l.b16 %v2426
        %v2523 = vunpack.c.l.b16 %v2427
        %v2524 = vunpack.c.l.b16 %v2428
        %v2525 = vunpack.c.l.b16 %v2429
        %v2526 = vunpack.c.l.b16 %v2430
        %v2527 = vunpack.c.l.b16 %v2431
        %v2528 = vunpack.c.l.b16 %v2432
        %v2529 = vunpack.c.l.b16 %v2433
        %v2530 = vunpack.c.l.b16 %v2434
        %v2531 = vunpack.c.l.b16 %v2435
        %v2532 = vunpack.c.l.b16 %v2436
        %v2533 = vunpack.c.l.b16 %v2437
        %v2534 = vunpack.c.l.b16 %v2438
        %v2535 = vunpack.c.l.b16 %v2439
        %v2536 = vunpack.c.l.b16 %v2440
        %v2537 = vunpack.c.l.b16 %v2441
        %v2538 = vunpack.c.l.b16 %v2442
        %v2539 = vunpack.c.l.b16 %v2443
        %v2540 = vunpack.c.l.b16 %v2444
        %v2541 = vunpack.c.l.b16 %v2445
        %v2542 = vunpack.c.l.b16 %v2446
        %v2543 = vunpack.c.l.b16 %v2447
        %v2544 = vunpack.c.l.b16 %v2448
        %v2545 = vunpack.c.l.b16 %v2449
        %v2546 = vunpack.c.l.b16 %v2450
        %v2547 = vunpack.c.l.b16 %v2451
        %v2548 = vunpack.c.l.b16 %v2452
        %v2549 = vunpack.c.l.b16 %v2453
        %v2550 = vunpack.c.l.b16 %v2454
        %v2551 = vunpack.c.l.b16 %v2455
        %v2552 = vunpack.c.l.b16 %v2456
        %v2553 = vunpack.c.l.b16 %v2457
        %v2554 = vunpack.c.l.b16 %v2458
        %v2555 = vunpack.c.l.b16 %v2459
        %v2556 = vunpack.c.l.b16 %v2460
        %v2557 = vunpack.c.l.b16 %v2461
        %v2558 = vunpack.c.l.b16 %v2462
        %v2559 = vunpack.c.l.b16 %v2463
        %v2560 = vunpack.c.l.b16 %v2464
        %v2561 = vunpack.c.l.b16 %v2465
        %v2562 = vunpack.c.l.b16 %v2466
        %v2563 = vunpack.c.l.b16 %v2467
        %v2564 = vunpack.c.l.b16 %v2468
        %v2565 = vunpack.c.l.b16 %v2469
        %v2566 = vunpack.c.l.b16 %v2470
        %v2567 = vunpack.c.l.b16 %v2471
        %v2568 = vunpack.c.l.b16 %v2472
        %v2569 = vpack.c.b16 %v2522, %v2521
        %v2570 = vpack.c.b16 %v2524, %v2523
        %v2571 = vpack.c.b16 %v2526, %v2525
        %v2572 = vpack.c.b16 %v2528, %v2527
        %v2573 = vpack.c.b16 %v2530, %v2529
        %v2574 = vpack.c.b16 %v2532, %v2531
        %v2575 = vpack.c.b16 %v2534, %v2533
        %v2576 = vpack.c.b16 %v2536, %v2535
        %v2577 = vpack.c.b16 %v2538, %v2537
        %v2578 = vpack.c.b16 %v2540, %v2539
        %v2579 = vpack.c.b16 %v2542, %v2541
        %v2580 = vpack.c.b16 %v2544, %v2543
        %v2581 = vpack.c.b16 %v2546, %v2545
        %v2582 = vpack.c.b16 %v2548, %v2547
        %v2583 = vpack.c.b16 %v2550, %v2549
        %v2584 = vpack.c.b16 %v2552, %v2551
        %v2585 = vpack.c.b16 %v2554, %v2553
        %v2586 = vpack.c.b16 %v2556, %v2555
        %v2587 = vpack.c.b16 %v2558, %v2557
        %v2588 = vpack.c.b16 %v2560, %v2559
        %v2589 = vpack.c.b16 %v2562, %v2561
        %v2590 = vpack.c.b16 %v2564, %v2563
        %v2591 = vpack.c.b16 %v2566, %v2565
        %v2592 = vpack.c.b16 %v2568, %v2567
        %2617 = vmatprep.subr.bf16.mxu0 0
        %2618 = vmatpush1.bf16.msra.mxu0 %v2569
        %2619 = vmatprep.subr.bf16.mxu0 0
        %2620 = vmatpush1.bf16.msra.mxu0 %v2570
        %2621 = vmatprep.subr.bf16.mxu0 0
        %2622 = vmatpush1.bf16.msra.mxu0 %v2571
        %2623 = vmatprep.subr.bf16.mxu0 0
        %2624 = vmatpush1.bf16.msra.mxu0 %v2572
        %2625 = vmatprep.subr.bf16.mxu0 0
        %2626 = vmatpush1.bf16.msra.mxu0 %v2573
        %2627 = vmatprep.subr.bf16.mxu0 0
        %2628 = vmatpush1.bf16.msra.mxu0 %v2574
        %2629 = vmatprep.subr.bf16.mxu0 0
        %2630 = vmatpush1.bf16.msra.mxu0 %v2575
        %2631 = vmatprep.subr.bf16.mxu0 0
        %2632 = vmatpush1.bf16.msra.mxu0 %v2576
        %2633 = vmatprep.subr.bf16.mxu0 0
        %2634 = vmatpush1.bf16.msra.mxu0 %v2577
        %2635 = vmatprep.subr.bf16.mxu0 0
        %2636 = vmatpush1.bf16.msra.mxu0 %v2578
        %2637 = vmatprep.subr.bf16.mxu0 0
        %2638 = vmatpush1.bf16.msra.mxu0 %v2579
        %2639 = vmatprep.subr.bf16.mxu0 0
        %2640 = vmatpush1.bf16.msra.mxu0 %v2580
        %2641 = vmatprep.subr.bf16.mxu0 0
        %2642 = vmatpush1.bf16.msra.mxu0 %v2581
        %2643 = vmatprep.subr.bf16.mxu0 0
        %2644 = vmatpush1.bf16.msra.mxu0 %v2582
        %2645 = vmatprep.subr.bf16.mxu0 0
        %2646 = vmatpush1.bf16.msra.mxu0 %v2583
        %2647 = vmatprep.subr.bf16.mxu0 0
        %2648 = vmatpush1.bf16.msra.mxu0 %v2584
        %2649 = vmatprep.mubr.bf16.mxu0 %v2423
        %2650 = vmatmul.mubr.bf16.gmra.mrb[0].mxu0 %v2422
        %v2651 = vpop.f32.mrb[0].mxu0
        %v2652 = vadd.f32 0.0, %v2651
        %v2653 = vpop.f32.mrb[0].mxu0
        %v2654 = vpop.f32.mrb[0].mxu0
        %v2655 = vadd.f32 0.0, %v2654
        %v2656 = vpop.f32.mrb[0].mxu0
        %2657 = vdwg.mxu0
        %2658 = vmatprep.subr.bf16.mxu0 0
        %2659 = vmatpush1.bf16.msra.mxu0 %v2585
        %2660 = vmatprep.subr.bf16.mxu0 0
        %2661 = vmatpush1.bf16.msra.mxu0 %v2586
        %2662 = vmatprep.subr.bf16.mxu0 0
        %2663 = vmatpush1.bf16.msra.mxu0 %v2587
        %2664 = vmatprep.subr.bf16.mxu0 0
        %2665 = vmatpush1.bf16.msra.mxu0 %v2588
        %2666 = vmatprep.subr.bf16.mxu0 0
        %2667 = vmatpush1.bf16.msra.mxu0 %v2589
        %2668 = vmatprep.subr.bf16.mxu0 0
        %2669 = vmatpush1.bf16.msra.mxu0 %v2590
        %2670 = vmatprep.subr.bf16.mxu0 0
        %2671 = vmatpush1.bf16.msra.mxu0 %v2591
        %2672 = vmatprep.subr.bf16.mxu0 0
        %2673 = vmatpush1.bf16.msra.mxu0 %v2592
        %2674 = vmatprep.subr.bf16.mxu0 0
        %2675 = vmatpush1.bf16.msra.mxu0 0
        %2676 = vmatprep.subr.bf16.mxu0 0
        %2677 = vmatpush1.bf16.msra.mxu0 0
        %2678 = vmatprep.subr.bf16.mxu0 0
        %2679 = vmatpush1.bf16.msra.mxu0 0
        %2680 = vmatprep.subr.bf16.mxu0 0
        %2681 = vmatpush1.bf16.msra.mxu0 0
        %2682 = vmatprep.subr.bf16.mxu0 0
        %2683 = vmatpush1.bf16.msra.mxu0 0
        %2684 = vmatprep.subr.bf16.mxu0 0
        %2685 = vmatpush1.bf16.msra.mxu0 0
        %2686 = vmatprep.subr.bf16.mxu0 0
        %2687 = vmatpush1.bf16.msra.mxu0 0
        %2688 = vmatprep.subr.bf16.mxu0 0
        %2689 = vmatpush1.bf16.msra.mxu0 0
        %2690 = vmatprep.mubr.bf16.mxu0 0
        %2691 = vmatmul.mubr.bf16.gmra.mrb[0].mxu0 %v2424
        %v2692 = vpop.f32.mrb[0].mxu0
        %v2693 = vadd.f32 %v2652, %v2692
        %v2694 = vpop.f32.mrb[0].mxu0
        %v2695 = vpop.f32.mrb[0].mxu0
        %v2696 = vadd.f32 %v2655, %v2695
        %v2697 = vpop.f32.mrb[0].mxu0
        %2698 = vdwg.mxu0
        %v2699 = vadd.f32 %v1931, %v2693
        %v2700 = vadd.f32 %v1932, %v2696
        %2701 = vst [vmem:[%s11] sm:$0xff] %v2699
        %2702 = vst [vmem:[%s11 + $0x8] sm:$0xff] %v2700
        %s2703 = sand.u32 %s311, 1
        %s2704 = scalar_lea.sflag [#allocation7], %s2703
        %s2705 = sand.u32 %s311, 1
        %s2706 = smul.addr %s2705, 64
        %s2707 = scalar_lea.vmem [#allocation13], %s2706
        // Predicated region
        $region81: #{transformer_forward.2} parent=59 // pred_check
          %p2708 = pneg %p295
        $region82: #{transformer_forward.2} parent=59 // pred_check_branch
          %2710 = sbr.rel (%p2708) target = $region84
        $region83: #{transformer_forward.2} parent=59 // pred_region
          _
        $region84: #{transformer_forward.2} parent=59 // pred_fallthru
          _
        // Predicated region
        $region85: #{transformer_forward.2} parent=59 // pred_check
          %p2711 = pneg %p321
        $region86: #{transformer_forward.2} parent=59 // pred_check_branch
          %2713 = sbr.rel (%p2711) target = $region88
        $region87: #{transformer_forward.2} parent=59 // pred_region
          %s2715 = ssub.s32 1024, 1024
          %2716 = vsyncadd %s2704, %s2715
          %s2717 = smul.addr %s37, 8
          %s2718 = smul.addr %s2717, 128
          %s2719 = scalar_lea.hbm %s12, %s2718
          %s2720 = sshll.u32 %s2707, 4
          %s2721 = int_to_ptr.vmem [resolvable:$true] %s2720
          %2726 = dma.vmem_to_hbm [thread:$0]  %s2721, 1024, %s2719, %s2704, 128, 128, 8
        $region88: #{transformer_forward.2} parent=59 // pred_fallthru
          _
        // Predicated region
        $region89: #{transformer_forward.2} parent=59 // pred_check
          %p2727 = pneg %p295
        $region90: #{transformer_forward.2} parent=59 // pred_check_branch
          %2729 = sbr.rel (%p2727) target = $region92
        $region91: #{transformer_forward.2} parent=59 // pred_region
          _
        $region92: #{transformer_forward.2} parent=59 // pred_fallthru
          _
      $region60: #{transformer_forward.2} parent=5 // pred_fallthru
        _
      %p2730 = scmp.le.s32.totalorder 2, %s32
      // Predicated region
      $region93: #{transformer_forward.2} parent=5 // pred_check
        %p2731 = pneg %p2730
      $region94: #{transformer_forward.2} parent=5 // pred_check_branch
        %2733 = sbr.rel (%p2731) target = $region96
      $region95: #{transformer_forward.2} parent=5 // pred_region
        %s2734 = ssub.s32 %s32, 2
        // Predicated region
        $region97: #{transformer_forward.2} parent=95 // pred_check
          %p2735 = pneg %p327
        $region98: #{transformer_forward.2} parent=95 // pred_check_branch
          %2737 = sbr.rel (%p2735) target = $region100
        $region99: #{transformer_forward.2} parent=95 // pred_region
          %s2738 = sand.u32 %s312, 1
          %s2739 = scalar_lea.sflag [#allocation7], %s2738
          %s2740 = sand.u32 %s312, 1
          %s2741 = smul.addr %s2740, 64
          %s2742 = scalar_lea.vmem [#allocation13], %s2741
          %2743 = dma.done %s2739, 1024
        $region100: #{transformer_forward.2} parent=95 // pred_fallthru
          _
      $region96: #{transformer_forward.2} parent=5 // pred_fallthru
        _
    $region6: #{transformer_forward.2} parent=1 // loop_footer
      %s36 = sadd.s32 1, %s32
    $region7: #{transformer_forward.2} parent=1 // loop_footer_branch
      %31 = sbr.rel target = $region3
    $region8: #{transformer_forward.2} parent=1 // loop_exit
      _
    %2744 = vsyncpa [#allocation6], 1
    %s2745 = scalar_lea.sflag [#allocation6], 1
    %2746 = vsyncpa %s2745, 1
    %2747 = vsyncpa [#allocation9], 1
    %s2748 = scalar_lea.sflag [#allocation9], 1
    %2749 = vsyncpa %s2748, 1
    %2750 = vsyncpa [#allocation12], 1
    %s2751 = scalar_lea.sflag [#allocation12], 1
    %2752 = vsyncpa %s2751, 1
    %2753 = vsyncpa [#allocation7], 1
    %s2754 = scalar_lea.sflag [#allocation7], 1
    %2755 = vsyncpa %s2754, 1

</llo_original>
